<compile_context>
chip_gen: v7x
topology: tpu7x:2x2x1
jax: 0.10.0
libtpu: 0.0.40
codegen_flags: <defaults>
</compile_context>

<pallas_src>
import jax
import jax.numpy as jnp
from jax.experimental import pallas as pl
from jax.experimental.pallas import tpu as pltpu

BN_EPS = 1e-5
N_CH = 4


# --------------------------------------------------------------------------
# Padded "plane" activation layout
#   Dp = D + 2            depth planes incl. the zero conv-padding planes
#   P  = (H+2) * (W+2)    one flattened, zero-padded H/W plane
#   G  = (W+2) + 1        guard so every in-plane 3x3 shift is a
#                         non-negative lane slice (no negative starts)
#   Pw = P + 2*G          stored plane width (guards hold zeros)
# --------------------------------------------------------------------------
def plane_dims(D, H, W):
    Dp, Hp, Wp = D + 2, H + 2, W + 2
    P = Hp * Wp
    G = Wp + 1
    return Dp, Hp, Wp, P, G, P + 2 * G


def to_plane_layout(x_ncdhw):
    """(N, C, D, H, W) f32 -> (N, Dp, C, Pw) bf16, zero padded + guarded."""
    N, C, D, H, W = x_ncdhw.shape
    Dp, Hp, Wp, P, G, Pw = plane_dims(D, H, W)
    xp = jnp.pad(x_ncdhw, ((0, 0), (0, 0), (1, 1), (1, 1), (1, 1)))
    xp = jnp.transpose(xp, (0, 2, 1, 3, 4)).reshape(N, Dp, C, P)
    xp = jnp.pad(xp, ((0, 0), (0, 0), (0, 0), (G, G)))
    return xp.astype(jnp.bfloat16)


def from_plane_layout(a, D, H, W):
    """(N, Dp, C, Pw) -> (N, C, D, H, W): strip guards + padding ring."""
    N, Dp, C, Pw = a.shape
    _, Hp, Wp, P, G, _ = plane_dims(D, H, W)
    a = a[:, 1:D + 1, :, G:G + P].reshape(N, D, C, Hp, Wp)
    a = a[:, :, :, 1:H + 1, 1:W + 1]
    return jnp.transpose(a, (0, 2, 1, 3, 4))


def make_interior_mask(D, H, W):
    """(Dp, 1, P) f32: 1 at real voxels, 0 on the conv-padding ring."""
    Dp, Hp, Wp, P, _, _ = plane_dims(D, H, W)
    md = (jnp.arange(Dp) >= 1) & (jnp.arange(Dp) <= D)
    mh = (jnp.arange(Hp) >= 1) & (jnp.arange(Hp) <= H)
    mw = (jnp.arange(Wp) >= 1) & (jnp.arange(Wp) <= W)
    mp = (mh[:, None] & mw[None, :]).reshape(P)
    return (md[:, None] & mp[None, :]).astype(jnp.float32).reshape(Dp, 1, P)


# --------------------------------------------------------------------------
# Pallas kernel: one grid step = one output plane of one sample.
#   in-VMEM im2col (27 static slices) -> single MXU dot -> fused epilogue
# --------------------------------------------------------------------------
def _make_conv_plane_kernel(P, Wp, G, mode, split):
    def _store(o_ref, val):
        z = jnp.zeros((val.shape[0], G), val.dtype)
        o_ref[0, 0, :, :] = jnp.concatenate([z, val, z], axis=1).astype(o_ref.dtype)

    def kernel(w_ref, b_ref, m_ref, xm_ref, x0_ref, xp_ref, *rest):
        # ---- in-VMEM im2col: 27 static lane-shifted slices -> (27*C, P) ---
        rows = []
        for x_ref in (xm_ref, x0_ref, xp_ref):                 # kd = 0, 1, 2
            xv = x_ref[0, 0, :, :]                              # (C, Pw) bf16
            for kh in range(3):
                for kw in range(3):
                    s = G + (kh - 1) * Wp + (kw - 1)            # >= 0 (guard)
                    rows.append(xv[:, s:s + P])
        panel = jnp.concatenate(rows, axis=0)                   # (27*C, P)

        # ---- single MXU matmul, f32 accumulation --------------------------
        acc = jnp.dot(w_ref[...], panel, preferred_element_type=jnp.float32)

        # ---- fused epilogue: conv bias + folded BN bias + ReLU + mask ------
        y = jnp.maximum(acc + b_ref[...], 0.0)
        y = jnp.where(m_ref[0, :, :] > 0.5, y, 0.0)             # zero pad ring

        if mode == "split":              # fused skip conv + branch-first convs
            o1_ref, o2_ref = rest
            _store(o1_ref, y[:split])
            _store(o2_ref, y[split:])
        elif mode == "skip":             # last conv + fused residual add
            s_ref, o_ref = rest
            sk = s_ref[0, 0, :, :][:, G:G + P].astype(jnp.float32)
            _store(o_ref, y + sk)
        elif mode == "sum_halves":       # plain path: relu(chs(x)) + relu(skip(x))
            (o_ref,) = rest
            h = y.shape[0] // 2
            _store(o_ref, y[:h] + y[h:])
        else:
            (o_ref,) = rest
            _store(o_ref, y)

    return kernel


def conv_plane_call(x_pl, wT, bias, mask, Wp, *, mode="plain", split=None,
                    skip_pl=None, out_dtype=jnp.bfloat16):
    """One Conv3d(3x3x3, pad 1) + folded BN + ReLU layer in plane layout.

    x_pl : (N, Dp, C, Pw)  bf16 activations (padded plane layout)
    wT   : (Cout, 27*C)    bf16, BN scale folded in, tap-major / channel-minor
    bias : (Cout, 1)       f32  (conv bias + folded BN bias)
    mask : (Dp, 1, P)      f32 interior mask
    """
    N, Dp, C, Pw = x_pl.shape
    G = Wp + 1
    P = Pw - 2 * G
    Cout = wT.shape[0]
    assert wT.shape[1] == 27 * C

    def xmap(shift):
        return lambda n, d: (n, jnp.clip(d + shift, 0, Dp - 1), 0, 0)

    in_specs = [
        pl.BlockSpec((Cout, 27 * C), lambda n, d: (0, 0)),      # weights (resident)
        pl.BlockSpec((Cout, 1), lambda n, d: (0, 0)),           # folded bias
        pl.BlockSpec((1, 1, P), lambda n, d: (d, 0, 0)),        # interior mask
        pl.BlockSpec((1, 1, C, Pw), xmap(-1)),                  # plane d-1
        pl.BlockSpec((1, 1, C, Pw), xmap(0)),                   # plane d
        pl.BlockSpec((1, 1, C, Pw), xmap(1)),                   # plane d+1
    ]
    args = [wT, bias, mask, x_pl, x_pl, x_pl]

    if mode == "skip":
        Cs = skip_pl.shape[2]
        in_specs.append(pl.BlockSpec((1, 1, Cs, Pw), lambda n, d: (n, d, 0, 0)))
        args.append(skip_pl)

    if mode == "split":
        c1, c2 = split, Cout - split
        out_shape = (jax.ShapeDtypeStruct((N, Dp, c1, Pw), out_dtype),
                     jax.ShapeDtypeStruct((N, Dp, c2, Pw), out_dtype))
        out_specs = (pl.BlockSpec((1, 1, c1, Pw), lambda n, d: (n, d, 0, 0)),
                     pl.BlockSpec((1, 1, c2, Pw), lambda n, d: (n, d, 0, 0)))
    elif mode == "sum_halves":
        co = Cout // 2
        out_shape = jax.ShapeDtypeStruct((N, Dp, co, Pw), out_dtype)
        out_specs = pl.BlockSpec((1, 1, co, Pw), lambda n, d: (n, d, 0, 0))
    else:
        out_shape = jax.ShapeDtypeStruct((N, Dp, Cout, Pw), out_dtype)
        out_specs = pl.BlockSpec((1, 1, Cout, Pw), lambda n, d: (n, d, 0, 0))

    kernel = _make_conv_plane_kernel(P, Wp, G, mode, split)

    return pl.pallas_call(
        kernel,
        out_shape=out_shape,
        grid=(N, Dp),
        in_specs=in_specs,
        out_specs=out_specs,
        compiler_params=pltpu.CompilerParams(
            dimension_semantics=("parallel", "parallel")),
    )(*args)


# --------------------------------------------------------------------------
# Parameter preparation: fold BN into weights/bias, fuse branches
# --------------------------------------------------------------------------
def _bn_fold(p):
    scale = p["gamma"] / jnp.sqrt(p["var"] + BN_EPS)
    bias = p["beta"] + (p["b"] - p["mean"]) * scale
    return scale, bias


def prep_conv(p):
    # p["w"]: (Cout, Cin, 3, 3, 3) PyTorch layout
    w = p["w"]
    Cout = w.shape[0]
    scale, bias = _bn_fold(p)
    wT = jnp.transpose(w, (0, 2, 3, 4, 1)).reshape(Cout, -1)   # tap-major, ch-minor
    wT = (wT * scale[:, None]).astype(jnp.bfloat16)
    return wT, bias.reshape(Cout, 1).astype(jnp.float32)


def prep_concat_convs(plist):
    # Concatenate several convs (same Cin) along Cout, then fold BN.
    cat = lambda k: jnp.concatenate([p[k] for p in plist], axis=0)
    p = dict(w=cat("w"), b=cat("b"), gamma=cat("gamma"), beta=cat("beta"),
             mean=cat("mean"), var=cat("var"))
    return prep_conv(p)


def prep_blockdiag_second(chs):
    # The 4 independent 4->4 convs as one block-diagonal 16->16 conv.
    wt = jnp.stack([jnp.transpose(b1["w"], (0, 2, 3, 4, 1)).reshape(4, 27, 4)
                    for _, b1 in chs], axis=0)                 # (br, co, tap, ci)
    eye = jnp.eye(N_CH, dtype=wt.dtype)
    bd = wt[:, :, :, None, :] * eye[:, None, None, :, None]    # (bo,co,tap,bi,ci)
    wT = bd.reshape(4 * N_CH, 27 * 4 * N_CH)                   # (16, 27*16)
    cat = lambda k: jnp.concatenate([b1[k] for _, b1 in chs], axis=0)
    scale = cat("gamma") / jnp.sqrt(cat("var") + BN_EPS)
    bias = cat("beta") + (cat("b") - cat("mean")) * scale
    wT = (wT * scale[:, None]).astype(jnp.bfloat16)
    return wT, bias.reshape(-1, 1).astype(jnp.float32)


# --------------------------------------------------------------------------
# InceptionV4 forward (Pallas) + parameter init
# --------------------------------------------------------------------------
def init_block_params(key, cin, cout):
    ks = jax.random.split(key, 6)
    return dict(
        w=0.05 * jax.random.normal(ks[0], (cout, cin, 3, 3, 3), jnp.float32),
        b=0.05 * jax.random.normal(ks[1], (cout,), jnp.float32),
        gamma=1.0 + 0.1 * jax.random.normal(ks[2], (cout,), jnp.float32),
        beta=0.05 * jax.random.normal(ks[3], (cout,), jnp.float32),
        mean=0.05 * jax.random.normal(ks[4], (cout,), jnp.float32),
        var=1.0 + 0.1 * jax.random.uniform(ks[5], (cout,), jnp.float32),
    )


def init_inception_params(key, in_channel, out_channel):
    keys = jax.random.split(key, 2 + 2 * N_CH)
    params = {"skip": init_block_params(keys[0], in_channel, out_channel)}
    if in_channel > 4 and out_channel > 4:
        chs = []
        for i in range(N_CH):
            chs.append((init_block_params(keys[2 + 2 * i], in_channel, 4),
                        init_block_params(keys[3 + 2 * i], 4, 4)))
        params["chs"] = chs
        params["last"] = init_block_params(keys[1], 4 * N_CH, out_channel)
    else:
        params["chs_single"] = init_block_params(keys[1], in_channel, out_channel)
    return params


def inception_v4_forward(x_ncdhw, params):
    N, Cin, D, H, W = x_ncdhw.shape
    Dp, Hp, Wp, P, G, Pw = plane_dims(D, H, W)

    x_pl = to_plane_layout(x_ncdhw)                  # (N, Dp, Cin, Pw) bf16
    mask = make_interior_mask(D, H, W)               # (Dp, 1, P) f32

    if "chs" in params:
        out_c = params["last"]["w"].shape[0]
        # Layer A: skip conv (out_c) + 4 branch-first convs (16) in ONE call.
        wA, bA = prep_concat_convs([params["skip"]] + [b0 for b0, _ in params["chs"]])
        # Layer B: 4 independent 4->4 convs as one block-diagonal 16->16 conv.
        wB, bB = prep_blockdiag_second(params["chs"])
        # Layer C: last conv 16 -> out_c, residual add fused in the epilogue.
        wC, bC = prep_conv(params["last"])

        skip_pl, mid1 = conv_plane_call(x_pl, wA, bA, mask, Wp,
                                        mode="split", split=out_c,
                                        out_dtype=jnp.bfloat16)
        mid2 = conv_plane_call(mid1, wB, bB, mask, Wp, out_dtype=jnp.bfloat16)
        out_pl = conv_plane_call(mid2, wC, bC, mask, Wp, mode="skip",
                                 skip_pl=skip_pl, out_dtype=jnp.float32)
    else:
        # Plain path: relu(chs(x)) + relu(skip(x)) fused into ONE call.
        wP, bP = prep_concat_convs([params["chs_single"], params["skip"]])
        out_pl = conv_plane_call(x_pl, wP, bP, mask, Wp, mode="sum_halves",
                                 out_dtype=jnp.float32)

    return from_plane_layout(out_pl, D, H, W)        # (N, out_c, D, H, W) f32


# --------------------------------------------------------------------------
# Pure-JAX reference (correctness check only, f32 HIGHEST precision)
# --------------------------------------------------------------------------
def _conv_block_ref(x, p):
    w = jnp.transpose(p["w"], (2, 3, 4, 1, 0))           # -> DHWIO
    y = jax.lax.conv_general_dilated(
        x, w, window_strides=(1, 1, 1),
        padding=((1, 1), (1, 1), (1, 1)),
        dimension_numbers=("NDHWC", "DHWIO", "NDHWC"),
        precision=jax.lax.Precision.HIGHEST)
    y = y + p["b"]
    scale = p["gamma"] / jnp.sqrt(p["var"] + BN_EPS)
    y = (y - p["mean"]) * scale + p["beta"]
    return jnp.maximum(y, 0.0)


def inception_v4_ref(x_ncdhw, params):
    x = jnp.transpose(x_ncdhw, (0, 2, 3, 4, 1))
    skip = _conv_block_ref(x, params["skip"])
    if "chs" in params:
        outs = [_conv_block_ref(_conv_block_ref(x, b0), b1)
                for b0, b1 in params["chs"]]
        out = jnp.concatenate(outs, axis=-1)
        out = _conv_block_ref(out, params["last"])
    else:
        out = _conv_block_ref(x, params["chs_single"])
    out = out + skip
    return jnp.transpose(out, (0, 4, 1, 2, 3))


# --------------------------------------------------------------------------
if __name__ == "__main__":
    key = jax.random.PRNGKey(0)
    kx, kp, kx2, kp2 = jax.random.split(key, 4)

    fwd = jax.jit(inception_v4_forward)

    # --- inception path (in_channel > 4 and out_channel > 4) ---
    in_channel, out_channel = 8, 8
    N, D, H, W = 2, 4, 8, 8
    x = jax.random.normal(kx, (N, in_channel, D, H, W), jnp.float32)
    params = init_inception_params(kp, in_channel, out_channel)
    out = fwd(x, params)
    jax.block_until_ready(out)
    assert out.shape == (N, out_channel, D, H, W), out.shape
    ref = inception_v4_ref(x, params)
    err = float(jnp.max(jnp.abs(out - ref)))
    if not jnp.allclose(out, ref, atol=5e-2, rtol=5e-2):
        raise AssertionError(f"inception path mismatch, max abs err = {err}")

    # --- plain path (in_channel <= 4) ---
    x2 = jax.random.normal(kx2, (1, 4, 4, 8, 8), jnp.float32)
    params2 = init_inception_params(kp2, 4, 8)
    out2 = fwd(x2, params2)
    jax.block_until_ready(out2)
    assert out2.shape == (1, 8, 4, 8, 8), out2.shape
    ref2 = inception_v4_ref(x2, params2)
    err2 = float(jnp.max(jnp.abs(out2 - ref2)))
    if not jnp.allclose(out2, ref2, atol=5e-2, rtol=5e-2):
        raise AssertionError(f"single path mismatch, max abs err = {err2}")

    print("KERNEL_OK")
</pallas_src>

<mosaic_0001>
module attributes {stable_mosaic.version = 11 : i64} {
  func.func @kernel(%arg0: i32, %arg1: i32, %arg2: memref<24x216xbf16, #tpu.memory_space<vmem>>, %arg3: memref<24x1xf32, #tpu.memory_space<vmem>>, %arg4: memref<1x1x100xf32, #tpu.memory_space<vmem>>, %arg5: memref<1x1x8x122xbf16, #tpu.memory_space<vmem>>, %arg6: memref<1x1x8x122xbf16, #tpu.memory_space<vmem>>, %arg7: memref<1x1x8x122xbf16, #tpu.memory_space<vmem>>, %arg8: memref<1x1x8x122xbf16, #tpu.memory_space<vmem>>, %arg9: memref<1x1x16x122xbf16, #tpu.memory_space<vmem>>) attributes {dimension_semantics = [#tpu.dimension_semantics<parallel>, #tpu.dimension_semantics<parallel>], iteration_bounds = array<i64: 2, 6>, scalar_prefetch = 0 : i64, scratch_operands = 0 : i64, tpu.core_type = #tpu.core_type<tc>, window_params = [{pipeline_mode = #tpu.pipeline_mode<synchronous>, transform_indices = @transform_0, window_bounds = array<i64: 24, 216>}, {pipeline_mode = #tpu.pipeline_mode<synchronous>, transform_indices = @transform_1, window_bounds = array<i64: 24, 1>}, {transform_indices = @transform_2, window_bounds = array<i64: 1, 1, 100>}, {transform_indices = @transform_3, window_bounds = array<i64: 1, 1, 8, 122>}, {transform_indices = @transform_4, window_bounds = array<i64: 1, 1, 8, 122>}, {transform_indices = @transform_5, window_bounds = array<i64: 1, 1, 8, 122>}, {transform_indices = @transform_6, window_bounds = array<i64: 1, 1, 8, 122>}, {transform_indices = @transform_7, window_bounds = array<i64: 1, 1, 16, 122>}]} {
    %c0 = arith.constant 0 : index
    %c0_0 = arith.constant 0 : index
    %c0_1 = arith.constant 0 : index
    %c0_2 = arith.constant 0 : index
    %0 = vector.load %arg5[%c0, %c0_0, %c0_1, %c0_2] : memref<1x1x8x122xbf16, #tpu.memory_space<vmem>>, vector<1x1x8x122xbf16>
    %1 = vector.shape_cast %0 : vector<1x1x8x122xbf16> to vector<8x122xbf16>
    %2 = vector.extract_strided_slice %1 {offsets = [0, 0], sizes = [8, 100], strides = [1, 1]} : vector<8x122xbf16> to vector<8x100xbf16>
    %3 = vector.extract_strided_slice %1 {offsets = [0, 1], sizes = [8, 100], strides = [1, 1]} : vector<8x122xbf16> to vector<8x100xbf16>
    %4 = vector.extract_strided_slice %1 {offsets = [0, 2], sizes = [8, 100], strides = [1, 1]} : vector<8x122xbf16> to vector<8x100xbf16>
    %5 = vector.extract_strided_slice %1 {offsets = [0, 10], sizes = [8, 100], strides = [1, 1]} : vector<8x122xbf16> to vector<8x100xbf16>
    %6 = vector.extract_strided_slice %1 {offsets = [0, 11], sizes = [8, 100], strides = [1, 1]} : vector<8x122xbf16> to vector<8x100xbf16>
    %7 = vector.extract_strided_slice %1 {offsets = [0, 12], sizes = [8, 100], strides = [1, 1]} : vector<8x122xbf16> to vector<8x100xbf16>
    %8 = vector.extract_strided_slice %1 {offsets = [0, 20], sizes = [8, 100], strides = [1, 1]} : vector<8x122xbf16> to vector<8x100xbf16>
    %9 = vector.extract_strided_slice %1 {offsets = [0, 21], sizes = [8, 100], strides = [1, 1]} : vector<8x122xbf16> to vector<8x100xbf16>
    %10 = vector.extract_strided_slice %1 {offsets = [0, 22], sizes = [8, 100], strides = [1, 1]} : vector<8x122xbf16> to vector<8x100xbf16>
    %c0_3 = arith.constant 0 : index
    %c0_4 = arith.constant 0 : index
    %c0_5 = arith.constant 0 : index
    %c0_6 = arith.constant 0 : index
    %11 = vector.load %arg6[%c0_3, %c0_4, %c0_5, %c0_6] : memref<1x1x8x122xbf16, #tpu.memory_space<vmem>>, vector<1x1x8x122xbf16>
    %12 = vector.shape_cast %11 : vector<1x1x8x122xbf16> to vector<8x122xbf16>
    %13 = vector.extract_strided_slice %12 {offsets = [0, 0], sizes = [8, 100], strides = [1, 1]} : vector<8x122xbf16> to vector<8x100xbf16>
    %14 = vector.extract_strided_slice %12 {offsets = [0, 1], sizes = [8, 100], strides = [1, 1]} : vector<8x122xbf16> to vector<8x100xbf16>
    %15 = vector.extract_strided_slice %12 {offsets = [0, 2], sizes = [8, 100], strides = [1, 1]} : vector<8x122xbf16> to vector<8x100xbf16>
    %16 = vector.extract_strided_slice %12 {offsets = [0, 10], sizes = [8, 100], strides = [1, 1]} : vector<8x122xbf16> to vector<8x100xbf16>
    %17 = vector.extract_strided_slice %12 {offsets = [0, 11], sizes = [8, 100], strides = [1, 1]} : vector<8x122xbf16> to vector<8x100xbf16>
    %18 = vector.extract_strided_slice %12 {offsets = [0, 12], sizes = [8, 100], strides = [1, 1]} : vector<8x122xbf16> to vector<8x100xbf16>
    %19 = vector.extract_strided_slice %12 {offsets = [0, 20], sizes = [8, 100], strides = [1, 1]} : vector<8x122xbf16> to vector<8x100xbf16>
    %20 = vector.extract_strided_slice %12 {offsets = [0, 21], sizes = [8, 100], strides = [1, 1]} : vector<8x122xbf16> to vector<8x100xbf16>
    %21 = vector.extract_strided_slice %12 {offsets = [0, 22], sizes = [8, 100], strides = [1, 1]} : vector<8x122xbf16> to vector<8x100xbf16>
    %c0_7 = arith.constant 0 : index
    %c0_8 = arith.constant 0 : index
    %c0_9 = arith.constant 0 : index
    %c0_10 = arith.constant 0 : index
    %22 = vector.load %arg7[%c0_7, %c0_8, %c0_9, %c0_10] : memref<1x1x8x122xbf16, #tpu.memory_space<vmem>>, vector<1x1x8x122xbf16>
    %23 = vector.shape_cast %22 : vector<1x1x8x122xbf16> to vector<8x122xbf16>
    %24 = vector.extract_strided_slice %23 {offsets = [0, 0], sizes = [8, 100], strides = [1, 1]} : vector<8x122xbf16> to vector<8x100xbf16>
    %25 = vector.extract_strided_slice %23 {offsets = [0, 1], sizes = [8, 100], strides = [1, 1]} : vector<8x122xbf16> to vector<8x100xbf16>
    %26 = vector.extract_strided_slice %23 {offsets = [0, 2], sizes = [8, 100], strides = [1, 1]} : vector<8x122xbf16> to vector<8x100xbf16>
    %27 = vector.extract_strided_slice %23 {offsets = [0, 10], sizes = [8, 100], strides = [1, 1]} : vector<8x122xbf16> to vector<8x100xbf16>
    %28 = vector.extract_strided_slice %23 {offsets = [0, 11], sizes = [8, 100], strides = [1, 1]} : vector<8x122xbf16> to vector<8x100xbf16>
    %29 = vector.extract_strided_slice %23 {offsets = [0, 12], sizes = [8, 100], strides = [1, 1]} : vector<8x122xbf16> to vector<8x100xbf16>
    %30 = vector.extract_strided_slice %23 {offsets = [0, 20], sizes = [8, 100], strides = [1, 1]} : vector<8x122xbf16> to vector<8x100xbf16>
    %31 = vector.extract_strided_slice %23 {offsets = [0, 21], sizes = [8, 100], strides = [1, 1]} : vector<8x122xbf16> to vector<8x100xbf16>
    %32 = vector.extract_strided_slice %23 {offsets = [0, 22], sizes = [8, 100], strides = [1, 1]} : vector<8x122xbf16> to vector<8x100xbf16>
    %33 = tpu.concatenate %2, %3, %4, %5, %6, %7, %8, %9, %10, %13, %14, %15, %16, %17, %18, %19 in 0 : vector<8x100xbf16>, vector<8x100xbf16>, vector<8x100xbf16>, vector<8x100xbf16>, vector<8x100xbf16>, vector<8x100xbf16>, vector<8x100xbf16>, vector<8x100xbf16>, vector<8x100xbf16>, vector<8x100xbf16>, vector<8x100xbf16>, vector<8x100xbf16>, vector<8x100xbf16>, vector<8x100xbf16>, vector<8x100xbf16>, vector<8x100xbf16> -> vector<128x100xbf16>
    %34 = tpu.concatenate %20, %21, %24, %25, %26, %27, %28, %29, %30, %31, %32 in 0 : vector<8x100xbf16>, vector<8x100xbf16>, vector<8x100xbf16>, vector<8x100xbf16>, vector<8x100xbf16>, vector<8x100xbf16>, vector<8x100xbf16>, vector<8x100xbf16>, vector<8x100xbf16>, vector<8x100xbf16>, vector<8x100xbf16> -> vector<88x100xbf16>
    %35 = tpu.concatenate %33, %34 in 0 : vector<128x100xbf16>, vector<88x100xbf16> -> vector<216x100xbf16>
    %c0_11 = arith.constant 0 : index
    %c0_12 = arith.constant 0 : index
    %36 = vector.load %arg2[%c0_11, %c0_12] : memref<24x216xbf16, #tpu.memory_space<vmem>>, vector<24x216xbf16>
    %cst = arith.constant dense<0.000000e+00> : vector<24x100xf32>
    %37 = tpu.matmul %36, %35, %cst {dimension_numbers = #tpu.dot_dimension_numbers<[1], [0], [0], [1], [0, 0, 1, 1], [], []>} : vector<24x216xbf16>, vector<216x100xbf16>, vector<24x100xf32> -> vector<24x100xf32>
    %c0_13 = arith.constant 0 : index
    %c0_14 = arith.constant 0 : index
    %38 = vector.load %arg3[%c0_13, %c0_14] : memref<24x1xf32, #tpu.memory_space<vmem>>, vector<24x1xf32>
    %39 = vector.broadcast %38 : vector<24x1xf32> to vector<24x100xf32>
    %40 = arith.addf %37, %39 : vector<24x100xf32>
    %cst_15 = arith.constant 0.000000e+00 : f32
    %41 = vector.broadcast %cst_15 : f32 to vector<24x100xf32>
    %42 = arith.maximumf %40, %41 : vector<24x100xf32>
    %c0_16 = arith.constant 0 : index
    %c0_17 = arith.constant 0 : index
    %c0_18 = arith.constant 0 : index
    %43 = vector.load %arg4[%c0_16, %c0_17, %c0_18] : memref<1x1x100xf32, #tpu.memory_space<vmem>>, vector<1x1x100xf32>
    %44 = vector.shape_cast %43 : vector<1x1x100xf32> to vector<1x100xf32>
    %cst_19 = arith.constant 5.000000e-01 : f32
    %45 = vector.broadcast %cst_19 : f32 to vector<1x100xf32>
    %46 = arith.cmpf ogt, %44, %45 : vector<1x100xf32>
    %cst_20 = arith.constant 0.000000e+00 : f32
    %47 = vector.shape_cast %46 : vector<1x100xi1> to vector<1x100xi1>
    %48 = vector.broadcast %47 : vector<1x100xi1> to vector<24x100xi1>
    %49 = vector.broadcast %cst_20 : f32 to vector<24x100xf32>
    %50 = arith.select %48, %42, %49 : vector<24x100xi1>, vector<24x100xf32>
    %51 = vector.extract_strided_slice %50 {offsets = [0, 0], sizes = [8, 100], strides = [1, 1]} : vector<24x100xf32> to vector<8x100xf32>
    %cst_21 = arith.constant 0.000000e+00 : f32
    %52 = vector.broadcast %cst_21 : f32 to vector<8x11xf32>
    %53 = tpu.concatenate %52, %51, %52 in 1 : vector<8x11xf32>, vector<8x100xf32>, vector<8x11xf32> -> vector<8x122xf32>
    %54 = arith.truncf %53 : vector<8x122xf32> to vector<8x122xbf16>
    %c0_22 = arith.constant 0 : index
    %c0_23 = arith.constant 0 : index
    %c0_24 = arith.constant 0 : index
    %c0_25 = arith.constant 0 : index
    %55 = vector.load %arg8[%c0_22, %c0_23, %c0_24, %c0_25] : memref<1x1x8x122xbf16, #tpu.memory_space<vmem>>, vector<1x1x8x122xbf16>
    %56 = vector.shape_cast %55 : vector<1x1x8x122xbf16> to vector<8x122xbf16>
    %57 = vector.shape_cast %54 : vector<8x122xbf16> to vector<1x1x8x122xbf16>
    tpu.vector_store %arg8[%c0_22, %c0_23, %c0_24, %c0_25], %57 {strides = array<i32>} : memref<1x1x8x122xbf16, #tpu.memory_space<vmem>>, vector<1x1x8x122xbf16>,
    %58 = vector.extract_strided_slice %50 {offsets = [8, 0], sizes = [16, 100], strides = [1, 1]} : vector<24x100xf32> to vector<16x100xf32>
    %cst_26 = arith.constant 0.000000e+00 : f32
    %59 = vector.broadcast %cst_26 : f32 to vector<16x11xf32>
    %60 = tpu.concatenate %59, %58, %59 in 1 : vector<16x11xf32>, vector<16x100xf32>, vector<16x11xf32> -> vector<16x122xf32>
    %61 = arith.truncf %60 : vector<16x122xf32> to vector<16x122xbf16>
    %c0_27 = arith.constant 0 : index
    %c0_28 = arith.constant 0 : index
    %c0_29 = arith.constant 0 : index
    %c0_30 = arith.constant 0 : index
    %62 = vector.load %arg9[%c0_27, %c0_28, %c0_29, %c0_30] : memref<1x1x16x122xbf16, #tpu.memory_space<vmem>>, vector<1x1x16x122xbf16>
    %63 = vector.shape_cast %62 : vector<1x1x16x122xbf16> to vector<16x122xbf16>
    %64 = vector.shape_cast %61 : vector<16x122xbf16> to vector<1x1x16x122xbf16>
    tpu.vector_store %arg9[%c0_27, %c0_28, %c0_29, %c0_30], %64 {strides = array<i32>} : memref<1x1x16x122xbf16, #tpu.memory_space<vmem>>, vector<1x1x16x122xbf16>,
    return
  }
  func.func @transform_0(%arg0: i32, %arg1: i32) -> (i32, i32) {
    %c0_i32 = arith.constant 0 : i32
    %c0_i32_0 = arith.constant 0 : i32
    %c0_i32_1 = arith.constant 0 : i32
    return %c0_i32, %c0_i32_0 : i32, i32
  }
  func.func @transform_1(%arg0: i32, %arg1: i32) -> (i32, i32) {
    %c0_i32 = arith.constant 0 : i32
    %c0_i32_0 = arith.constant 0 : i32
    %c0_i32_1 = arith.constant 0 : i32
    return %c0_i32, %c0_i32_0 : i32, i32
  }
  func.func @transform_2(%arg0: i32, %arg1: i32) -> (i32, i32, i32) {
    %c0_i32 = arith.constant 0 : i32
    %c0_i32_0 = arith.constant 0 : i32
    %c0_i32_1 = arith.constant 0 : i32
    return %arg1, %c0_i32, %c0_i32_0 : i32, i32, i32
  }
  func.func @transform_3(%arg0: i32, %arg1: i32) -> (i32, i32, i32, i32) {
    %c-1_i32 = arith.constant -1 : i32
    %0 = arith.addi %arg1, %c-1_i32 : i32
    %c0_i32 = arith.constant 0 : i32
    %c5_i32 = arith.constant 5 : i32
    %1 = arith.maxsi %c0_i32, %0 : i32
    %2 = arith.minsi %c5_i32, %1 : i32
    %c0_i32_0 = arith.constant 0 : i32
    %c0_i32_1 = arith.constant 0 : i32
    %c0_i32_2 = arith.constant 0 : i32
    return %arg0, %2, %c0_i32_0, %c0_i32_1 : i32, i32, i32, i32
  }
  func.func @transform_4(%arg0: i32, %arg1: i32) -> (i32, i32, i32, i32) {
    %c0_i32 = arith.constant 0 : i32
    %0 = arith.addi %arg1, %c0_i32 : i32
    %c0_i32_0 = arith.constant 0 : i32
    %c5_i32 = arith.constant 5 : i32
    %1 = arith.maxsi %c0_i32_0, %0 : i32
    %2 = arith.minsi %c5_i32, %1 : i32
    %c0_i32_1 = arith.constant 0 : i32
    %c0_i32_2 = arith.constant 0 : i32
    %c0_i32_3 = arith.constant 0 : i32
    return %arg0, %2, %c0_i32_1, %c0_i32_2 : i32, i32, i32, i32
  }
  func.func @transform_5(%arg0: i32, %arg1: i32) -> (i32, i32, i32, i32) {
    %c1_i32 = arith.constant 1 : i32
    %0 = arith.addi %arg1, %c1_i32 : i32
    %c0_i32 = arith.constant 0 : i32
    %c5_i32 = arith.constant 5 : i32
    %1 = arith.maxsi %c0_i32, %0 : i32
    %2 = arith.minsi %c5_i32, %1 : i32
    %c0_i32_0 = arith.constant 0 : i32
    %c0_i32_1 = arith.constant 0 : i32
    %c0_i32_2 = arith.constant 0 : i32
    return %arg0, %2, %c0_i32_0, %c0_i32_1 : i32, i32, i32, i32
  }
  func.func @transform_6(%arg0: i32, %arg1: i32) -> (i32, i32, i32, i32) {
    %c0_i32 = arith.constant 0 : i32
    %c0_i32_0 = arith.constant 0 : i32
    %c0_i32_1 = arith.constant 0 : i32
    return %arg0, %arg1, %c0_i32, %c0_i32_0 : i32, i32, i32, i32
  }
  func.func @transform_7(%arg0: i32, %arg1: i32) -> (i32, i32, i32, i32) {
    %c0_i32 = arith.constant 0 : i32
    %c0_i32_0 = arith.constant 0 : i32
    %c0_i32_1 = arith.constant 0 : i32
    return %arg0, %arg1, %c0_i32, %c0_i32_0 : i32, i32, i32, i32
  }
}

module attributes {stable_mosaic.version = 11 : i64} {
  func.func @kernel(%arg0: i32, %arg1: i32, %arg2: memref<16x432xbf16, #tpu.memory_space<vmem>>, %arg3: memref<16x1xf32, #tpu.memory_space<vmem>>, %arg4: memref<1x1x100xf32, #tpu.memory_space<vmem>>, %arg5: memref<1x1x16x122xbf16, #tpu.memory_space<vmem>>, %arg6: memref<1x1x16x122xbf16, #tpu.memory_space<vmem>>, %arg7: memref<1x1x16x122xbf16, #tpu.memory_space<vmem>>, %arg8: memref<1x1x16x122xbf16, #tpu.memory_space<vmem>>) attributes {dimension_semantics = [#tpu.dimension_semantics<parallel>, #tpu.dimension_semantics<parallel>], iteration_bounds = array<i64: 2, 6>, scalar_prefetch = 0 : i64, scratch_operands = 0 : i64, tpu.core_type = #tpu.core_type<tc>, window_params = [{pipeline_mode = #tpu.pipeline_mode<synchronous>, transform_indices = @transform_0, window_bounds = array<i64: 16, 432>}, {pipeline_mode = #tpu.pipeline_mode<synchronous>, transform_indices = @transform_1, window_bounds = array<i64: 16, 1>}, {transform_indices = @transform_2, window_bounds = array<i64: 1, 1, 100>}, {transform_indices = @transform_3, window_bounds = array<i64: 1, 1, 16, 122>}, {transform_indices = @transform_4, window_bounds = array<i64: 1, 1, 16, 122>}, {transform_indices = @transform_5, window_bounds = array<i64: 1, 1, 16, 122>}, {transform_indices = @transform_6, window_bounds = array<i64: 1, 1, 16, 122>}]} {
    %c0 = arith.constant 0 : index
    %c0_0 = arith.constant 0 : index
    %c0_1 = arith.constant 0 : index
    %c0_2 = arith.constant 0 : index
    %0 = vector.load %arg5[%c0, %c0_0, %c0_1, %c0_2] : memref<1x1x16x122xbf16, #tpu.memory_space<vmem>>, vector<1x1x16x122xbf16>
    %1 = vector.shape_cast %0 : vector<1x1x16x122xbf16> to vector<16x122xbf16>
    %2 = vector.extract_strided_slice %1 {offsets = [0, 0], sizes = [16, 100], strides = [1, 1]} : vector<16x122xbf16> to vector<16x100xbf16>
    %3 = vector.extract_strided_slice %1 {offsets = [0, 1], sizes = [16, 100], strides = [1, 1]} : vector<16x122xbf16> to vector<16x100xbf16>
    %4 = vector.extract_strided_slice %1 {offsets = [0, 2], sizes = [16, 100], strides = [1, 1]} : vector<16x122xbf16> to vector<16x100xbf16>
    %5 = vector.extract_strided_slice %1 {offsets = [0, 10], sizes = [16, 100], strides = [1, 1]} : vector<16x122xbf16> to vector<16x100xbf16>
    %6 = vector.extract_strided_slice %1 {offsets = [0, 11], sizes = [16, 100], strides = [1, 1]} : vector<16x122xbf16> to vector<16x100xbf16>
    %7 = vector.extract_strided_slice %1 {offsets = [0, 12], sizes = [16, 100], strides = [1, 1]} : vector<16x122xbf16> to vector<16x100xbf16>
    %8 = vector.extract_strided_slice %1 {offsets = [0, 20], sizes = [16, 100], strides = [1, 1]} : vector<16x122xbf16> to vector<16x100xbf16>
    %9 = vector.extract_strided_slice %1 {offsets = [0, 21], sizes = [16, 100], strides = [1, 1]} : vector<16x122xbf16> to vector<16x100xbf16>
    %10 = vector.extract_strided_slice %1 {offsets = [0, 22], sizes = [16, 100], strides = [1, 1]} : vector<16x122xbf16> to vector<16x100xbf16>
    %c0_3 = arith.constant 0 : index
    %c0_4 = arith.constant 0 : index
    %c0_5 = arith.constant 0 : index
    %c0_6 = arith.constant 0 : index
    %11 = vector.load %arg6[%c0_3, %c0_4, %c0_5, %c0_6] : memref<1x1x16x122xbf16, #tpu.memory_space<vmem>>, vector<1x1x16x122xbf16>
    %12 = vector.shape_cast %11 : vector<1x1x16x122xbf16> to vector<16x122xbf16>
    %13 = vector.extract_strided_slice %12 {offsets = [0, 0], sizes = [16, 100], strides = [1, 1]} : vector<16x122xbf16> to vector<16x100xbf16>
    %14 = vector.extract_strided_slice %12 {offsets = [0, 1], sizes = [16, 100], strides = [1, 1]} : vector<16x122xbf16> to vector<16x100xbf16>
    %15 = vector.extract_strided_slice %12 {offsets = [0, 2], sizes = [16, 100], strides = [1, 1]} : vector<16x122xbf16> to vector<16x100xbf16>
    %16 = vector.extract_strided_slice %12 {offsets = [0, 10], sizes = [16, 100], strides = [1, 1]} : vector<16x122xbf16> to vector<16x100xbf16>
    %17 = vector.extract_strided_slice %12 {offsets = [0, 11], sizes = [16, 100], strides = [1, 1]} : vector<16x122xbf16> to vector<16x100xbf16>
    %18 = vector.extract_strided_slice %12 {offsets = [0, 12], sizes = [16, 100], strides = [1, 1]} : vector<16x122xbf16> to vector<16x100xbf16>
    %19 = vector.extract_strided_slice %12 {offsets = [0, 20], sizes = [16, 100], strides = [1, 1]} : vector<16x122xbf16> to vector<16x100xbf16>
    %20 = vector.extract_strided_slice %12 {offsets = [0, 21], sizes = [16, 100], strides = [1, 1]} : vector<16x122xbf16> to vector<16x100xbf16>
    %21 = vector.extract_strided_slice %12 {offsets = [0, 22], sizes = [16, 100], strides = [1, 1]} : vector<16x122xbf16> to vector<16x100xbf16>
    %c0_7 = arith.constant 0 : index
    %c0_8 = arith.constant 0 : index
    %c0_9 = arith.constant 0 : index
    %c0_10 = arith.constant 0 : index
    %22 = vector.load %arg7[%c0_7, %c0_8, %c0_9, %c0_10] : memref<1x1x16x122xbf16, #tpu.memory_space<vmem>>, vector<1x1x16x122xbf16>
    %23 = vector.shape_cast %22 : vector<1x1x16x122xbf16> to vector<16x122xbf16>
    %24 = vector.extract_strided_slice %23 {offsets = [0, 0], sizes = [16, 100], strides = [1, 1]} : vector<16x122xbf16> to vector<16x100xbf16>
    %25 = vector.extract_strided_slice %23 {offsets = [0, 1], sizes = [16, 100], strides = [1, 1]} : vector<16x122xbf16> to vector<16x100xbf16>
    %26 = vector.extract_strided_slice %23 {offsets = [0, 2], sizes = [16, 100], strides = [1, 1]} : vector<16x122xbf16> to vector<16x100xbf16>
    %27 = vector.extract_strided_slice %23 {offsets = [0, 10], sizes = [16, 100], strides = [1, 1]} : vector<16x122xbf16> to vector<16x100xbf16>
    %28 = vector.extract_strided_slice %23 {offsets = [0, 11], sizes = [16, 100], strides = [1, 1]} : vector<16x122xbf16> to vector<16x100xbf16>
    %29 = vector.extract_strided_slice %23 {offsets = [0, 12], sizes = [16, 100], strides = [1, 1]} : vector<16x122xbf16> to vector<16x100xbf16>
    %30 = vector.extract_strided_slice %23 {offsets = [0, 20], sizes = [16, 100], strides = [1, 1]} : vector<16x122xbf16> to vector<16x100xbf16>
    %31 = vector.extract_strided_slice %23 {offsets = [0, 21], sizes = [16, 100], strides = [1, 1]} : vector<16x122xbf16> to vector<16x100xbf16>
    %32 = vector.extract_strided_slice %23 {offsets = [0, 22], sizes = [16, 100], strides = [1, 1]} : vector<16x122xbf16> to vector<16x100xbf16>
    %33 = tpu.concatenate %2, %3, %4, %5, %6, %7, %8, %9, %10, %13, %14, %15, %16, %17, %18, %19 in 0 : vector<16x100xbf16>, vector<16x100xbf16>, vector<16x100xbf16>, vector<16x100xbf16>, vector<16x100xbf16>, vector<16x100xbf16>, vector<16x100xbf16>, vector<16x100xbf16>, vector<16x100xbf16>, vector<16x100xbf16>, vector<16x100xbf16>, vector<16x100xbf16>, vector<16x100xbf16>, vector<16x100xbf16>, vector<16x100xbf16>, vector<16x100xbf16> -> vector<256x100xbf16>
    %34 = tpu.concatenate %20, %21, %24, %25, %26, %27, %28, %29, %30, %31, %32 in 0 : vector<16x100xbf16>, vector<16x100xbf16>, vector<16x100xbf16>, vector<16x100xbf16>, vector<16x100xbf16>, vector<16x100xbf16>, vector<16x100xbf16>, vector<16x100xbf16>, vector<16x100xbf16>, vector<16x100xbf16>, vector<16x100xbf16> -> vector<176x100xbf16>
    %35 = tpu.concatenate %33, %34 in 0 : vector<256x100xbf16>, vector<176x100xbf16> -> vector<432x100xbf16>
    %c0_11 = arith.constant 0 : index
    %c0_12 = arith.constant 0 : index
    %36 = vector.load %arg2[%c0_11, %c0_12] : memref<16x432xbf16, #tpu.memory_space<vmem>>, vector<16x432xbf16>
    %cst = arith.constant dense<0.000000e+00> : vector<16x100xf32>
    %37 = tpu.matmul %36, %35, %cst {dimension_numbers = #tpu.dot_dimension_numbers<[1], [0], [0], [1], [0, 0, 1, 1], [], []>} : vector<16x432xbf16>, vector<432x100xbf16>, vector<16x100xf32> -> vector<16x100xf32>
    %c0_13 = arith.constant 0 : index
    %c0_14 = arith.constant 0 : index
    %38 = vector.load %arg3[%c0_13, %c0_14] : memref<16x1xf32, #tpu.memory_space<vmem>>, vector<16x1xf32>
    %39 = vector.broadcast %38 : vector<16x1xf32> to vector<16x100xf32>
    %40 = arith.addf %37, %39 : vector<16x100xf32>
    %cst_15 = arith.constant 0.000000e+00 : f32
    %41 = vector.broadcast %cst_15 : f32 to vector<16x100xf32>
    %42 = arith.maximumf %40, %41 : vector<16x100xf32>
    %c0_16 = arith.constant 0 : index
    %c0_17 = arith.constant 0 : index
    %c0_18 = arith.constant 0 : index
    %43 = vector.load %arg4[%c0_16, %c0_17, %c0_18] : memref<1x1x100xf32, #tpu.memory_space<vmem>>, vector<1x1x100xf32>
    %44 = vector.shape_cast %43 : vector<1x1x100xf32> to vector<1x100xf32>
    %cst_19 = arith.constant 5.000000e-01 : f32
    %45 = vector.broadcast %cst_19 : f32 to vector<1x100xf32>
    %46 = arith.cmpf ogt, %44, %45 : vector<1x100xf32>
    %cst_20 = arith.constant 0.000000e+00 : f32
    %47 = vector.shape_cast %46 : vector<1x100xi1> to vector<1x100xi1>
    %48 = vector.broadcast %47 : vector<1x100xi1> to vector<16x100xi1>
    %49 = vector.broadcast %cst_20 : f32 to vector<16x100xf32>
    %50 = arith.select %48, %42, %49 : vector<16x100xi1>, vector<16x100xf32>
    %cst_21 = arith.constant 0.000000e+00 : f32
    %51 = vector.broadcast %cst_21 : f32 to vector<16x11xf32>
    %52 = tpu.concatenate %51, %50, %51 in 1 : vector<16x11xf32>, vector<16x100xf32>, vector<16x11xf32> -> vector<16x122xf32>
    %53 = arith.truncf %52 : vector<16x122xf32> to vector<16x122xbf16>
    %c0_22 = arith.constant 0 : index
    %c0_23 = arith.constant 0 : index
    %c0_24 = arith.constant 0 : index
    %c0_25 = arith.constant 0 : index
    %54 = vector.load %arg8[%c0_22, %c0_23, %c0_24, %c0_25] : memref<1x1x16x122xbf16, #tpu.memory_space<vmem>>, vector<1x1x16x122xbf16>
    %55 = vector.shape_cast %54 : vector<1x1x16x122xbf16> to vector<16x122xbf16>
    %56 = vector.shape_cast %53 : vector<16x122xbf16> to vector<1x1x16x122xbf16>
    tpu.vector_store %arg8[%c0_22, %c0_23, %c0_24, %c0_25], %56 {strides = array<i32>} : memref<1x1x16x122xbf16, #tpu.memory_space<vmem>>, vector<1x1x16x122xbf16>,
    return
  }
  func.func @transform_0(%arg0: i32, %arg1: i32) -> (i32, i32) {
    %c0_i32 = arith.constant 0 : i32
    %c0_i32_0 = arith.constant 0 : i32
    %c0_i32_1 = arith.constant 0 : i32
    return %c0_i32, %c0_i32_0 : i32, i32
  }
  func.func @transform_1(%arg0: i32, %arg1: i32) -> (i32, i32) {
    %c0_i32 = arith.constant 0 : i32
    %c0_i32_0 = arith.constant 0 : i32
    %c0_i32_1 = arith.constant 0 : i32
    return %c0_i32, %c0_i32_0 : i32, i32
  }
  func.func @transform_2(%arg0: i32, %arg1: i32) -> (i32, i32, i32) {
    %c0_i32 = arith.constant 0 : i32
    %c0_i32_0 = arith.constant 0 : i32
    %c0_i32_1 = arith.constant 0 : i32
    return %arg1, %c0_i32, %c0_i32_0 : i32, i32, i32
  }
  func.func @transform_3(%arg0: i32, %arg1: i32) -> (i32, i32, i32, i32) {
    %c-1_i32 = arith.constant -1 : i32
    %0 = arith.addi %arg1, %c-1_i32 : i32
    %c0_i32 = arith.constant 0 : i32
    %c5_i32 = arith.constant 5 : i32
    %1 = arith.maxsi %c0_i32, %0 : i32
    %2 = arith.minsi %c5_i32, %1 : i32
    %c0_i32_0 = arith.constant 0 : i32
    %c0_i32_1 = arith.constant 0 : i32
    %c0_i32_2 = arith.constant 0 : i32
    return %arg0, %2, %c0_i32_0, %c0_i32_1 : i32, i32, i32, i32
  }
  func.func @transform_4(%arg0: i32, %arg1: i32) -> (i32, i32, i32, i32) {
    %c0_i32 = arith.constant 0 : i32
    %0 = arith.addi %arg1, %c0_i32 : i32
    %c0_i32_0 = arith.constant 0 : i32
    %c5_i32 = arith.constant 5 : i32
    %1 = arith.maxsi %c0_i32_0, %0 : i32
    %2 = arith.minsi %c5_i32, %1 : i32
    %c0_i32_1 = arith.constant 0 : i32
    %c0_i32_2 = arith.constant 0 : i32
    %c0_i32_3 = arith.constant 0 : i32
    return %arg0, %2, %c0_i32_1, %c0_i32_2 : i32, i32, i32, i32
  }
  func.func @transform_5(%arg0: i32, %arg1: i32) -> (i32, i32, i32, i32) {
    %c1_i32 = arith.constant 1 : i32
    %0 = arith.addi %arg1, %c1_i32 : i32
    %c0_i32 = arith.constant 0 : i32
    %c5_i32 = arith.constant 5 : i32
    %1 = arith.maxsi %c0_i32, %0 : i32
    %2 = arith.minsi %c5_i32, %1 : i32
    %c0_i32_0 = arith.constant 0 : i32
    %c0_i32_1 = arith.constant 0 : i32
    %c0_i32_2 = arith.constant 0 : i32
    return %arg0, %2, %c0_i32_0, %c0_i32_1 : i32, i32, i32, i32
  }
  func.func @transform_6(%arg0: i32, %arg1: i32) -> (i32, i32, i32, i32) {
    %c0_i32 = arith.constant 0 : i32
    %c0_i32_0 = arith.constant 0 : i32
    %c0_i32_1 = arith.constant 0 : i32
    return %arg0, %arg1, %c0_i32, %c0_i32_0 : i32, i32, i32, i32
  }
}

module attributes {stable_mosaic.version = 11 : i64} {
  func.func @kernel(%arg0: i32, %arg1: i32, %arg2: memref<8x432xbf16, #tpu.memory_space<vmem>>, %arg3: memref<8x1xf32, #tpu.memory_space<vmem>>, %arg4: memref<1x1x100xf32, #tpu.memory_space<vmem>>, %arg5: memref<1x1x16x122xbf16, #tpu.memory_space<vmem>>, %arg6: memref<1x1x16x122xbf16, #tpu.memory_space<vmem>>, %arg7: memref<1x1x16x122xbf16, #tpu.memory_space<vmem>>, %arg8: memref<1x1x8x122xbf16, #tpu.memory_space<vmem>>, %arg9: memref<1x1x8x122xf32, #tpu.memory_space<vmem>>) attributes {dimension_semantics = [#tpu.dimension_semantics<parallel>, #tpu.dimension_semantics<parallel>], iteration_bounds = array<i64: 2, 6>, scalar_prefetch = 0 : i64, scratch_operands = 0 : i64, tpu.core_type = #tpu.core_type<tc>, window_params = [{pipeline_mode = #tpu.pipeline_mode<synchronous>, transform_indices = @transform_0, window_bounds = array<i64: 8, 432>}, {pipeline_mode = #tpu.pipeline_mode<synchronous>, transform_indices = @transform_1, window_bounds = array<i64: 8, 1>}, {transform_indices = @transform_2, window_bounds = array<i64: 1, 1, 100>}, {transform_indices = @transform_3, window_bounds = array<i64: 1, 1, 16, 122>}, {transform_indices = @transform_4, window_bounds = array<i64: 1, 1, 16, 122>}, {transform_indices = @transform_5, window_bounds = array<i64: 1, 1, 16, 122>}, {transform_indices = @transform_6, window_bounds = array<i64: 1, 1, 8, 122>}, {transform_indices = @transform_7, window_bounds = array<i64: 1, 1, 8, 122>}]} {
    %c0 = arith.constant 0 : index
    %c0_0 = arith.constant 0 : index
    %c0_1 = arith.constant 0 : index
    %c0_2 = arith.constant 0 : index
    %0 = vector.load %arg5[%c0, %c0_0, %c0_1, %c0_2] : memref<1x1x16x122xbf16, #tpu.memory_space<vmem>>, vector<1x1x16x122xbf16>
    %1 = vector.shape_cast %0 : vector<1x1x16x122xbf16> to vector<16x122xbf16>
    %2 = vector.extract_strided_slice %1 {offsets = [0, 0], sizes = [16, 100], strides = [1, 1]} : vector<16x122xbf16> to vector<16x100xbf16>
    %3 = vector.extract_strided_slice %1 {offsets = [0, 1], sizes = [16, 100], strides = [1, 1]} : vector<16x122xbf16> to vector<16x100xbf16>
    %4 = vector.extract_strided_slice %1 {offsets = [0, 2], sizes = [16, 100], strides = [1, 1]} : vector<16x122xbf16> to vector<16x100xbf16>
    %5 = vector.extract_strided_slice %1 {offsets = [0, 10], sizes = [16, 100], strides = [1, 1]} : vector<16x122xbf16> to vector<16x100xbf16>
    %6 = vector.extract_strided_slice %1 {offsets = [0, 11], sizes = [16, 100], strides = [1, 1]} : vector<16x122xbf16> to vector<16x100xbf16>
    %7 = vector.extract_strided_slice %1 {offsets = [0, 12], sizes = [16, 100], strides = [1, 1]} : vector<16x122xbf16> to vector<16x100xbf16>
    %8 = vector.extract_strided_slice %1 {offsets = [0, 20], sizes = [16, 100], strides = [1, 1]} : vector<16x122xbf16> to vector<16x100xbf16>
    %9 = vector.extract_strided_slice %1 {offsets = [0, 21], sizes = [16, 100], strides = [1, 1]} : vector<16x122xbf16> to vector<16x100xbf16>
    %10 = vector.extract_strided_slice %1 {offsets = [0, 22], sizes = [16, 100], strides = [1, 1]} : vector<16x122xbf16> to vector<16x100xbf16>
    %c0_3 = arith.constant 0 : index
    %c0_4 = arith.constant 0 : index
    %c0_5 = arith.constant 0 : index
    %c0_6 = arith.constant 0 : index
    %11 = vector.load %arg6[%c0_3, %c0_4, %c0_5, %c0_6] : memref<1x1x16x122xbf16, #tpu.memory_space<vmem>>, vector<1x1x16x122xbf16>
    %12 = vector.shape_cast %11 : vector<1x1x16x122xbf16> to vector<16x122xbf16>
    %13 = vector.extract_strided_slice %12 {offsets = [0, 0], sizes = [16, 100], strides = [1, 1]} : vector<16x122xbf16> to vector<16x100xbf16>
    %14 = vector.extract_strided_slice %12 {offsets = [0, 1], sizes = [16, 100], strides = [1, 1]} : vector<16x122xbf16> to vector<16x100xbf16>
    %15 = vector.extract_strided_slice %12 {offsets = [0, 2], sizes = [16, 100], strides = [1, 1]} : vector<16x122xbf16> to vector<16x100xbf16>
    %16 = vector.extract_strided_slice %12 {offsets = [0, 10], sizes = [16, 100], strides = [1, 1]} : vector<16x122xbf16> to vector<16x100xbf16>
    %17 = vector.extract_strided_slice %12 {offsets = [0, 11], sizes = [16, 100], strides = [1, 1]} : vector<16x122xbf16> to vector<16x100xbf16>
    %18 = vector.extract_strided_slice %12 {offsets = [0, 12], sizes = [16, 100], strides = [1, 1]} : vector<16x122xbf16> to vector<16x100xbf16>
    %19 = vector.extract_strided_slice %12 {offsets = [0, 20], sizes = [16, 100], strides = [1, 1]} : vector<16x122xbf16> to vector<16x100xbf16>
    %20 = vector.extract_strided_slice %12 {offsets = [0, 21], sizes = [16, 100], strides = [1, 1]} : vector<16x122xbf16> to vector<16x100xbf16>
    %21 = vector.extract_strided_slice %12 {offsets = [0, 22], sizes = [16, 100], strides = [1, 1]} : vector<16x122xbf16> to vector<16x100xbf16>
    %c0_7 = arith.constant 0 : index
    %c0_8 = arith.constant 0 : index
    %c0_9 = arith.constant 0 : index
    %c0_10 = arith.constant 0 : index
    %22 = vector.load %arg7[%c0_7, %c0_8, %c0_9, %c0_10] : memref<1x1x16x122xbf16, #tpu.memory_space<vmem>>, vector<1x1x16x122xbf16>
    %23 = vector.shape_cast %22 : vector<1x1x16x122xbf16> to vector<16x122xbf16>
    %24 = vector.extract_strided_slice %23 {offsets = [0, 0], sizes = [16, 100], strides = [1, 1]} : vector<16x122xbf16> to vector<16x100xbf16>
    %25 = vector.extract_strided_slice %23 {offsets = [0, 1], sizes = [16, 100], strides = [1, 1]} : vector<16x122xbf16> to vector<16x100xbf16>
    %26 = vector.extract_strided_slice %23 {offsets = [0, 2], sizes = [16, 100], strides = [1, 1]} : vector<16x122xbf16> to vector<16x100xbf16>
    %27 = vector.extract_strided_slice %23 {offsets = [0, 10], sizes = [16, 100], strides = [1, 1]} : vector<16x122xbf16> to vector<16x100xbf16>
    %28 = vector.extract_strided_slice %23 {offsets = [0, 11], sizes = [16, 100], strides = [1, 1]} : vector<16x122xbf16> to vector<16x100xbf16>
    %29 = vector.extract_strided_slice %23 {offsets = [0, 12], sizes = [16, 100], strides = [1, 1]} : vector<16x122xbf16> to vector<16x100xbf16>
    %30 = vector.extract_strided_slice %23 {offsets = [0, 20], sizes = [16, 100], strides = [1, 1]} : vector<16x122xbf16> to vector<16x100xbf16>
    %31 = vector.extract_strided_slice %23 {offsets = [0, 21], sizes = [16, 100], strides = [1, 1]} : vector<16x122xbf16> to vector<16x100xbf16>
    %32 = vector.extract_strided_slice %23 {offsets = [0, 22], sizes = [16, 100], strides = [1, 1]} : vector<16x122xbf16> to vector<16x100xbf16>
    %33 = tpu.concatenate %2, %3, %4, %5, %6, %7, %8, %9, %10, %13, %14, %15, %16, %17, %18, %19 in 0 : vector<16x100xbf16>, vector<16x100xbf16>, vector<16x100xbf16>, vector<16x100xbf16>, vector<16x100xbf16>, vector<16x100xbf16>, vector<16x100xbf16>, vector<16x100xbf16>, vector<16x100xbf16>, vector<16x100xbf16>, vector<16x100xbf16>, vector<16x100xbf16>, vector<16x100xbf16>, vector<16x100xbf16>, vector<16x100xbf16>, vector<16x100xbf16> -> vector<256x100xbf16>
    %34 = tpu.concatenate %20, %21, %24, %25, %26, %27, %28, %29, %30, %31, %32 in 0 : vector<16x100xbf16>, vector<16x100xbf16>, vector<16x100xbf16>, vector<16x100xbf16>, vector<16x100xbf16>, vector<16x100xbf16>, vector<16x100xbf16>, vector<16x100xbf16>, vector<16x100xbf16>, vector<16x100xbf16>, vector<16x100xbf16> -> vector<176x100xbf16>
    %35 = tpu.concatenate %33, %34 in 0 : vector<256x100xbf16>, vector<176x100xbf16> -> vector<432x100xbf16>
    %c0_11 = arith.constant 0 : index
    %c0_12 = arith.constant 0 : index
    %36 = vector.load %arg2[%c0_11, %c0_12] : memref<8x432xbf16, #tpu.memory_space<vmem>>, vector<8x432xbf16>
    %cst = arith.constant dense<0.000000e+00> : vector<8x100xf32>
    %37 = tpu.matmul %36, %35, %cst {dimension_numbers = #tpu.dot_dimension_numbers<[1], [0], [0], [1], [0, 0, 1, 1], [], []>} : vector<8x432xbf16>, vector<432x100xbf16>, vector<8x100xf32> -> vector<8x100xf32>
    %c0_13 = arith.constant 0 : index
    %c0_14 = arith.constant 0 : index
    %38 = vector.load %arg3[%c0_13, %c0_14] : memref<8x1xf32, #tpu.memory_space<vmem>>, vector<8x1xf32>
    %39 = vector.broadcast %38 : vector<8x1xf32> to vector<8x100xf32>
    %40 = arith.addf %37, %39 : vector<8x100xf32>
    %cst_15 = arith.constant 0.000000e+00 : f32
    %41 = vector.broadcast %cst_15 : f32 to vector<8x100xf32>
    %42 = arith.maximumf %40, %41 : vector<8x100xf32>
    %c0_16 = arith.constant 0 : index
    %c0_17 = arith.constant 0 : index
    %c0_18 = arith.constant 0 : index
    %43 = vector.load %arg4[%c0_16, %c0_17, %c0_18] : memref<1x1x100xf32, #tpu.memory_space<vmem>>, vector<1x1x100xf32>
    %44 = vector.shape_cast %43 : vector<1x1x100xf32> to vector<1x100xf32>
    %cst_19 = arith.constant 5.000000e-01 : f32
    %45 = vector.broadcast %cst_19 : f32 to vector<1x100xf32>
    %46 = arith.cmpf ogt, %44, %45 : vector<1x100xf32>
    %cst_20 = arith.constant 0.000000e+00 : f32
    %47 = vector.shape_cast %46 : vector<1x100xi1> to vector<1x100xi1>
    %48 = vector.broadcast %47 : vector<1x100xi1> to vector<8x100xi1>
    %49 = vector.broadcast %cst_20 : f32 to vector<8x100xf32>
    %50 = arith.select %48, %42, %49 : vector<8x100xi1>, vector<8x100xf32>
    %c0_21 = arith.constant 0 : index
    %c0_22 = arith.constant 0 : index
    %c0_23 = arith.constant 0 : index
    %c0_24 = arith.constant 0 : index
    %51 = vector.load %arg8[%c0_21, %c0_22, %c0_23, %c0_24] : memref<1x1x8x122xbf16, #tpu.memory_space<vmem>>, vector<1x1x8x122xbf16>
    %52 = vector.shape_cast %51 : vector<1x1x8x122xbf16> to vector<8x122xbf16>
    %53 = vector.extract_strided_slice %52 {offsets = [0, 11], sizes = [8, 100], strides = [1, 1]} : vector<8x122xbf16> to vector<8x100xbf16>
    %54 = arith.extf %53 : vector<8x100xbf16> to vector<8x100xf32>
    %55 = arith.addf %50, %54 : vector<8x100xf32>
    %cst_25 = arith.constant 0.000000e+00 : f32
    %56 = vector.broadcast %cst_25 : f32 to vector<8x11xf32>
    %57 = tpu.concatenate %56, %55, %56 in 1 : vector<8x11xf32>, vector<8x100xf32>, vector<8x11xf32> -> vector<8x122xf32>
    %c0_26 = arith.constant 0 : index
    %c0_27 = arith.constant 0 : index
    %c0_28 = arith.constant 0 : index
    %c0_29 = arith.constant 0 : index
    %58 = vector.load %arg9[%c0_26, %c0_27, %c0_28, %c0_29] : memref<1x1x8x122xf32, #tpu.memory_space<vmem>>, vector<1x1x8x122xf32>
    %59 = vector.shape_cast %58 : vector<1x1x8x122xf32> to vector<8x122xf32>
    %60 = vector.shape_cast %57 : vector<8x122xf32> to vector<1x1x8x122xf32>
    tpu.vector_store %arg9[%c0_26, %c0_27, %c0_28, %c0_29], %60 {strides = array<i32>} : memref<1x1x8x122xf32, #tpu.memory_space<vmem>>, vector<1x1x8x122xf32>,
    return
  }
  func.func @transform_0(%arg0: i32, %arg1: i32) -> (i32, i32) {
    %c0_i32 = arith.constant 0 : i32
    %c0_i32_0 = arith.constant 0 : i32
    %c0_i32_1 = arith.constant 0 : i32
    return %c0_i32, %c0_i32_0 : i32, i32
  }
  func.func @transform_1(%arg0: i32, %arg1: i32) -> (i32, i32) {
    %c0_i32 = arith.constant 0 : i32
    %c0_i32_0 = arith.constant 0 : i32
    %c0_i32_1 = arith.constant 0 : i32
    return %c0_i32, %c0_i32_0 : i32, i32
  }
  func.func @transform_2(%arg0: i32, %arg1: i32) -> (i32, i32, i32) {
    %c0_i32 = arith.constant 0 : i32
    %c0_i32_0 = arith.constant 0 : i32
    %c0_i32_1 = arith.constant 0 : i32
    return %arg1, %c0_i32, %c0_i32_0 : i32, i32, i32
  }
  func.func @transform_3(%arg0: i32, %arg1: i32) -> (i32, i32, i32, i32) {
    %c-1_i32 = arith.constant -1 : i32
    %0 = arith.addi %arg1, %c-1_i32 : i32
    %c0_i32 = arith.constant 0 : i32
    %c5_i32 = arith.constant 5 : i32
    %1 = arith.maxsi %c0_i32, %0 : i32
    %2 = arith.minsi %c5_i32, %1 : i32
    %c0_i32_0 = arith.constant 0 : i32
    %c0_i32_1 = arith.constant 0 : i32
    %c0_i32_2 = arith.constant 0 : i32
    return %arg0, %2, %c0_i32_0, %c0_i32_1 : i32, i32, i32, i32
  }
  func.func @transform_4(%arg0: i32, %arg1: i32) -> (i32, i32, i32, i32) {
    %c0_i32 = arith.constant 0 : i32
    %0 = arith.addi %arg1, %c0_i32 : i32
    %c0_i32_0 = arith.constant 0 : i32
    %c5_i32 = arith.constant 5 : i32
    %1 = arith.maxsi %c0_i32_0, %0 : i32
    %2 = arith.minsi %c5_i32, %1 : i32
    %c0_i32_1 = arith.constant 0 : i32
    %c0_i32_2 = arith.constant 0 : i32
    %c0_i32_3 = arith.constant 0 : i32
    return %arg0, %2, %c0_i32_1, %c0_i32_2 : i32, i32, i32, i32
  }
  func.func @transform_5(%arg0: i32, %arg1: i32) -> (i32, i32, i32, i32) {
    %c1_i32 = arith.constant 1 : i32
    %0 = arith.addi %arg1, %c1_i32 : i32
    %c0_i32 = arith.constant 0 : i32
    %c5_i32 = arith.constant 5 : i32
    %1 = arith.maxsi %c0_i32, %0 : i32
    %2 = arith.minsi %c5_i32, %1 : i32
    %c0_i32_0 = arith.constant 0 : i32
    %c0_i32_1 = arith.constant 0 : i32
    %c0_i32_2 = arith.constant 0 : i32
    return %arg0, %2, %c0_i32_0, %c0_i32_1 : i32, i32, i32, i32
  }
  func.func @transform_6(%arg0: i32, %arg1: i32) -> (i32, i32, i32, i32) {
    %c0_i32 = arith.constant 0 : i32
    %c0_i32_0 = arith.constant 0 : i32
    %c0_i32_1 = arith.constant 0 : i32
    return %arg0, %arg1, %c0_i32, %c0_i32_0 : i32, i32, i32, i32
  }
  func.func @transform_7(%arg0: i32, %arg1: i32) -> (i32, i32, i32, i32) {
    %c0_i32 = arith.constant 0 : i32
    %c0_i32_0 = arith.constant 0 : i32
    %c0_i32_1 = arith.constant 0 : i32
    return %arg0, %arg1, %c0_i32, %c0_i32_0 : i32, i32, i32, i32
  }
}

</mosaic_0001>

<llo_original>
// kernel: sub.16
$region0: #{sub.16}
  #allocation0 [shape = 's32[1]{0}', space=sflag, size = 0x4, scoped, tag = 'scoped memory for sub.16']
  %s0 = inlined_call_operand.vmem [shape: f32[24,1], index: 0, kind: input, shape index: {}]
  %s1 = inlined_call_operand.vmem [shape: f32[24,1], index: 1, kind: input, shape index: {}]
  %s2 = inlined_call_operand.vmem [shape: f32[24,1], index: 2, kind: output, shape index: {}]
  %v3 = vld [vmem:[%s0] sm:$0x1]
  %v4 = vld [vmem:[%s1] sm:$0x1]
  %5 = xla_tuple %v3, %v4
  %6 = xla_tuple %5
  %v7 = vsub.f32 %v3, %v4
  %8 = xla_tuple %v7
  %9 = vst [vmem:[%s2] sm:$0x1] %v7

// kernel: inception_v4_forward.5
$region0: #{inception_v4_forward.5}
  #allocation0 [shape = 'u32[]', space=smem, size = 0x4, offset = 0x4, fixed_abs, tag = 'smem constant byte address 0x4 - core index']
  #allocation1 [shape = 'u32[144,128]{1,0:T(1,128)}', space=vmem, size = 0x12000, scoped, tag = 'internal scratch']
  %s0 = inlined_call_operand.vmem [shape: bf16[8,432], index: 0, kind: input, shape index: {}]
  %s1 = inlined_call_operand.vmem [shape: f32[8,1], index: 1, kind: input, shape index: {}]
  %s2 = inlined_call_operand.vmem [shape: f32[6,1,100], index: 2, kind: input, shape index: {}]
  %s3 = inlined_call_operand.vmem [shape: bf16[2,6,16,122], index: 3, kind: input, shape index: {}, may-alias: {3,4,5}]
  %s4 = inlined_call_operand.vmem [shape: bf16[2,6,16,122], index: 4, kind: input, shape index: {}, may-alias: {3,4,5}]
  %s5 = inlined_call_operand.vmem [shape: bf16[2,6,16,122], index: 5, kind: input, shape index: {}, may-alias: {3,4,5}]
  %s6 = inlined_call_operand.vmem [shape: bf16[2,6,8,122], index: 6, kind: input, shape index: {}]
  %s7 = inlined_call_operand.vmem [shape: f32[2,6,8,122], index: 7, kind: output, shape index: {}]
  %s8 = sld [smem:[#allocation0]]
  $region61: #{inception_v4_forward.5} parent=0
    _
  %s10 = ssub.s32 1, %s8
  %s11 = scalar_select 0, %s10, %s8
  loop: start=0, step=1, limit=14
  $region2: #{inception_v4_forward.5} parent=0 // loop_pre_header
    _
  $region3: #{inception_v4_forward.5} parent=0 // loop_header
    %s13 = sphi 0, %s17
    %p14 = scmp.ge.s32.totalorder %s13, 14
    %s20 = sphi 0, %s32
    %s21 = sphi 0, %s28
    %s22 = sphi 0, %s20
    %s23 = sphi 0, %s21
    %s24 = sphi 0, %s22
    %s25 = sphi 0, %s23
    %s33 = sphi 0, %s33
    %s35 = sphi 0, %s33
    %s36 = sphi 0, %s35
    %s50 = sphi 0, %s36
    %s54 = sphi 0, %s54
    %s56 = sphi 0, %s54
    %s57 = sphi 0, %s56
    %s71 = sphi 0, %s57
    %s77 = sphi 0, %s79
    %s80 = sphi 0, %s77
    %s81 = sphi 0, %s80
    %s97 = sphi 0, %s81
    %s115 = sphi 0, %s117
    %s118 = sphi 0, %s115
    %s119 = sphi 0, %s118
    %s135 = sphi 0, %s119
    %s151 = sphi 0, %s153
    %s154 = sphi 0, %s151
    %s155 = sphi 0, %s154
    %s171 = sphi 0, %s155
    %s189 = sphi 0, %s191
    %s192 = sphi 0, %s189
    %s193 = sphi 0, %s192
    %s209 = sphi 0, %s193
    %s217 = sphi 0, %s219
    %s220 = sphi 0, %s217
    %s221 = sphi 0, %s220
    %s237 = sphi 0, %s221
    %s245 = sphi 0, %s247
    %s248 = sphi 0, %s245
    %s249 = sphi 0, %s248
    %s265 = sphi 0, %s249
  $region4: #{inception_v4_forward.5} parent=0 // loop_header_branch
    %16 = sbr.rel (%p14) target = $region8
  $region5: #{inception_v4_forward.5} parent=0 // loop_body
    %s18 = ssub.s32 %s13, 1
    %s19 = ssub.s32 %s13, 2
    %s26 = sadd.s32 1, %s21
    %p27 = scmp.ge.s32.totalorder %s26, 6
    %s28 = scalar_select %p27, 0, %s26
    %s29 = sadd.s32 1, %s20
    %s30 = scalar_select %p27, %s29, %s20
    %p31 = scmp.ge.s32.totalorder %s30, 2
    %s32 = scalar_select %p31, 0, %s30
    %s34 = sadd.s32 %s33, 1
    %p37 = scmp.eq.s32.totalorder %s13, 11
    %p38 = scmp.ne.s32.totalorder %s33, %s35
    %p39 = scmp.eq.s32.totalorder %s13, 0
    %p40 = por %p38, %p39
    %p41 = scmp.ne.s32.totalorder %s33, %s35
    %p42 = scmp.eq.s32.totalorder %s18, 11
    %p43 = por %p41, %p42
    %p44 = scmp.ne.s32.totalorder %s35, %s36
    %p45 = scmp.eq.s32.totalorder %s18, 0
    %p46 = por %p44, %p45
    %p47 = scmp.ne.s32.totalorder %s35, %s36
    %p48 = scmp.eq.s32.totalorder %s19, 11
    %p49 = por %p47, %p48
    %p51 = scmp.ne.s32.totalorder %s36, %s50
    %p52 = scmp.eq.s32.totalorder %s19, 0
    %p53 = por %p51, %p52
    %s55 = sadd.s32 %s54, 1
    %p58 = scmp.eq.s32.totalorder %s13, 11
    %p59 = scmp.ne.s32.totalorder %s54, %s56
    %p60 = scmp.eq.s32.totalorder %s13, 0
    %p61 = por %p59, %p60
    %p62 = scmp.ne.s32.totalorder %s54, %s56
    %p63 = scmp.eq.s32.totalorder %s18, 11
    %p64 = por %p62, %p63
    %p65 = scmp.ne.s32.totalorder %s56, %s57
    %p66 = scmp.eq.s32.totalorder %s18, 0
    %p67 = por %p65, %p66
    %p68 = scmp.ne.s32.totalorder %s56, %s57
    %p69 = scmp.eq.s32.totalorder %s19, 11
    %p70 = por %p68, %p69
    %p72 = scmp.ne.s32.totalorder %s57, %s71
    %p73 = scmp.eq.s32.totalorder %s19, 0
    %p74 = por %p72, %p73
    %s75 = ssub.s32 %s21, %s28
    %p76 = scmp.eq.s32.totalorder %s75, 0
    %s78 = sadd.s32 %s77, 1
    %s79 = scalar_select %p76, %s77, %s78
    %p82 = pneg %p76
    %p83 = scmp.eq.s32.totalorder %s13, 11
    %p84 = por %p82, %p83
    %p85 = scmp.ne.s32.totalorder %s77, %s80
    %p86 = scmp.eq.s32.totalorder %s13, 0
    %p87 = por %p85, %p86
    %p88 = scmp.ne.s32.totalorder %s77, %s80
    %p89 = scmp.eq.s32.totalorder %s18, 11
    %p90 = por %p88, %p89
    %p91 = scmp.ne.s32.totalorder %s80, %s81
    %p92 = scmp.eq.s32.totalorder %s18, 0
    %p93 = por %p91, %p92
    %p94 = scmp.ne.s32.totalorder %s80, %s81
    %p95 = scmp.eq.s32.totalorder %s19, 11
    %p96 = por %p94, %p95
    %p98 = scmp.ne.s32.totalorder %s81, %s97
    %p99 = scmp.eq.s32.totalorder %s19, 0
    %p100 = por %p98, %p99
    %s101 = sadd.s32 %s21, 4294967295
    %p102 = scmp.gt.s32.totalorder %s101, 0
    %s103 = scalar_select %p102, %s101, 0
    %p104 = scmp.lt.s32.totalorder %s103, 5
    %s105 = scalar_select %p104, %s103, 5
    %s106 = sadd.s32 %s28, 4294967295
    %p107 = scmp.gt.s32.totalorder %s106, 0
    %s108 = scalar_select %p107, %s106, 0
    %p109 = scmp.lt.s32.totalorder %s108, 5
    %s110 = scalar_select %p109, %s108, 5
    %s111 = ssub.s32 %s20, %s32
    %s112 = ssub.s32 %s105, %s110
    %s113 = sor.u32 %s111, %s112
    %p114 = scmp.eq.s32.totalorder %s113, 0
    %s116 = sadd.s32 %s115, 1
    %s117 = scalar_select %p114, %s115, %s116
    %p120 = pneg %p114
    %p121 = scmp.eq.s32.totalorder %s13, 11
    %p122 = por %p120, %p121
    %p123 = scmp.ne.s32.totalorder %s115, %s118
    %p124 = scmp.eq.s32.totalorder %s13, 0
    %p125 = por %p123, %p124
    %p126 = scmp.ne.s32.totalorder %s115, %s118
    %p127 = scmp.eq.s32.totalorder %s18, 11
    %p128 = por %p126, %p127
    %p129 = scmp.ne.s32.totalorder %s118, %s119
    %p130 = scmp.eq.s32.totalorder %s18, 0
    %p131 = por %p129, %p130
    %p132 = scmp.ne.s32.totalorder %s118, %s119
    %p133 = scmp.eq.s32.totalorder %s19, 11
    %p134 = por %p132, %p133
    %p136 = scmp.ne.s32.totalorder %s119, %s135
    %p137 = scmp.eq.s32.totalorder %s19, 0
    %p138 = por %p136, %p137
    %p139 = scmp.gt.s32.totalorder %s21, 0
    %s140 = scalar_select %p139, %s21, 0
    %p141 = scmp.lt.s32.totalorder %s140, 5
    %s142 = scalar_select %p141, %s140, 5
    %p143 = scmp.gt.s32.totalorder %s28, 0
    %s144 = scalar_select %p143, %s28, 0
    %p145 = scmp.lt.s32.totalorder %s144, 5
    %s146 = scalar_select %p145, %s144, 5
    %s147 = ssub.s32 %s20, %s32
    %s148 = ssub.s32 %s142, %s146
    %s149 = sor.u32 %s147, %s148
    %p150 = scmp.eq.s32.totalorder %s149, 0
    %s152 = sadd.s32 %s151, 1
    %s153 = scalar_select %p150, %s151, %s152
    %p156 = pneg %p150
    %p157 = scmp.eq.s32.totalorder %s13, 11
    %p158 = por %p156, %p157
    %p159 = scmp.ne.s32.totalorder %s151, %s154
    %p160 = scmp.eq.s32.totalorder %s13, 0
    %p161 = por %p159, %p160
    %p162 = scmp.ne.s32.totalorder %s151, %s154
    %p163 = scmp.eq.s32.totalorder %s18, 11
    %p164 = por %p162, %p163
    %p165 = scmp.ne.s32.totalorder %s154, %s155
    %p166 = scmp.eq.s32.totalorder %s18, 0
    %p167 = por %p165, %p166
    %p168 = scmp.ne.s32.totalorder %s154, %s155
    %p169 = scmp.eq.s32.totalorder %s19, 11
    %p170 = por %p168, %p169
    %p172 = scmp.ne.s32.totalorder %s155, %s171
    %p173 = scmp.eq.s32.totalorder %s19, 0
    %p174 = por %p172, %p173
    %s175 = sadd.s32 %s21, 1
    %p176 = scmp.gt.s32.totalorder %s175, 0
    %s177 = scalar_select %p176, %s175, 0
    %p178 = scmp.lt.s32.totalorder %s177, 5
    %s179 = scalar_select %p178, %s177, 5
    %s180 = sadd.s32 %s28, 1
    %p181 = scmp.gt.s32.totalorder %s180, 0
    %s182 = scalar_select %p181, %s180, 0
    %p183 = scmp.lt.s32.totalorder %s182, 5
    %s184 = scalar_select %p183, %s182, 5
    %s185 = ssub.s32 %s20, %s32
    %s186 = ssub.s32 %s179, %s184
    %s187 = sor.u32 %s185, %s186
    %p188 = scmp.eq.s32.totalorder %s187, 0
    %s190 = sadd.s32 %s189, 1
    %s191 = scalar_select %p188, %s189, %s190
    %p194 = pneg %p188
    %p195 = scmp.eq.s32.totalorder %s13, 11
    %p196 = por %p194, %p195
    %p197 = scmp.ne.s32.totalorder %s189, %s192
    %p198 = scmp.eq.s32.totalorder %s13, 0
    %p199 = por %p197, %p198
    %p200 = scmp.ne.s32.totalorder %s189, %s192
    %p201 = scmp.eq.s32.totalorder %s18, 11
    %p202 = por %p200, %p201
    %p203 = scmp.ne.s32.totalorder %s192, %s193
    %p204 = scmp.eq.s32.totalorder %s18, 0
    %p205 = por %p203, %p204
    %p206 = scmp.ne.s32.totalorder %s192, %s193
    %p207 = scmp.eq.s32.totalorder %s19, 11
    %p208 = por %p206, %p207
    %p210 = scmp.ne.s32.totalorder %s193, %s209
    %p211 = scmp.eq.s32.totalorder %s19, 0
    %p212 = por %p210, %p211
    %s213 = ssub.s32 %s20, %s32
    %s214 = ssub.s32 %s21, %s28
    %s215 = sor.u32 %s213, %s214
    %p216 = scmp.eq.s32.totalorder %s215, 0
    %s218 = sadd.s32 %s217, 1
    %s219 = scalar_select %p216, %s217, %s218
    %p222 = pneg %p216
    %p223 = scmp.eq.s32.totalorder %s13, 11
    %p224 = por %p222, %p223
    %p225 = scmp.ne.s32.totalorder %s217, %s220
    %p226 = scmp.eq.s32.totalorder %s13, 0
    %p227 = por %p225, %p226
    %p228 = scmp.ne.s32.totalorder %s217, %s220
    %p229 = scmp.eq.s32.totalorder %s18, 11
    %p230 = por %p228, %p229
    %p231 = scmp.ne.s32.totalorder %s220, %s221
    %p232 = scmp.eq.s32.totalorder %s18, 0
    %p233 = por %p231, %p232
    %p234 = scmp.ne.s32.totalorder %s220, %s221
    %p235 = scmp.eq.s32.totalorder %s19, 11
    %p236 = por %p234, %p235
    %p238 = scmp.ne.s32.totalorder %s221, %s237
    %p239 = scmp.eq.s32.totalorder %s19, 0
    %p240 = por %p238, %p239
    %s241 = ssub.s32 %s20, %s32
    %s242 = ssub.s32 %s21, %s28
    %s243 = sor.u32 %s241, %s242
    %p244 = scmp.eq.s32.totalorder %s243, 0
    %s246 = sadd.s32 %s245, 1
    %s247 = scalar_select %p244, %s245, %s246
    %p250 = pneg %p244
    %p251 = scmp.eq.s32.totalorder %s13, 11
    %p252 = por %p250, %p251
    %p253 = scmp.ne.s32.totalorder %s245, %s248
    %p254 = scmp.eq.s32.totalorder %s13, 0
    %p255 = por %p253, %p254
    %p256 = scmp.ne.s32.totalorder %s245, %s248
    %p257 = scmp.eq.s32.totalorder %s18, 11
    %p258 = por %p256, %p257
    %p259 = scmp.ne.s32.totalorder %s248, %s249
    %p260 = scmp.eq.s32.totalorder %s18, 0
    %p261 = por %p259, %p260
    %p262 = scmp.ne.s32.totalorder %s248, %s249
    %p263 = scmp.eq.s32.totalorder %s19, 11
    %p264 = por %p262, %p263
    %p266 = scmp.ne.s32.totalorder %s249, %s265
    %p267 = scmp.eq.s32.totalorder %s19, 0
    %p268 = por %p266, %p267
    %p269 = scmp.le.s32.totalorder 1, %s13
    %p270 = scmp.lt.s32.totalorder %s13, 13
    %p271 = pnand %p269, %p270
    %p272 = pneg %p271
    // Predicated region
    $region9: #{inception_v4_forward.5} parent=5 // pred_check
      _
    $region10: #{inception_v4_forward.5} parent=5 // pred_check_branch
      %274 = sbr.rel (%p271) target = $region12
    $region11: #{inception_v4_forward.5} parent=5 // pred_region
      %s275 = ssub.s32 %s13, 1
      // Predicated region
      $region13: #{inception_v4_forward.5} parent=11 // pred_check
        %p276 = pneg %p46
      $region14: #{inception_v4_forward.5} parent=11 // pred_check_branch
        %278 = sbr.rel (%p276) target = $region16
      $region15: #{inception_v4_forward.5} parent=11 // pred_region
        _
      $region16: #{inception_v4_forward.5} parent=11 // pred_fallthru
        _
      // Predicated region
      $region17: #{inception_v4_forward.5} parent=11 // pred_check
        %p279 = pneg %p67
      $region18: #{inception_v4_forward.5} parent=11 // pred_check_branch
        %281 = sbr.rel (%p279) target = $region20
      $region19: #{inception_v4_forward.5} parent=11 // pred_region
        _
      $region20: #{inception_v4_forward.5} parent=11 // pred_fallthru
        _
    $region12: #{inception_v4_forward.5} parent=5 // pred_fallthru
      _
    %p282 = scmp.lt.s32.totalorder %s13, 12
    // Predicated region
    $region21: #{inception_v4_forward.5} parent=5 // pred_check
      %p283 = pneg %p282
    $region22: #{inception_v4_forward.5} parent=5 // pred_check_branch
      %285 = sbr.rel (%p283) target = $region24
    $region23: #{inception_v4_forward.5} parent=5 // pred_region
      // Predicated region
      $region25: #{inception_v4_forward.5} parent=23 // pred_check
        %p286 = pneg %p87
      $region26: #{inception_v4_forward.5} parent=23 // pred_check_branch
        %288 = sbr.rel (%p286) target = $region28
      $region27: #{inception_v4_forward.5} parent=23 // pred_region
        %p289 = scmp.lt.s32.totalorder %s21, 5
        %s290 = scalar_select %p289, %s21, 5
        %s291 = scalar_lea.vmem %s2, %s290
      $region28: #{inception_v4_forward.5} parent=23 // pred_fallthru
        _
      // Predicated region
      $region29: #{inception_v4_forward.5} parent=23 // pred_check
        %p292 = pneg %p125
      $region30: #{inception_v4_forward.5} parent=23 // pred_check_branch
        %294 = sbr.rel (%p292) target = $region32
      $region31: #{inception_v4_forward.5} parent=23 // pred_region
        %s295 = sadd.s32 %s21, 4294967295
        %p296 = scmp.gt.s32.totalorder %s295, 0
        %s297 = scalar_select %p296, %s295, 0
        %p298 = scmp.lt.s32.totalorder %s297, 5
        %s299 = scalar_select %p298, %s297, 5
        %p300 = scmp.lt.s32.totalorder %s20, 1
        %s301 = scalar_select %p300, %s20, 1
        %p302 = scmp.lt.s32.totalorder %s299, 5
        %s303 = scalar_select %p302, %s299, 5
        %s304 = smul.addr %s303, 2
        %s305 = smul.addr %s301, 12
        %s306 = sadd.s32 %s304, %s305
        %s307 = smul.addr %s306, 4
        %s308 = scalar_lea.vmem %s3, %s307
        %s309 = sadd.s32 %s21, 4294967295
        %p310 = scmp.gt.s32.totalorder %s309, 0
        %s311 = scalar_select %p310, %s309, 0
        %p312 = scmp.lt.s32.totalorder %s311, 5
        %s313 = scalar_select %p312, %s311, 5
      $region32: #{inception_v4_forward.5} parent=23 // pred_fallthru
        _
      // Predicated region
      $region33: #{inception_v4_forward.5} parent=23 // pred_check
        %p314 = pneg %p161
      $region34: #{inception_v4_forward.5} parent=23 // pred_check_branch
        %316 = sbr.rel (%p314) target = $region36
      $region35: #{inception_v4_forward.5} parent=23 // pred_region
        %p317 = scmp.gt.s32.totalorder %s21, 0
        %s318 = scalar_select %p317, %s21, 0
        %p319 = scmp.lt.s32.totalorder %s318, 5
        %s320 = scalar_select %p319, %s318, 5
        %p321 = scmp.lt.s32.totalorder %s20, 1
        %s322 = scalar_select %p321, %s20, 1
        %p323 = scmp.lt.s32.totalorder %s320, 5
        %s324 = scalar_select %p323, %s320, 5
        %s325 = smul.addr %s324, 2
        %s326 = smul.addr %s322, 12
        %s327 = sadd.s32 %s325, %s326
        %s328 = smul.addr %s327, 4
        %s329 = scalar_lea.vmem %s4, %s328
        %p330 = scmp.gt.s32.totalorder %s21, 0
        %s331 = scalar_select %p330, %s21, 0
        %p332 = scmp.lt.s32.totalorder %s331, 5
        %s333 = scalar_select %p332, %s331, 5
      $region36: #{inception_v4_forward.5} parent=23 // pred_fallthru
        _
      // Predicated region
      $region37: #{inception_v4_forward.5} parent=23 // pred_check
        %p334 = pneg %p199
      $region38: #{inception_v4_forward.5} parent=23 // pred_check_branch
        %336 = sbr.rel (%p334) target = $region40
      $region39: #{inception_v4_forward.5} parent=23 // pred_region
        %s337 = sadd.s32 %s21, 1
        %p338 = scmp.gt.s32.totalorder %s337, 0
        %s339 = scalar_select %p338, %s337, 0
        %p340 = scmp.lt.s32.totalorder %s339, 5
        %s341 = scalar_select %p340, %s339, 5
        %p342 = scmp.lt.s32.totalorder %s20, 1
        %s343 = scalar_select %p342, %s20, 1
        %p344 = scmp.lt.s32.totalorder %s341, 5
        %s345 = scalar_select %p344, %s341, 5
        %s346 = smul.addr %s345, 2
        %s347 = smul.addr %s343, 12
        %s348 = sadd.s32 %s346, %s347
        %s349 = smul.addr %s348, 4
        %s350 = scalar_lea.vmem %s5, %s349
        %s351 = sadd.s32 %s21, 1
        %p352 = scmp.gt.s32.totalorder %s351, 0
        %s353 = scalar_select %p352, %s351, 0
        %p354 = scmp.lt.s32.totalorder %s353, 5
        %s355 = scalar_select %p354, %s353, 5
      $region40: #{inception_v4_forward.5} parent=23 // pred_fallthru
        _
      // Predicated region
      $region41: #{inception_v4_forward.5} parent=23 // pred_check
        %p356 = pneg %p227
      $region42: #{inception_v4_forward.5} parent=23 // pred_check_branch
        %358 = sbr.rel (%p356) target = $region44
      $region43: #{inception_v4_forward.5} parent=23 // pred_region
        %p359 = scmp.lt.s32.totalorder %s20, 1
        %s360 = scalar_select %p359, %s20, 1
        %p361 = scmp.lt.s32.totalorder %s21, 5
        %s362 = scalar_select %p361, %s21, 5
        %s363 = smul.addr %s360, 6
        %s364 = sadd.s32 %s362, %s363
        %s365 = smul.addr %s364, 4
        %s366 = scalar_lea.vmem %s6, %s365
      $region44: #{inception_v4_forward.5} parent=23 // pred_fallthru
        _
    $region24: #{inception_v4_forward.5} parent=5 // pred_fallthru
      _
    %p367 = scmp.le.s32.totalorder 1, %s13
    %p368 = scmp.lt.s32.totalorder %s13, 13
    %p369 = pnand %p367, %p368
    %p370 = pneg %p369
    // Predicated region
    $region45: #{inception_v4_forward.5} parent=5 // pred_check
      _
    $region46: #{inception_v4_forward.5} parent=5 // pred_check_branch
      %372 = sbr.rel (%p369) target = $region48
    $region47: #{inception_v4_forward.5} parent=5 // pred_region
      %s373 = ssub.s32 %s13, 1
      %p374 = pneg %p46
      %p375 = pneg %p43
      %p376 = pneg %p67
      %p377 = pneg %p64
      %p378 = scmp.lt.s32.totalorder %s23, 5
      %s379 = scalar_select %p378, %s23, 5
      %s380 = scalar_lea.vmem %s2, %s379
      %p381 = pneg %p93
      %p382 = pneg %p90
      %s383 = sadd.s32 %s23, 4294967295
      %p384 = scmp.gt.s32.totalorder %s383, 0
      %s385 = scalar_select %p384, %s383, 0
      %p386 = scmp.lt.s32.totalorder %s385, 5
      %s387 = scalar_select %p386, %s385, 5
      %p388 = scmp.lt.s32.totalorder %s22, 1
      %s389 = scalar_select %p388, %s22, 1
      %p390 = scmp.lt.s32.totalorder %s387, 5
      %s391 = scalar_select %p390, %s387, 5
      %s392 = smul.addr %s391, 2
      %s393 = smul.addr %s389, 12
      %s394 = sadd.s32 %s392, %s393
      %s395 = smul.addr %s394, 4
      %s396 = scalar_lea.vmem %s3, %s395
      %p397 = pneg %p131
      %p398 = pneg %p128
      %p399 = scmp.gt.s32.totalorder %s23, 0
      %s400 = scalar_select %p399, %s23, 0
      %p401 = scmp.lt.s32.totalorder %s400, 5
      %s402 = scalar_select %p401, %s400, 5
      %p403 = scmp.lt.s32.totalorder %s22, 1
      %s404 = scalar_select %p403, %s22, 1
      %p405 = scmp.lt.s32.totalorder %s402, 5
      %s406 = scalar_select %p405, %s402, 5
      %s407 = smul.addr %s406, 2
      %s408 = smul.addr %s404, 12
      %s409 = sadd.s32 %s407, %s408
      %s410 = smul.addr %s409, 4
      %s411 = scalar_lea.vmem %s4, %s410
      %p412 = pneg %p167
      %p413 = pneg %p164
      %s414 = sadd.s32 %s23, 1
      %p415 = scmp.gt.s32.totalorder %s414, 0
      %s416 = scalar_select %p415, %s414, 0
      %p417 = scmp.lt.s32.totalorder %s416, 5
      %s418 = scalar_select %p417, %s416, 5
      %p419 = scmp.lt.s32.totalorder %s22, 1
      %s420 = scalar_select %p419, %s22, 1
      %p421 = scmp.lt.s32.totalorder %s418, 5
      %s422 = scalar_select %p421, %s418, 5
      %s423 = smul.addr %s422, 2
      %s424 = smul.addr %s420, 12
      %s425 = sadd.s32 %s423, %s424
      %s426 = smul.addr %s425, 4
      %s427 = scalar_lea.vmem %s5, %s426
      %p428 = pneg %p205
      %p429 = pneg %p202
      %p430 = scmp.lt.s32.totalorder %s22, 1
      %s431 = scalar_select %p430, %s22, 1
      %p432 = scmp.lt.s32.totalorder %s23, 5
      %s433 = scalar_select %p432, %s23, 5
      %s434 = smul.addr %s431, 6
      %s435 = sadd.s32 %s433, %s434
      %s436 = smul.addr %s435, 4
      %s437 = scalar_lea.vmem %s6, %s436
      %p438 = pneg %p233
      %p439 = pneg %p230
      %p440 = pneg %p261
      %p441 = pneg %p258
      %p442 = scmp.lt.s32.totalorder %s22, 1
      %s443 = scalar_select %p442, %s22, 1
      %p444 = scmp.lt.s32.totalorder %s23, 5
      %s445 = scalar_select %p444, %s23, 5
      %s446 = smul.addr %s443, 6
      %s447 = sadd.s32 %s445, %s446
      %s448 = smul.addr %s447, 8
      %s449 = scalar_lea.vmem %s7, %s448
      %p450 = scmp.lt.s32.totalorder %s23, 5
      %s451 = scalar_select %p450, %s23, 5
      %s452 = scalar_lea.vmem %s2, %s451
      %s453 = sadd.s32 %s23, 4294967295
      %p454 = scmp.gt.s32.totalorder %s453, 0
      %s455 = scalar_select %p454, %s453, 0
      %p456 = scmp.lt.s32.totalorder %s455, 5
      %s457 = scalar_select %p456, %s455, 5
      %p458 = scmp.lt.s32.totalorder %s22, 1
      %s459 = scalar_select %p458, %s22, 1
      %p460 = scmp.lt.s32.totalorder %s457, 5
      %s461 = scalar_select %p460, %s457, 5
      %s462 = smul.addr %s461, 2
      %s463 = smul.addr %s459, 12
      %s464 = sadd.s32 %s462, %s463
      %s465 = smul.addr %s464, 4
      %s466 = scalar_lea.vmem %s3, %s465
      %s467 = sadd.s32 %s23, 4294967295
      %p468 = scmp.gt.s32.totalorder %s467, 0
      %s469 = scalar_select %p468, %s467, 0
      %p470 = scmp.lt.s32.totalorder %s469, 5
      %s471 = scalar_select %p470, %s469, 5
      %p472 = scmp.gt.s32.totalorder %s23, 0
      %s473 = scalar_select %p472, %s23, 0
      %p474 = scmp.lt.s32.totalorder %s473, 5
      %s475 = scalar_select %p474, %s473, 5
      %p476 = scmp.lt.s32.totalorder %s22, 1
      %s477 = scalar_select %p476, %s22, 1
      %p478 = scmp.lt.s32.totalorder %s475, 5
      %s479 = scalar_select %p478, %s475, 5
      %s480 = smul.addr %s479, 2
      %s481 = smul.addr %s477, 12
      %s482 = sadd.s32 %s480, %s481
      %s483 = smul.addr %s482, 4
      %s484 = scalar_lea.vmem %s4, %s483
      %p485 = scmp.gt.s32.totalorder %s23, 0
      %s486 = scalar_select %p485, %s23, 0
      %p487 = scmp.lt.s32.totalorder %s486, 5
      %s488 = scalar_select %p487, %s486, 5
      %s489 = sadd.s32 %s23, 1
      %p490 = scmp.gt.s32.totalorder %s489, 0
      %s491 = scalar_select %p490, %s489, 0
      %p492 = scmp.lt.s32.totalorder %s491, 5
      %s493 = scalar_select %p492, %s491, 5
      %p494 = scmp.lt.s32.totalorder %s22, 1
      %s495 = scalar_select %p494, %s22, 1
      %p496 = scmp.lt.s32.totalorder %s493, 5
      %s497 = scalar_select %p496, %s493, 5
      %s498 = smul.addr %s497, 2
      %s499 = smul.addr %s495, 12
      %s500 = sadd.s32 %s498, %s499
      %s501 = smul.addr %s500, 4
      %s502 = scalar_lea.vmem %s5, %s501
      %s503 = sadd.s32 %s23, 1
      %p504 = scmp.gt.s32.totalorder %s503, 0
      %s505 = scalar_select %p504, %s503, 0
      %p506 = scmp.lt.s32.totalorder %s505, 5
      %s507 = scalar_select %p506, %s505, 5
      %p508 = scmp.lt.s32.totalorder %s22, 1
      %s509 = scalar_select %p508, %s22, 1
      %p510 = scmp.lt.s32.totalorder %s23, 5
      %s511 = scalar_select %p510, %s23, 5
      %s512 = smul.addr %s509, 6
      %s513 = sadd.s32 %s511, %s512
      %s514 = smul.addr %s513, 4
      %s515 = scalar_lea.vmem %s6, %s514
      %p516 = scmp.lt.s32.totalorder %s22, 1
      %s517 = scalar_select %p516, %s22, 1
      %p518 = scmp.lt.s32.totalorder %s23, 5
      %s519 = scalar_select %p518, %s23, 5
      %s520 = smul.addr %s517, 6
      %s521 = sadd.s32 %s519, %s520
      %s522 = smul.addr %s521, 8
      %s523 = scalar_lea.vmem %s7, %s522
      %v525 = vld [vmem:[%s466] sm:$0xf]
      %v526 = vld [vmem:[%s466 + $0x4] sm:$0xf]
      %v527 = vld [vmem:[%s484] sm:$0xf]
      %v528 = vld [vmem:[%s484 + $0x4] sm:$0xf]
      %v529 = vld [vmem:[%s502] sm:$0xf]
      %v530 = vld [vmem:[%s502 + $0x4] sm:$0xf]
      %v533 = vunpack.c.l.b16 %v525
      %v534 = vunpack.c.l.b16 %v526
      %v535 = vpack.c.b16 %v534, %v533
      %537 = vrot.lane.b32.xlu0 %v535, 127
      %v538 = vpop.permute.xlu0 %537
      %540 = vrot.lane.b32.xlu0 %v535, 126
      %v541 = vpop.permute.xlu0 %540
      %543 = vrot.lane.b32.xlu0 %v535, 118
      %v544 = vpop.permute.xlu0 %543
      %546 = vrot.lane.b32.xlu0 %v535, 117
      %v547 = vpop.permute.xlu0 %546
      %549 = vrot.lane.b32.xlu0 %v535, 116
      %v550 = vpop.permute.xlu0 %549
      %552 = vrot.lane.b32.xlu0 %v535, 108
      %v553 = vpop.permute.xlu0 %552
      %555 = vrot.lane.b32.xlu0 %v535, 107
      %v556 = vpop.permute.xlu0 %555
      %558 = vrot.lane.b32.xlu0 %v535, 106
      %v559 = vpop.permute.xlu0 %558
      %v563 = vunpack.c.l.b16 %v527
      %v564 = vunpack.c.l.b16 %v528
      %v565 = vpack.c.b16 %v564, %v563
      %567 = vrot.lane.b32.xlu0 %v565, 127
      %v568 = vpop.permute.xlu0 %567
      %570 = vrot.lane.b32.xlu0 %v565, 126
      %v571 = vpop.permute.xlu0 %570
      %573 = vrot.lane.b32.xlu0 %v565, 118
      %v574 = vpop.permute.xlu0 %573
      %576 = vrot.lane.b32.xlu0 %v565, 117
      %v577 = vpop.permute.xlu0 %576
      %579 = vrot.lane.b32.xlu0 %v565, 116
      %v580 = vpop.permute.xlu0 %579
      %582 = vrot.lane.b32.xlu0 %v565, 108
      %v583 = vpop.permute.xlu0 %582
      %v587 = vunpack.c.l.b16 %v529
      %v588 = vunpack.c.l.b16 %v530
      %v589 = vpack.c.b16 %v588, %v587
      %590 = vrot.lane.b32.xlu0 %v589, 21
      %v591 = vpop.permute.xlu0 %590
      %592 = vrot.lane.b32.xlu0 %v589, 20
      %v593 = vpop.permute.xlu0 %592
      %594 = vrot.lane.b32.xlu0 %v589, 19
      %v595 = vpop.permute.xlu0 %594
      %596 = vrot.lane.b32.xlu0 %v589, 11
      %v597 = vpop.permute.xlu0 %596
      %598 = vrot.lane.b32.xlu0 %v589, 10
      %v599 = vpop.permute.xlu0 %598
      %600 = vrot.lane.b32.xlu0 %v589, 9
      %v601 = vpop.permute.xlu0 %600
      %602 = vrot.lane.b32.xlu0 %v589, 1
      %v603 = vpop.permute.xlu0 %602
      %604 = vrot.lane.b32.xlu0 %v589, 127
      %v605 = vpop.permute.xlu0 %604
      %606 = vrot.lane.b32.xlu0 %v565, 107
      %v607 = vpop.permute.xlu0 %606
      %608 = vrot.lane.b32.xlu0 %v568, 107
      %v609 = vpop.permute.xlu0 %608
      %610 = vrot.lane.b32.xlu0 %v591, 107
      %v611 = vpop.permute.xlu0 %610
      %612 = vrot.lane.b32.xlu0 %v593, 107
      %v613 = vpop.permute.xlu0 %612
      %614 = vrot.lane.b32.xlu0 %v595, 107
      %v615 = vpop.permute.xlu0 %614
      %616 = vrot.lane.b32.xlu0 %v597, 107
      %v617 = vpop.permute.xlu0 %616
      %618 = vrot.lane.b32.xlu0 %v599, 107
      %v619 = vpop.permute.xlu0 %618
      %620 = vrot.lane.b32.xlu0 %v601, 107
      %v621 = vpop.permute.xlu0 %620
      %622 = vrot.lane.b32.xlu0 %v603, 107
      %v623 = vpop.permute.xlu0 %622
      %624 = vrot.lane.b32.xlu0 %v589, 107
      %v625 = vpop.permute.xlu0 %624
      %626 = vrot.lane.b32.xlu0 %v605, 107
      %v627 = vpop.permute.xlu0 %626
      %v639 = vld [vmem:[%s0] sm:$0xff]
      %v640 = vld [vmem:[%s0 + $0x8] sm:$0xff]
      %v641 = vld [vmem:[%s1] sm:$0xff]
      %643 = vset.pattern.permute.xlu0 0
      %644 = vperm.xlu0 %643, %v641
      %v645 = vpop.permute.xlu0 %644
      %v649 = vunpack.c.l.b16 %v639
      %v650 = vunpack.c.h.b16 %v639
      %v651 = vunpack.c.l.b16 %v640
      %v652 = vunpack.c.h.b16 %v640
      %v653 = vpack.c.b16 %v649, %v649
      %v654 = vpack.c.b16 %v650, %v650
      %v655 = vpack.c.b16 %v651, %v651
      %v656 = vpack.c.b16 %v652, %v652
      %vm660 = vcmask 392192
      %v662 = vsel %vm660, %v656, 0
      %664 = vmatprep.subr.bf16.mxu0 0
      %665 = vmatpush1.bf16.msra.mxu0 %v535
      %666 = vmatprep.subr.bf16.mxu0 0
      %667 = vmatpush1.bf16.msra.mxu0 %v538
      %668 = vmatprep.subr.bf16.mxu0 0
      %669 = vmatpush1.bf16.msra.mxu0 %v541
      %670 = vmatprep.subr.bf16.mxu0 0
      %671 = vmatpush1.bf16.msra.mxu0 %v544
      %672 = vmatprep.subr.bf16.mxu0 0
      %673 = vmatpush1.bf16.msra.mxu0 %v547
      %674 = vmatprep.subr.bf16.mxu0 0
      %675 = vmatpush1.bf16.msra.mxu0 %v550
      %676 = vmatprep.subr.bf16.mxu0 0
      %677 = vmatpush1.bf16.msra.mxu0 %v553
      %678 = vmatprep.subr.bf16.mxu0 0
      %679 = vmatpush1.bf16.msra.mxu0 %v556
      %680 = vmatprep.subr.bf16.mxu0 0
      %681 = vmatpush1.bf16.msra.mxu0 %v559
      %682 = vmatprep.subr.bf16.mxu0 0
      %683 = vmatpush1.bf16.msra.mxu0 %v565
      %684 = vmatprep.subr.bf16.mxu0 0
      %685 = vmatpush1.bf16.msra.mxu0 %v568
      %686 = vmatprep.subr.bf16.mxu0 0
      %687 = vmatpush1.bf16.msra.mxu0 %v571
      %688 = vmatprep.subr.bf16.mxu0 0
      %689 = vmatpush1.bf16.msra.mxu0 %v574
      %690 = vmatprep.subr.bf16.mxu0 0
      %691 = vmatpush1.bf16.msra.mxu0 %v577
      %692 = vmatprep.subr.bf16.mxu0 0
      %693 = vmatpush1.bf16.msra.mxu0 %v580
      %694 = vmatprep.subr.bf16.mxu0 0
      %695 = vmatpush1.bf16.msra.mxu0 %v583
      %696 = vmatprep.mubr.bf16.mxu0 %v654
      %697 = vmatmul.mubr.bf16.gmra.mrb[0].mxu0 %v653
      %v698 = vpop.f32.mrb[0].mxu0
      %v699 = vadd.f32 %v645, %v698
      %v700 = vpop.f32.mrb[0].mxu0
      %v701 = vpop.f32.mrb[0].mxu0
      %v702 = vpop.f32.mrb[0].mxu0
      %703 = vdwg.mxu0
      %704 = vmatprep.subr.bf16.mxu0 0
      %705 = vmatpush1.bf16.msra.mxu0 %v607
      %706 = vmatprep.subr.bf16.mxu0 0
      %707 = vmatpush1.bf16.msra.mxu0 %v609
      %708 = vmatprep.subr.bf16.mxu0 0
      %709 = vmatpush1.bf16.msra.mxu0 %v611
      %710 = vmatprep.subr.bf16.mxu0 0
      %711 = vmatpush1.bf16.msra.mxu0 %v613
      %712 = vmatprep.subr.bf16.mxu0 0
      %713 = vmatpush1.bf16.msra.mxu0 %v615
      %714 = vmatprep.subr.bf16.mxu0 0
      %715 = vmatpush1.bf16.msra.mxu0 %v617
      %716 = vmatprep.subr.bf16.mxu0 0
      %717 = vmatpush1.bf16.msra.mxu0 %v619
      %718 = vmatprep.subr.bf16.mxu0 0
      %719 = vmatpush1.bf16.msra.mxu0 %v621
      %720 = vmatprep.subr.bf16.mxu0 0
      %721 = vmatpush1.bf16.msra.mxu0 %v623
      %722 = vmatprep.subr.bf16.mxu0 0
      %723 = vmatpush1.bf16.msra.mxu0 %v625
      %724 = vmatprep.subr.bf16.mxu0 0
      %725 = vmatpush1.bf16.msra.mxu0 %v627
      %726 = vmatprep.subr.bf16.mxu0 0
      %727 = vmatpush1.bf16.msra.mxu0 0
      %728 = vmatprep.subr.bf16.mxu0 0
      %729 = vmatpush1.bf16.msra.mxu0 0
      %730 = vmatprep.subr.bf16.mxu0 0
      %731 = vmatpush1.bf16.msra.mxu0 0
      %732 = vmatprep.subr.bf16.mxu0 0
      %733 = vmatpush1.bf16.msra.mxu0 0
      %734 = vmatprep.subr.bf16.mxu0 0
      %735 = vmatpush1.bf16.msra.mxu0 0
      %736 = vmatprep.mubr.bf16.mxu0 %v662
      %737 = vmatmul.mubr.bf16.gmra.mrb[0].mxu0 %v655
      %v738 = vpop.f32.mrb[0].mxu0
      %v739 = vadd.f32 %v699, %v738
      %v740 = vpop.f32.mrb[0].mxu0
      %v741 = vpop.f32.mrb[0].mxu0
      %v742 = vpop.f32.mrb[0].mxu0
      %743 = vdwg.mxu0
      %v744 = vmax.f32 %v739, 0.0
      %v745 = vld [vmem:[%s452] sm:$0x1]
      %vm746 = vcmp.gt.f32.partialorder %v745, 0.5
      %v747 = vsel %vm746, 1, 0
      %v748 = vlaneseq
      %v749 = vshrl.u32 %v748, 7
      %v750 = vsub.s32 0, %v749
      %v751 = vrot.slane %v747, %v750
      %vm752 = vcmp.eq.s32.totalorder %v751, 1
      %v753 = vsel %vm752, %v744, 0.0
      %v754 = vld [vmem:[%s515] sm:$0xf]
      %v755 = vunpack.c.l.bf16 %v754
      %757 = vrot.lane.b32.xlu0 %v755, 117
      %v758 = vpop.permute.xlu0 %757
      %v760 = vadd.f32 %v753, %v758
      %762 = vrot.lane.b32.xlu0 %v760, 11
      %v763 = vpop.permute.xlu0 %762
      %vm765 = vcmask 89088
      %v766 = vsel %vm765, 0.0, %v763
      %vm767 = vcmask 908288
      %v768 = vsel %vm767, %v766, 0.0
      %vm769 = vcmask 998400
      %770 = vst.msk [vmem:[%s523] sm:$0xff] %vm769, %v768
      %p771 = scmp.lt.s32.totalorder %s22, 1
      %s772 = scalar_select %p771, %s22, 1
      %p773 = scmp.lt.s32.totalorder %s23, 5
      %s774 = scalar_select %p773, %s23, 5
      %s775 = smul.addr %s772, 6
      %s776 = sadd.s32 %s774, %s775
      %s777 = smul.addr %s776, 8
      %s778 = scalar_lea.vmem %s7, %s777
      // Predicated region
      $region49: #{inception_v4_forward.5} parent=47 // pred_check
        %p779 = pneg %p258
      $region50: #{inception_v4_forward.5} parent=47 // pred_check_branch
        %781 = sbr.rel (%p779) target = $region52
      $region51: #{inception_v4_forward.5} parent=47 // pred_region
        _
      $region52: #{inception_v4_forward.5} parent=47 // pred_fallthru
        _
    $region48: #{inception_v4_forward.5} parent=5 // pred_fallthru
      _
    %p782 = scmp.le.s32.totalorder 2, %s13
    // Predicated region
    $region53: #{inception_v4_forward.5} parent=5 // pred_check
      %p783 = pneg %p782
    $region54: #{inception_v4_forward.5} parent=5 // pred_check_branch
      %785 = sbr.rel (%p783) target = $region56
    $region55: #{inception_v4_forward.5} parent=5 // pred_region
      %s786 = ssub.s32 %s13, 2
      // Predicated region
      $region57: #{inception_v4_forward.5} parent=55 // pred_check
        %p787 = pneg %p264
      $region58: #{inception_v4_forward.5} parent=55 // pred_check_branch
        %789 = sbr.rel (%p787) target = $region60
      $region59: #{inception_v4_forward.5} parent=55 // pred_region
        %p790 = scmp.lt.s32.totalorder %s24, 1
        %s791 = scalar_select %p790, %s24, 1
        %p792 = scmp.lt.s32.totalorder %s25, 5
        %s793 = scalar_select %p792, %s25, 5
        %s794 = smul.addr %s791, 6
        %s795 = sadd.s32 %s793, %s794
        %s796 = smul.addr %s795, 8
        %s797 = scalar_lea.vmem %s7, %s796
      $region60: #{inception_v4_forward.5} parent=55 // pred_fallthru
        _
    $region56: #{inception_v4_forward.5} parent=5 // pred_fallthru
      _
  $region6: #{inception_v4_forward.5} parent=0 // loop_footer
    %s17 = sadd.s32 1, %s13
  $region7: #{inception_v4_forward.5} parent=0 // loop_footer_branch
    %12 = sbr.rel target = $region3
  $region8: #{inception_v4_forward.5} parent=0 // loop_exit
    _

// kernel: inception_v4_forward.3
$region0: #{inception_v4_forward.3}
  #allocation0 [shape = 'u32[]', space=smem, size = 0x4, offset = 0x4, fixed_abs, tag = 'smem constant byte address 0x4 - core index']
  #allocation1 [shape = 'u32[144,128]{1,0:T(1,128)}', space=vmem, size = 0x12000, scoped, tag = 'internal scratch']
  %s0 = inlined_call_operand.vmem [shape: bf16[24,216], index: 0, kind: input, shape index: {}]
  %s1 = inlined_call_operand.vmem [shape: f32[24,1], index: 1, kind: input, shape index: {}]
  %s2 = inlined_call_operand.vmem [shape: f32[6,1,100], index: 2, kind: input, shape index: {}]
  %s3 = inlined_call_operand.vmem [shape: bf16[2,6,8,122], index: 3, kind: input, shape index: {}, may-alias: {3,4,5}]
  %s4 = inlined_call_operand.vmem [shape: bf16[2,6,8,122], index: 4, kind: input, shape index: {}, may-alias: {3,4,5}]
  %s5 = inlined_call_operand.vmem [shape: bf16[2,6,8,122], index: 5, kind: input, shape index: {}, may-alias: {3,4,5}]
  %s6 = inlined_call_operand.vmem [shape: bf16[2,6,8,122], index: 6, kind: output, shape index: {0}]
  %s7 = inlined_call_operand.vmem [shape: bf16[2,6,16,122], index: 7, kind: output, shape index: {1}]
  %8 = xla_tuple %s6, %s7
  %s9 = sld [smem:[#allocation0]]
  $region65: #{inception_v4_forward.3} parent=0
    _
  %s11 = ssub.s32 1, %s9
  %s12 = scalar_select 0, %s11, %s9
  loop: start=0, step=1, limit=14
  $region2: #{inception_v4_forward.3} parent=0 // loop_pre_header
    _
  $region3: #{inception_v4_forward.3} parent=0 // loop_header
    %s14 = sphi 0, %s18
    %p15 = scmp.ge.s32.totalorder %s14, 14
    %s21 = sphi 0, %s33
    %s22 = sphi 0, %s29
    %s23 = sphi 0, %s21
    %s24 = sphi 0, %s22
    %s25 = sphi 0, %s23
    %s26 = sphi 0, %s24
    %s34 = sphi 0, %s34
    %s36 = sphi 0, %s34
    %s37 = sphi 0, %s36
    %s51 = sphi 0, %s37
    %s55 = sphi 0, %s55
    %s57 = sphi 0, %s55
    %s58 = sphi 0, %s57
    %s72 = sphi 0, %s58
    %s78 = sphi 0, %s80
    %s81 = sphi 0, %s78
    %s82 = sphi 0, %s81
    %s98 = sphi 0, %s82
    %s116 = sphi 0, %s118
    %s119 = sphi 0, %s116
    %s120 = sphi 0, %s119
    %s136 = sphi 0, %s120
    %s152 = sphi 0, %s154
    %s155 = sphi 0, %s152
    %s156 = sphi 0, %s155
    %s172 = sphi 0, %s156
    %s190 = sphi 0, %s192
    %s193 = sphi 0, %s190
    %s194 = sphi 0, %s193
    %s210 = sphi 0, %s194
    %s218 = sphi 0, %s220
    %s221 = sphi 0, %s218
    %s222 = sphi 0, %s221
    %s238 = sphi 0, %s222
    %s246 = sphi 0, %s248
    %s249 = sphi 0, %s246
    %s250 = sphi 0, %s249
    %s266 = sphi 0, %s250
  $region4: #{inception_v4_forward.3} parent=0 // loop_header_branch
    %17 = sbr.rel (%p15) target = $region8
  $region5: #{inception_v4_forward.3} parent=0 // loop_body
    %s19 = ssub.s32 %s14, 1
    %s20 = ssub.s32 %s14, 2
    %s27 = sadd.s32 1, %s22
    %p28 = scmp.ge.s32.totalorder %s27, 6
    %s29 = scalar_select %p28, 0, %s27
    %s30 = sadd.s32 1, %s21
    %s31 = scalar_select %p28, %s30, %s21
    %p32 = scmp.ge.s32.totalorder %s31, 2
    %s33 = scalar_select %p32, 0, %s31
    %s35 = sadd.s32 %s34, 1
    %p38 = scmp.eq.s32.totalorder %s14, 11
    %p39 = scmp.ne.s32.totalorder %s34, %s36
    %p40 = scmp.eq.s32.totalorder %s14, 0
    %p41 = por %p39, %p40
    %p42 = scmp.ne.s32.totalorder %s34, %s36
    %p43 = scmp.eq.s32.totalorder %s19, 11
    %p44 = por %p42, %p43
    %p45 = scmp.ne.s32.totalorder %s36, %s37
    %p46 = scmp.eq.s32.totalorder %s19, 0
    %p47 = por %p45, %p46
    %p48 = scmp.ne.s32.totalorder %s36, %s37
    %p49 = scmp.eq.s32.totalorder %s20, 11
    %p50 = por %p48, %p49
    %p52 = scmp.ne.s32.totalorder %s37, %s51
    %p53 = scmp.eq.s32.totalorder %s20, 0
    %p54 = por %p52, %p53
    %s56 = sadd.s32 %s55, 1
    %p59 = scmp.eq.s32.totalorder %s14, 11
    %p60 = scmp.ne.s32.totalorder %s55, %s57
    %p61 = scmp.eq.s32.totalorder %s14, 0
    %p62 = por %p60, %p61
    %p63 = scmp.ne.s32.totalorder %s55, %s57
    %p64 = scmp.eq.s32.totalorder %s19, 11
    %p65 = por %p63, %p64
    %p66 = scmp.ne.s32.totalorder %s57, %s58
    %p67 = scmp.eq.s32.totalorder %s19, 0
    %p68 = por %p66, %p67
    %p69 = scmp.ne.s32.totalorder %s57, %s58
    %p70 = scmp.eq.s32.totalorder %s20, 11
    %p71 = por %p69, %p70
    %p73 = scmp.ne.s32.totalorder %s58, %s72
    %p74 = scmp.eq.s32.totalorder %s20, 0
    %p75 = por %p73, %p74
    %s76 = ssub.s32 %s22, %s29
    %p77 = scmp.eq.s32.totalorder %s76, 0
    %s79 = sadd.s32 %s78, 1
    %s80 = scalar_select %p77, %s78, %s79
    %p83 = pneg %p77
    %p84 = scmp.eq.s32.totalorder %s14, 11
    %p85 = por %p83, %p84
    %p86 = scmp.ne.s32.totalorder %s78, %s81
    %p87 = scmp.eq.s32.totalorder %s14, 0
    %p88 = por %p86, %p87
    %p89 = scmp.ne.s32.totalorder %s78, %s81
    %p90 = scmp.eq.s32.totalorder %s19, 11
    %p91 = por %p89, %p90
    %p92 = scmp.ne.s32.totalorder %s81, %s82
    %p93 = scmp.eq.s32.totalorder %s19, 0
    %p94 = por %p92, %p93
    %p95 = scmp.ne.s32.totalorder %s81, %s82
    %p96 = scmp.eq.s32.totalorder %s20, 11
    %p97 = por %p95, %p96
    %p99 = scmp.ne.s32.totalorder %s82, %s98
    %p100 = scmp.eq.s32.totalorder %s20, 0
    %p101 = por %p99, %p100
    %s102 = sadd.s32 %s22, 4294967295
    %p103 = scmp.gt.s32.totalorder %s102, 0
    %s104 = scalar_select %p103, %s102, 0
    %p105 = scmp.lt.s32.totalorder %s104, 5
    %s106 = scalar_select %p105, %s104, 5
    %s107 = sadd.s32 %s29, 4294967295
    %p108 = scmp.gt.s32.totalorder %s107, 0
    %s109 = scalar_select %p108, %s107, 0
    %p110 = scmp.lt.s32.totalorder %s109, 5
    %s111 = scalar_select %p110, %s109, 5
    %s112 = ssub.s32 %s21, %s33
    %s113 = ssub.s32 %s106, %s111
    %s114 = sor.u32 %s112, %s113
    %p115 = scmp.eq.s32.totalorder %s114, 0
    %s117 = sadd.s32 %s116, 1
    %s118 = scalar_select %p115, %s116, %s117
    %p121 = pneg %p115
    %p122 = scmp.eq.s32.totalorder %s14, 11
    %p123 = por %p121, %p122
    %p124 = scmp.ne.s32.totalorder %s116, %s119
    %p125 = scmp.eq.s32.totalorder %s14, 0
    %p126 = por %p124, %p125
    %p127 = scmp.ne.s32.totalorder %s116, %s119
    %p128 = scmp.eq.s32.totalorder %s19, 11
    %p129 = por %p127, %p128
    %p130 = scmp.ne.s32.totalorder %s119, %s120
    %p131 = scmp.eq.s32.totalorder %s19, 0
    %p132 = por %p130, %p131
    %p133 = scmp.ne.s32.totalorder %s119, %s120
    %p134 = scmp.eq.s32.totalorder %s20, 11
    %p135 = por %p133, %p134
    %p137 = scmp.ne.s32.totalorder %s120, %s136
    %p138 = scmp.eq.s32.totalorder %s20, 0
    %p139 = por %p137, %p138
    %p140 = scmp.gt.s32.totalorder %s22, 0
    %s141 = scalar_select %p140, %s22, 0
    %p142 = scmp.lt.s32.totalorder %s141, 5
    %s143 = scalar_select %p142, %s141, 5
    %p144 = scmp.gt.s32.totalorder %s29, 0
    %s145 = scalar_select %p144, %s29, 0
    %p146 = scmp.lt.s32.totalorder %s145, 5
    %s147 = scalar_select %p146, %s145, 5
    %s148 = ssub.s32 %s21, %s33
    %s149 = ssub.s32 %s143, %s147
    %s150 = sor.u32 %s148, %s149
    %p151 = scmp.eq.s32.totalorder %s150, 0
    %s153 = sadd.s32 %s152, 1
    %s154 = scalar_select %p151, %s152, %s153
    %p157 = pneg %p151
    %p158 = scmp.eq.s32.totalorder %s14, 11
    %p159 = por %p157, %p158
    %p160 = scmp.ne.s32.totalorder %s152, %s155
    %p161 = scmp.eq.s32.totalorder %s14, 0
    %p162 = por %p160, %p161
    %p163 = scmp.ne.s32.totalorder %s152, %s155
    %p164 = scmp.eq.s32.totalorder %s19, 11
    %p165 = por %p163, %p164
    %p166 = scmp.ne.s32.totalorder %s155, %s156
    %p167 = scmp.eq.s32.totalorder %s19, 0
    %p168 = por %p166, %p167
    %p169 = scmp.ne.s32.totalorder %s155, %s156
    %p170 = scmp.eq.s32.totalorder %s20, 11
    %p171 = por %p169, %p170
    %p173 = scmp.ne.s32.totalorder %s156, %s172
    %p174 = scmp.eq.s32.totalorder %s20, 0
    %p175 = por %p173, %p174
    %s176 = sadd.s32 %s22, 1
    %p177 = scmp.gt.s32.totalorder %s176, 0
    %s178 = scalar_select %p177, %s176, 0
    %p179 = scmp.lt.s32.totalorder %s178, 5
    %s180 = scalar_select %p179, %s178, 5
    %s181 = sadd.s32 %s29, 1
    %p182 = scmp.gt.s32.totalorder %s181, 0
    %s183 = scalar_select %p182, %s181, 0
    %p184 = scmp.lt.s32.totalorder %s183, 5
    %s185 = scalar_select %p184, %s183, 5
    %s186 = ssub.s32 %s21, %s33
    %s187 = ssub.s32 %s180, %s185
    %s188 = sor.u32 %s186, %s187
    %p189 = scmp.eq.s32.totalorder %s188, 0
    %s191 = sadd.s32 %s190, 1
    %s192 = scalar_select %p189, %s190, %s191
    %p195 = pneg %p189
    %p196 = scmp.eq.s32.totalorder %s14, 11
    %p197 = por %p195, %p196
    %p198 = scmp.ne.s32.totalorder %s190, %s193
    %p199 = scmp.eq.s32.totalorder %s14, 0
    %p200 = por %p198, %p199
    %p201 = scmp.ne.s32.totalorder %s190, %s193
    %p202 = scmp.eq.s32.totalorder %s19, 11
    %p203 = por %p201, %p202
    %p204 = scmp.ne.s32.totalorder %s193, %s194
    %p205 = scmp.eq.s32.totalorder %s19, 0
    %p206 = por %p204, %p205
    %p207 = scmp.ne.s32.totalorder %s193, %s194
    %p208 = scmp.eq.s32.totalorder %s20, 11
    %p209 = por %p207, %p208
    %p211 = scmp.ne.s32.totalorder %s194, %s210
    %p212 = scmp.eq.s32.totalorder %s20, 0
    %p213 = por %p211, %p212
    %s214 = ssub.s32 %s21, %s33
    %s215 = ssub.s32 %s22, %s29
    %s216 = sor.u32 %s214, %s215
    %p217 = scmp.eq.s32.totalorder %s216, 0
    %s219 = sadd.s32 %s218, 1
    %s220 = scalar_select %p217, %s218, %s219
    %p223 = pneg %p217
    %p224 = scmp.eq.s32.totalorder %s14, 11
    %p225 = por %p223, %p224
    %p226 = scmp.ne.s32.totalorder %s218, %s221
    %p227 = scmp.eq.s32.totalorder %s14, 0
    %p228 = por %p226, %p227
    %p229 = scmp.ne.s32.totalorder %s218, %s221
    %p230 = scmp.eq.s32.totalorder %s19, 11
    %p231 = por %p229, %p230
    %p232 = scmp.ne.s32.totalorder %s221, %s222
    %p233 = scmp.eq.s32.totalorder %s19, 0
    %p234 = por %p232, %p233
    %p235 = scmp.ne.s32.totalorder %s221, %s222
    %p236 = scmp.eq.s32.totalorder %s20, 11
    %p237 = por %p235, %p236
    %p239 = scmp.ne.s32.totalorder %s222, %s238
    %p240 = scmp.eq.s32.totalorder %s20, 0
    %p241 = por %p239, %p240
    %s242 = ssub.s32 %s21, %s33
    %s243 = ssub.s32 %s22, %s29
    %s244 = sor.u32 %s242, %s243
    %p245 = scmp.eq.s32.totalorder %s244, 0
    %s247 = sadd.s32 %s246, 1
    %s248 = scalar_select %p245, %s246, %s247
    %p251 = pneg %p245
    %p252 = scmp.eq.s32.totalorder %s14, 11
    %p253 = por %p251, %p252
    %p254 = scmp.ne.s32.totalorder %s246, %s249
    %p255 = scmp.eq.s32.totalorder %s14, 0
    %p256 = por %p254, %p255
    %p257 = scmp.ne.s32.totalorder %s246, %s249
    %p258 = scmp.eq.s32.totalorder %s19, 11
    %p259 = por %p257, %p258
    %p260 = scmp.ne.s32.totalorder %s249, %s250
    %p261 = scmp.eq.s32.totalorder %s19, 0
    %p262 = por %p260, %p261
    %p263 = scmp.ne.s32.totalorder %s249, %s250
    %p264 = scmp.eq.s32.totalorder %s20, 11
    %p265 = por %p263, %p264
    %p267 = scmp.ne.s32.totalorder %s250, %s266
    %p268 = scmp.eq.s32.totalorder %s20, 0
    %p269 = por %p267, %p268
    %p270 = scmp.le.s32.totalorder 1, %s14
    %p271 = scmp.lt.s32.totalorder %s14, 13
    %p272 = pnand %p270, %p271
    %p273 = pneg %p272
    // Predicated region
    $region9: #{inception_v4_forward.3} parent=5 // pred_check
      _
    $region10: #{inception_v4_forward.3} parent=5 // pred_check_branch
      %275 = sbr.rel (%p272) target = $region12
    $region11: #{inception_v4_forward.3} parent=5 // pred_region
      %s276 = ssub.s32 %s14, 1
      // Predicated region
      $region13: #{inception_v4_forward.3} parent=11 // pred_check
        %p277 = pneg %p47
      $region14: #{inception_v4_forward.3} parent=11 // pred_check_branch
        %279 = sbr.rel (%p277) target = $region16
      $region15: #{inception_v4_forward.3} parent=11 // pred_region
        _
      $region16: #{inception_v4_forward.3} parent=11 // pred_fallthru
        _
      // Predicated region
      $region17: #{inception_v4_forward.3} parent=11 // pred_check
        %p280 = pneg %p68
      $region18: #{inception_v4_forward.3} parent=11 // pred_check_branch
        %282 = sbr.rel (%p280) target = $region20
      $region19: #{inception_v4_forward.3} parent=11 // pred_region
        _
      $region20: #{inception_v4_forward.3} parent=11 // pred_fallthru
        _
    $region12: #{inception_v4_forward.3} parent=5 // pred_fallthru
      _
    %p283 = scmp.lt.s32.totalorder %s14, 12
    // Predicated region
    $region21: #{inception_v4_forward.3} parent=5 // pred_check
      %p284 = pneg %p283
    $region22: #{inception_v4_forward.3} parent=5 // pred_check_branch
      %286 = sbr.rel (%p284) target = $region24
    $region23: #{inception_v4_forward.3} parent=5 // pred_region
      // Predicated region
      $region25: #{inception_v4_forward.3} parent=23 // pred_check
        %p287 = pneg %p88
      $region26: #{inception_v4_forward.3} parent=23 // pred_check_branch
        %289 = sbr.rel (%p287) target = $region28
      $region27: #{inception_v4_forward.3} parent=23 // pred_region
        %p290 = scmp.lt.s32.totalorder %s22, 5
        %s291 = scalar_select %p290, %s22, 5
        %s292 = scalar_lea.vmem %s2, %s291
      $region28: #{inception_v4_forward.3} parent=23 // pred_fallthru
        _
      // Predicated region
      $region29: #{inception_v4_forward.3} parent=23 // pred_check
        %p293 = pneg %p126
      $region30: #{inception_v4_forward.3} parent=23 // pred_check_branch
        %295 = sbr.rel (%p293) target = $region32
      $region31: #{inception_v4_forward.3} parent=23 // pred_region
        %s296 = sadd.s32 %s22, 4294967295
        %p297 = scmp.gt.s32.totalorder %s296, 0
        %s298 = scalar_select %p297, %s296, 0
        %p299 = scmp.lt.s32.totalorder %s298, 5
        %s300 = scalar_select %p299, %s298, 5
        %p301 = scmp.lt.s32.totalorder %s21, 1
        %s302 = scalar_select %p301, %s21, 1
        %p303 = scmp.lt.s32.totalorder %s300, 5
        %s304 = scalar_select %p303, %s300, 5
        %s305 = smul.addr %s302, 6
        %s306 = sadd.s32 %s304, %s305
        %s307 = smul.addr %s306, 4
        %s308 = scalar_lea.vmem %s3, %s307
        %s309 = sadd.s32 %s22, 4294967295
        %p310 = scmp.gt.s32.totalorder %s309, 0
        %s311 = scalar_select %p310, %s309, 0
        %p312 = scmp.lt.s32.totalorder %s311, 5
        %s313 = scalar_select %p312, %s311, 5
      $region32: #{inception_v4_forward.3} parent=23 // pred_fallthru
        _
      // Predicated region
      $region33: #{inception_v4_forward.3} parent=23 // pred_check
        %p314 = pneg %p162
      $region34: #{inception_v4_forward.3} parent=23 // pred_check_branch
        %316 = sbr.rel (%p314) target = $region36
      $region35: #{inception_v4_forward.3} parent=23 // pred_region
        %p317 = scmp.gt.s32.totalorder %s22, 0
        %s318 = scalar_select %p317, %s22, 0
        %p319 = scmp.lt.s32.totalorder %s318, 5
        %s320 = scalar_select %p319, %s318, 5
        %p321 = scmp.lt.s32.totalorder %s21, 1
        %s322 = scalar_select %p321, %s21, 1
        %p323 = scmp.lt.s32.totalorder %s320, 5
        %s324 = scalar_select %p323, %s320, 5
        %s325 = smul.addr %s322, 6
        %s326 = sadd.s32 %s324, %s325
        %s327 = smul.addr %s326, 4
        %s328 = scalar_lea.vmem %s4, %s327
        %p329 = scmp.gt.s32.totalorder %s22, 0
        %s330 = scalar_select %p329, %s22, 0
        %p331 = scmp.lt.s32.totalorder %s330, 5
        %s332 = scalar_select %p331, %s330, 5
      $region36: #{inception_v4_forward.3} parent=23 // pred_fallthru
        _
      // Predicated region
      $region37: #{inception_v4_forward.3} parent=23 // pred_check
        %p333 = pneg %p200
      $region38: #{inception_v4_forward.3} parent=23 // pred_check_branch
        %335 = sbr.rel (%p333) target = $region40
      $region39: #{inception_v4_forward.3} parent=23 // pred_region
        %s336 = sadd.s32 %s22, 1
        %p337 = scmp.gt.s32.totalorder %s336, 0
        %s338 = scalar_select %p337, %s336, 0
        %p339 = scmp.lt.s32.totalorder %s338, 5
        %s340 = scalar_select %p339, %s338, 5
        %p341 = scmp.lt.s32.totalorder %s21, 1
        %s342 = scalar_select %p341, %s21, 1
        %p343 = scmp.lt.s32.totalorder %s340, 5
        %s344 = scalar_select %p343, %s340, 5
        %s345 = smul.addr %s342, 6
        %s346 = sadd.s32 %s344, %s345
        %s347 = smul.addr %s346, 4
        %s348 = scalar_lea.vmem %s5, %s347
        %s349 = sadd.s32 %s22, 1
        %p350 = scmp.gt.s32.totalorder %s349, 0
        %s351 = scalar_select %p350, %s349, 0
        %p352 = scmp.lt.s32.totalorder %s351, 5
        %s353 = scalar_select %p352, %s351, 5
      $region40: #{inception_v4_forward.3} parent=23 // pred_fallthru
        _
    $region24: #{inception_v4_forward.3} parent=5 // pred_fallthru
      _
    %p354 = scmp.le.s32.totalorder 1, %s14
    %p355 = scmp.lt.s32.totalorder %s14, 13
    %p356 = pnand %p354, %p355
    %p357 = pneg %p356
    // Predicated region
    $region41: #{inception_v4_forward.3} parent=5 // pred_check
      _
    $region42: #{inception_v4_forward.3} parent=5 // pred_check_branch
      %359 = sbr.rel (%p356) target = $region44
    $region43: #{inception_v4_forward.3} parent=5 // pred_region
      %s360 = ssub.s32 %s14, 1
      %p361 = pneg %p47
      %p362 = pneg %p44
      %p363 = pneg %p68
      %p364 = pneg %p65
      %p365 = scmp.lt.s32.totalorder %s24, 5
      %s366 = scalar_select %p365, %s24, 5
      %s367 = scalar_lea.vmem %s2, %s366
      %p368 = pneg %p94
      %p369 = pneg %p91
      %s370 = sadd.s32 %s24, 4294967295
      %p371 = scmp.gt.s32.totalorder %s370, 0
      %s372 = scalar_select %p371, %s370, 0
      %p373 = scmp.lt.s32.totalorder %s372, 5
      %s374 = scalar_select %p373, %s372, 5
      %p375 = scmp.lt.s32.totalorder %s23, 1
      %s376 = scalar_select %p375, %s23, 1
      %p377 = scmp.lt.s32.totalorder %s374, 5
      %s378 = scalar_select %p377, %s374, 5
      %s379 = smul.addr %s376, 6
      %s380 = sadd.s32 %s378, %s379
      %s381 = smul.addr %s380, 4
      %s382 = scalar_lea.vmem %s3, %s381
      %p383 = pneg %p132
      %p384 = pneg %p129
      %p385 = scmp.gt.s32.totalorder %s24, 0
      %s386 = scalar_select %p385, %s24, 0
      %p387 = scmp.lt.s32.totalorder %s386, 5
      %s388 = scalar_select %p387, %s386, 5
      %p389 = scmp.lt.s32.totalorder %s23, 1
      %s390 = scalar_select %p389, %s23, 1
      %p391 = scmp.lt.s32.totalorder %s388, 5
      %s392 = scalar_select %p391, %s388, 5
      %s393 = smul.addr %s390, 6
      %s394 = sadd.s32 %s392, %s393
      %s395 = smul.addr %s394, 4
      %s396 = scalar_lea.vmem %s4, %s395
      %p397 = pneg %p168
      %p398 = pneg %p165
      %s399 = sadd.s32 %s24, 1
      %p400 = scmp.gt.s32.totalorder %s399, 0
      %s401 = scalar_select %p400, %s399, 0
      %p402 = scmp.lt.s32.totalorder %s401, 5
      %s403 = scalar_select %p402, %s401, 5
      %p404 = scmp.lt.s32.totalorder %s23, 1
      %s405 = scalar_select %p404, %s23, 1
      %p406 = scmp.lt.s32.totalorder %s403, 5
      %s407 = scalar_select %p406, %s403, 5
      %s408 = smul.addr %s405, 6
      %s409 = sadd.s32 %s407, %s408
      %s410 = smul.addr %s409, 4
      %s411 = scalar_lea.vmem %s5, %s410
      %p412 = pneg %p206
      %p413 = pneg %p203
      %p414 = pneg %p234
      %p415 = pneg %p231
      %p416 = scmp.lt.s32.totalorder %s23, 1
      %s417 = scalar_select %p416, %s23, 1
      %p418 = scmp.lt.s32.totalorder %s24, 5
      %s419 = scalar_select %p418, %s24, 5
      %s420 = smul.addr %s417, 6
      %s421 = sadd.s32 %s419, %s420
      %s422 = smul.addr %s421, 4
      %s423 = scalar_lea.vmem %s6, %s422
      %p424 = pneg %p262
      %p425 = pneg %p259
      %p426 = scmp.lt.s32.totalorder %s23, 1
      %s427 = scalar_select %p426, %s23, 1
      %p428 = scmp.lt.s32.totalorder %s24, 5
      %s429 = scalar_select %p428, %s24, 5
      %s430 = smul.addr %s429, 2
      %s431 = smul.addr %s427, 12
      %s432 = sadd.s32 %s430, %s431
      %s433 = smul.addr %s432, 4
      %s434 = scalar_lea.vmem %s7, %s433
      %p435 = scmp.lt.s32.totalorder %s24, 5
      %s436 = scalar_select %p435, %s24, 5
      %s437 = scalar_lea.vmem %s2, %s436
      %s438 = sadd.s32 %s24, 4294967295
      %p439 = scmp.gt.s32.totalorder %s438, 0
      %s440 = scalar_select %p439, %s438, 0
      %p441 = scmp.lt.s32.totalorder %s440, 5
      %s442 = scalar_select %p441, %s440, 5
      %p443 = scmp.lt.s32.totalorder %s23, 1
      %s444 = scalar_select %p443, %s23, 1
      %p445 = scmp.lt.s32.totalorder %s442, 5
      %s446 = scalar_select %p445, %s442, 5
      %s447 = smul.addr %s444, 6
      %s448 = sadd.s32 %s446, %s447
      %s449 = smul.addr %s448, 4
      %s450 = scalar_lea.vmem %s3, %s449
      %s451 = sadd.s32 %s24, 4294967295
      %p452 = scmp.gt.s32.totalorder %s451, 0
      %s453 = scalar_select %p452, %s451, 0
      %p454 = scmp.lt.s32.totalorder %s453, 5
      %s455 = scalar_select %p454, %s453, 5
      %p456 = scmp.gt.s32.totalorder %s24, 0
      %s457 = scalar_select %p456, %s24, 0
      %p458 = scmp.lt.s32.totalorder %s457, 5
      %s459 = scalar_select %p458, %s457, 5
      %p460 = scmp.lt.s32.totalorder %s23, 1
      %s461 = scalar_select %p460, %s23, 1
      %p462 = scmp.lt.s32.totalorder %s459, 5
      %s463 = scalar_select %p462, %s459, 5
      %s464 = smul.addr %s461, 6
      %s465 = sadd.s32 %s463, %s464
      %s466 = smul.addr %s465, 4
      %s467 = scalar_lea.vmem %s4, %s466
      %p468 = scmp.gt.s32.totalorder %s24, 0
      %s469 = scalar_select %p468, %s24, 0
      %p470 = scmp.lt.s32.totalorder %s469, 5
      %s471 = scalar_select %p470, %s469, 5
      %s472 = sadd.s32 %s24, 1
      %p473 = scmp.gt.s32.totalorder %s472, 0
      %s474 = scalar_select %p473, %s472, 0
      %p475 = scmp.lt.s32.totalorder %s474, 5
      %s476 = scalar_select %p475, %s474, 5
      %p477 = scmp.lt.s32.totalorder %s23, 1
      %s478 = scalar_select %p477, %s23, 1
      %p479 = scmp.lt.s32.totalorder %s476, 5
      %s480 = scalar_select %p479, %s476, 5
      %s481 = smul.addr %s478, 6
      %s482 = sadd.s32 %s480, %s481
      %s483 = smul.addr %s482, 4
      %s484 = scalar_lea.vmem %s5, %s483
      %s485 = sadd.s32 %s24, 1
      %p486 = scmp.gt.s32.totalorder %s485, 0
      %s487 = scalar_select %p486, %s485, 0
      %p488 = scmp.lt.s32.totalorder %s487, 5
      %s489 = scalar_select %p488, %s487, 5
      %p490 = scmp.lt.s32.totalorder %s23, 1
      %s491 = scalar_select %p490, %s23, 1
      %p492 = scmp.lt.s32.totalorder %s24, 5
      %s493 = scalar_select %p492, %s24, 5
      %s494 = smul.addr %s491, 6
      %s495 = sadd.s32 %s493, %s494
      %s496 = smul.addr %s495, 4
      %s497 = scalar_lea.vmem %s6, %s496
      %p498 = scmp.lt.s32.totalorder %s23, 1
      %s499 = scalar_select %p498, %s23, 1
      %p500 = scmp.lt.s32.totalorder %s24, 5
      %s501 = scalar_select %p500, %s24, 5
      %s502 = smul.addr %s501, 2
      %s503 = smul.addr %s499, 12
      %s504 = sadd.s32 %s502, %s503
      %s505 = smul.addr %s504, 4
      %s506 = scalar_lea.vmem %s7, %s505
      %v508 = vld [vmem:[%s450] sm:$0xf]
      %v509 = vld [vmem:[%s467] sm:$0xf]
      %v510 = vld [vmem:[%s484] sm:$0xf]
      %v512 = vunpack.c.l.b16 %v508
      %v513 = vpack.c.b16 %v512, %v512
      %514 = vrot.lane.b32.xlu0 %v513, 127
      %v515 = vpop.permute.xlu0 %514
      %516 = vrot.lane.b32.xlu0 %v513, 126
      %v517 = vpop.permute.xlu0 %516
      %518 = vrot.lane.b32.xlu0 %v513, 118
      %v519 = vpop.permute.xlu0 %518
      %520 = vrot.lane.b32.xlu0 %v513, 117
      %v521 = vpop.permute.xlu0 %520
      %522 = vrot.lane.b32.xlu0 %v513, 116
      %v523 = vpop.permute.xlu0 %522
      %524 = vrot.lane.b32.xlu0 %v513, 108
      %v525 = vpop.permute.xlu0 %524
      %526 = vrot.lane.b32.xlu0 %v513, 107
      %v527 = vpop.permute.xlu0 %526
      %528 = vrot.lane.b32.xlu0 %v513, 106
      %v529 = vpop.permute.xlu0 %528
      %v531 = vunpack.c.l.b16 %v509
      %v532 = vpack.c.b16 %v531, %v531
      %533 = vrot.lane.b32.xlu0 %v532, 127
      %v534 = vpop.permute.xlu0 %533
      %535 = vrot.lane.b32.xlu0 %v532, 126
      %v536 = vpop.permute.xlu0 %535
      %537 = vrot.lane.b32.xlu0 %v532, 118
      %v538 = vpop.permute.xlu0 %537
      %539 = vrot.lane.b32.xlu0 %v532, 117
      %v540 = vpop.permute.xlu0 %539
      %541 = vrot.lane.b32.xlu0 %v532, 116
      %v542 = vpop.permute.xlu0 %541
      %543 = vrot.lane.b32.xlu0 %v532, 108
      %v544 = vpop.permute.xlu0 %543
      %vm545 = vcmask 1043456
      %v548 = vsel %vm545, %v508, %v515
      %v552 = vsel %vm545, %v517, %v519
      %v556 = vsel %vm545, %v521, %v523
      %v560 = vsel %vm545, %v525, %v527
      %v564 = vsel %vm545, %v529, %v532
      %v568 = vsel %vm545, %v534, %v536
      %v572 = vsel %vm545, %v538, %v540
      %v576 = vsel %vm545, %v542, %v544
      %v579 = vunpack.c.l.b16 %v510
      %v580 = vpack.c.b16 %v579, %v579
      %581 = vrot.lane.b32.xlu0 %v580, 21
      %v582 = vpop.permute.xlu0 %581
      %583 = vrot.lane.b32.xlu0 %v580, 20
      %v584 = vpop.permute.xlu0 %583
      %585 = vrot.lane.b32.xlu0 %v580, 19
      %v586 = vpop.permute.xlu0 %585
      %587 = vrot.lane.b32.xlu0 %v580, 11
      %v588 = vpop.permute.xlu0 %587
      %589 = vrot.lane.b32.xlu0 %v580, 10
      %v590 = vpop.permute.xlu0 %589
      %591 = vrot.lane.b32.xlu0 %v580, 9
      %v592 = vpop.permute.xlu0 %591
      %593 = vrot.lane.b32.xlu0 %v580, 1
      %v594 = vpop.permute.xlu0 %593
      %595 = vrot.lane.b32.xlu0 %v580, 127
      %v596 = vpop.permute.xlu0 %595
      %v598 = vsel %vm545, %v509, %v534
      %v601 = vsel %vm545, %v582, %v584
      %v604 = vsel %vm545, %v586, %v588
      %v607 = vsel %vm545, %v590, %v592
      %v610 = vsel %vm545, %v594, %v580
      %616 = vrot.lane.b32.xlu0 %v598, 107
      %v617 = vpop.permute.xlu0 %616
      %618 = vrot.lane.b32.xlu0 %v601, 107
      %v619 = vpop.permute.xlu0 %618
      %620 = vrot.lane.b32.xlu0 %v604, 107
      %v621 = vpop.permute.xlu0 %620
      %622 = vrot.lane.b32.xlu0 %v607, 107
      %v623 = vpop.permute.xlu0 %622
      %624 = vrot.lane.b32.xlu0 %v610, 107
      %v625 = vpop.permute.xlu0 %624
      %626 = vrot.lane.b32.xlu0 %v596, 107
      %v627 = vpop.permute.xlu0 %626
      %v633 = vld [vmem:[%s0] sm:$0xff]
      %v634 = vld [vmem:[%s0 + $0x8] sm:$0xff]
      %v635 = vld [vmem:[%s0 + $0x10] sm:$0xff]
      %v636 = vld [vmem:[%s1] sm:$0xff]
      %v637 = vld [vmem:[%s1 + $0x8] sm:$0xff]
      %v638 = vld [vmem:[%s1 + $0x10] sm:$0xff]
      %640 = vset.pattern.permute.xlu0 0
      %641 = vperm.xlu0 %640, %v636
      %v642 = vpop.permute.xlu0 %641
      %645 = vset.pattern.permute.xlu0 0
      %646 = vperm.xlu0 %645, %v637
      %v647 = vpop.permute.xlu0 %646
      %650 = vset.pattern.permute.xlu0 0
      %651 = vperm.xlu0 %650, %v638
      %v652 = vpop.permute.xlu0 %651
      %v657 = vunpack.c.l.b16 %v633
      %v658 = vunpack.c.h.b16 %v633
      %v659 = vunpack.c.l.b16 %v634
      %v660 = vunpack.c.h.b16 %v634
      %v661 = vunpack.c.l.b16 %v635
      %v662 = vunpack.c.h.b16 %v635
      %v663 = vpack.c.b16 %v659, %v657
      %v664 = vpack.c.b16 %v660, %v658
      %v665 = vpack.c.b16 %v661, %v661
      %v666 = vpack.c.b16 %v662, %v662
      %vm669 = vcmask 719872
      %v671 = vsel %vm669, %v664, 0
      %v674 = vsel %vm669, %v666, 0
      %v677 = vsel %vm545, %v627, 0
      %679 = vmatprep.subr.bf16.mxu0 0
      %680 = vmatpush1.bf16.msra.mxu0 %v548
      %681 = vmatprep.subr.bf16.mxu0 0
      %682 = vmatpush1.bf16.msra.mxu0 %v552
      %683 = vmatprep.subr.bf16.mxu0 0
      %684 = vmatpush1.bf16.msra.mxu0 %v556
      %685 = vmatprep.subr.bf16.mxu0 0
      %686 = vmatpush1.bf16.msra.mxu0 %v560
      %687 = vmatprep.subr.bf16.mxu0 0
      %688 = vmatpush1.bf16.msra.mxu0 %v564
      %689 = vmatprep.subr.bf16.mxu0 0
      %690 = vmatpush1.bf16.msra.mxu0 %v568
      %691 = vmatprep.subr.bf16.mxu0 0
      %692 = vmatpush1.bf16.msra.mxu0 %v572
      %693 = vmatprep.subr.bf16.mxu0 0
      %694 = vmatpush1.bf16.msra.mxu0 %v576
      %695 = vmatprep.subr.bf16.mxu0 0
      %696 = vmatpush1.bf16.msra.mxu0 %v617
      %697 = vmatprep.subr.bf16.mxu0 0
      %698 = vmatpush1.bf16.msra.mxu0 %v619
      %699 = vmatprep.subr.bf16.mxu0 0
      %700 = vmatpush1.bf16.msra.mxu0 %v621
      %701 = vmatprep.subr.bf16.mxu0 0
      %702 = vmatpush1.bf16.msra.mxu0 %v623
      %703 = vmatprep.subr.bf16.mxu0 0
      %704 = vmatpush1.bf16.msra.mxu0 %v625
      %705 = vmatprep.subr.bf16.mxu0 0
      %706 = vmatpush1.bf16.msra.mxu0 %v677
      %707 = vmatprep.subr.bf16.mxu0 0
      %708 = vmatpush1.bf16.msra.mxu0 0
      %709 = vmatprep.subr.bf16.mxu0 0
      %710 = vmatpush1.bf16.msra.mxu0 0
      %711 = vmatprep.mubr.bf16.mxu0 %v671
      %712 = vmatmul.mubr.bf16.gmra.mrb[0].mxu0 %v663
      %v713 = vpop.f32.mrb[0].mxu0
      %v714 = vadd.f32 %v642, %v713
      %v715 = vpop.f32.mrb[0].mxu0
      %v716 = vpop.f32.mrb[0].mxu0
      %v717 = vadd.f32 %v647, %v716
      %v718 = vpop.f32.mrb[0].mxu0
      %719 = vmatprep.mubr.bf16.mxu0 %v674
      %720 = vmatmul.mubr.bf16.gmra.mrb[0].mxu0 %v665
      %v721 = vpop.f32.mrb[0].mxu0
      %v722 = vadd.f32 %v652, %v721
      %v723 = vpop.f32.mrb[0].mxu0
      %v724 = vpop.f32.mrb[0].mxu0
      %v725 = vpop.f32.mrb[0].mxu0
      %726 = vdwg.mxu0
      %v727 = vmax.f32 %v714, 0.0
      %v728 = vmax.f32 %v717, 0.0
      %v729 = vmax.f32 %v722, 0.0
      %v730 = vld [vmem:[%s437] sm:$0x1]
      %vm731 = vcmp.gt.f32.partialorder %v730, 0.5
      %v732 = vsel %vm731, 1, 0
      %v733 = vlaneseq
      %v734 = vshrl.u32 %v733, 7
      %v735 = vsub.s32 0, %v734
      %v736 = vrot.slane %v732, %v735
      %vm737 = vcmp.eq.s32.totalorder %v736, 1
      %v738 = vsel %vm737, %v727, 0.0
      %v739 = vsel %vm737, %v728, 0.0
      %v740 = vsel %vm737, %v729, 0.0
      %742 = vrot.lane.b32.xlu0 %v738, 11
      %v743 = vpop.permute.xlu0 %742
      %vm745 = vcmask 89088
      %v746 = vsel %vm745, 0.0, %v743
      %vm747 = vcmask 908288
      %v748 = vsel %vm747, %v746, 0.0
      %v749 = vpack.c.bf16 %v748, %v748
      %vm750 = vcmask 994304
      %751 = vst.msk [vmem:[%s497] sm:$0xf] %vm750, %v749
      %754 = vrot.lane.b32.xlu0 %v739, 11
      %v755 = vpop.permute.xlu0 %754
      %756 = vrot.lane.b32.xlu0 %v740, 11
      %v757 = vpop.permute.xlu0 %756
      %v760 = vsel %vm745, 0.0, %v755
      %v761 = vsel %vm745, 0.0, %v757
      %v762 = vsel %vm747, %v760, 0.0
      %v763 = vsel %vm747, %v761, 0.0
      %v764 = vpack.c.bf16 %v763, %v762
      %v766 = vunpack.c.l.b16 %v764
      %v767 = vunpack.c.h.b16 %v764
      %v768 = vpack.c.b16 %v766, %v766
      %v769 = vpack.c.b16 %v767, %v767
      %772 = vst.msk [vmem:[%s506] sm:$0xf] %vm750, %v768
      %773 = vst.msk [vmem:[%s506 + $0x4] sm:$0xf] %vm750, %v769
      %p774 = scmp.lt.s32.totalorder %s23, 1
      %s775 = scalar_select %p774, %s23, 1
      %p776 = scmp.lt.s32.totalorder %s24, 5
      %s777 = scalar_select %p776, %s24, 5
      %s778 = smul.addr %s775, 6
      %s779 = sadd.s32 %s777, %s778
      %s780 = smul.addr %s779, 4
      %s781 = scalar_lea.vmem %s6, %s780
      %p782 = scmp.lt.s32.totalorder %s23, 1
      %s783 = scalar_select %p782, %s23, 1
      %p784 = scmp.lt.s32.totalorder %s24, 5
      %s785 = scalar_select %p784, %s24, 5
      %s786 = smul.addr %s785, 2
      %s787 = smul.addr %s783, 12
      %s788 = sadd.s32 %s786, %s787
      %s789 = smul.addr %s788, 4
      %s790 = scalar_lea.vmem %s7, %s789
      // Predicated region
      $region45: #{inception_v4_forward.3} parent=43 // pred_check
        %p791 = pneg %p231
      $region46: #{inception_v4_forward.3} parent=43 // pred_check_branch
        %793 = sbr.rel (%p791) target = $region48
      $region47: #{inception_v4_forward.3} parent=43 // pred_region
        _
      $region48: #{inception_v4_forward.3} parent=43 // pred_fallthru
        _
      // Predicated region
      $region49: #{inception_v4_forward.3} parent=43 // pred_check
        %p794 = pneg %p259
      $region50: #{inception_v4_forward.3} parent=43 // pred_check_branch
        %796 = sbr.rel (%p794) target = $region52
      $region51: #{inception_v4_forward.3} parent=43 // pred_region
        _
      $region52: #{inception_v4_forward.3} parent=43 // pred_fallthru
        _
    $region44: #{inception_v4_forward.3} parent=5 // pred_fallthru
      _
    %p797 = scmp.le.s32.totalorder 2, %s14
    // Predicated region
    $region53: #{inception_v4_forward.3} parent=5 // pred_check
      %p798 = pneg %p797
    $region54: #{inception_v4_forward.3} parent=5 // pred_check_branch
      %800 = sbr.rel (%p798) target = $region56
    $region55: #{inception_v4_forward.3} parent=5 // pred_region
      %s801 = ssub.s32 %s14, 2
      // Predicated region
      $region57: #{inception_v4_forward.3} parent=55 // pred_check
        %p802 = pneg %p237
      $region58: #{inception_v4_forward.3} parent=55 // pred_check_branch
        %804 = sbr.rel (%p802) target = $region60
      $region59: #{inception_v4_forward.3} parent=55 // pred_region
        %p805 = scmp.lt.s32.totalorder %s25, 1
        %s806 = scalar_select %p805, %s25, 1
        %p807 = scmp.lt.s32.totalorder %s26, 5
        %s808 = scalar_select %p807, %s26, 5
        %s809 = smul.addr %s806, 6
        %s810 = sadd.s32 %s808, %s809
        %s811 = smul.addr %s810, 4
        %s812 = scalar_lea.vmem %s6, %s811
      $region60: #{inception_v4_forward.3} parent=55 // pred_fallthru
        _
      // Predicated region
      $region61: #{inception_v4_forward.3} parent=55 // pred_check
        %p813 = pneg %p265
      $region62: #{inception_v4_forward.3} parent=55 // pred_check_branch
        %815 = sbr.rel (%p813) target = $region64
      $region63: #{inception_v4_forward.3} parent=55 // pred_region
        %p816 = scmp.lt.s32.totalorder %s25, 1
        %s817 = scalar_select %p816, %s25, 1
        %p818 = scmp.lt.s32.totalorder %s26, 5
        %s819 = scalar_select %p818, %s26, 5
        %s820 = smul.addr %s819, 2
        %s821 = smul.addr %s817, 12
        %s822 = sadd.s32 %s820, %s821
        %s823 = smul.addr %s822, 4
        %s824 = scalar_lea.vmem %s7, %s823
      $region64: #{inception_v4_forward.3} parent=55 // pred_fallthru
        _
    $region56: #{inception_v4_forward.3} parent=5 // pred_fallthru
      _
  $region6: #{inception_v4_forward.3} parent=0 // loop_footer
    %s18 = sadd.s32 1, %s14
  $region7: #{inception_v4_forward.3} parent=0 // loop_footer_branch
    %13 = sbr.rel target = $region3
  $region8: #{inception_v4_forward.3} parent=0 // loop_exit
    _

// kernel: inception_v4_forward.4
$region0: #{inception_v4_forward.4}
  #allocation0 [shape = 'u32[]', space=smem, size = 0x4, offset = 0x4, fixed_abs, tag = 'smem constant byte address 0x4 - core index']
  #allocation1 [shape = 'u32[144,128]{1,0:T(1,128)}', space=vmem, size = 0x12000, scoped, tag = 'internal scratch']
  %s0 = inlined_call_operand.vmem [shape: bf16[16,432], index: 0, kind: input, shape index: {}]
  %s1 = inlined_call_operand.vmem [shape: f32[16,1], index: 1, kind: input, shape index: {}]
  %s2 = inlined_call_operand.vmem [shape: f32[6,1,100], index: 2, kind: input, shape index: {}]
  %s3 = inlined_call_operand.vmem [shape: bf16[2,6,16,122], index: 3, kind: input, shape index: {}, may-alias: {3,4,5}]
  %s4 = inlined_call_operand.vmem [shape: bf16[2,6,16,122], index: 4, kind: input, shape index: {}, may-alias: {3,4,5}]
  %s5 = inlined_call_operand.vmem [shape: bf16[2,6,16,122], index: 5, kind: input, shape index: {}, may-alias: {3,4,5}]
  %s6 = inlined_call_operand.vmem [shape: bf16[2,6,16,122], index: 6, kind: output, shape index: {}]
  %s7 = sld [smem:[#allocation0]]
  $region57: #{inception_v4_forward.4} parent=0
    _
  %s9 = ssub.s32 1, %s7
  %s10 = scalar_select 0, %s9, %s7
  loop: start=0, step=1, limit=14
  $region2: #{inception_v4_forward.4} parent=0 // loop_pre_header
    _
  $region3: #{inception_v4_forward.4} parent=0 // loop_header
    %s12 = sphi 0, %s16
    %p13 = scmp.ge.s32.totalorder %s12, 14
    %s19 = sphi 0, %s31
    %s20 = sphi 0, %s27
    %s21 = sphi 0, %s19
    %s22 = sphi 0, %s20
    %s23 = sphi 0, %s21
    %s24 = sphi 0, %s22
    %s32 = sphi 0, %s32
    %s34 = sphi 0, %s32
    %s35 = sphi 0, %s34
    %s49 = sphi 0, %s35
    %s53 = sphi 0, %s53
    %s55 = sphi 0, %s53
    %s56 = sphi 0, %s55
    %s70 = sphi 0, %s56
    %s76 = sphi 0, %s78
    %s79 = sphi 0, %s76
    %s80 = sphi 0, %s79
    %s96 = sphi 0, %s80
    %s114 = sphi 0, %s116
    %s117 = sphi 0, %s114
    %s118 = sphi 0, %s117
    %s134 = sphi 0, %s118
    %s150 = sphi 0, %s152
    %s153 = sphi 0, %s150
    %s154 = sphi 0, %s153
    %s170 = sphi 0, %s154
    %s188 = sphi 0, %s190
    %s191 = sphi 0, %s188
    %s192 = sphi 0, %s191
    %s208 = sphi 0, %s192
    %s216 = sphi 0, %s218
    %s219 = sphi 0, %s216
    %s220 = sphi 0, %s219
    %s236 = sphi 0, %s220
  $region4: #{inception_v4_forward.4} parent=0 // loop_header_branch
    %15 = sbr.rel (%p13) target = $region8
  $region5: #{inception_v4_forward.4} parent=0 // loop_body
    %s17 = ssub.s32 %s12, 1
    %s18 = ssub.s32 %s12, 2
    %s25 = sadd.s32 1, %s20
    %p26 = scmp.ge.s32.totalorder %s25, 6
    %s27 = scalar_select %p26, 0, %s25
    %s28 = sadd.s32 1, %s19
    %s29 = scalar_select %p26, %s28, %s19
    %p30 = scmp.ge.s32.totalorder %s29, 2
    %s31 = scalar_select %p30, 0, %s29
    %s33 = sadd.s32 %s32, 1
    %p36 = scmp.eq.s32.totalorder %s12, 11
    %p37 = scmp.ne.s32.totalorder %s32, %s34
    %p38 = scmp.eq.s32.totalorder %s12, 0
    %p39 = por %p37, %p38
    %p40 = scmp.ne.s32.totalorder %s32, %s34
    %p41 = scmp.eq.s32.totalorder %s17, 11
    %p42 = por %p40, %p41
    %p43 = scmp.ne.s32.totalorder %s34, %s35
    %p44 = scmp.eq.s32.totalorder %s17, 0
    %p45 = por %p43, %p44
    %p46 = scmp.ne.s32.totalorder %s34, %s35
    %p47 = scmp.eq.s32.totalorder %s18, 11
    %p48 = por %p46, %p47
    %p50 = scmp.ne.s32.totalorder %s35, %s49
    %p51 = scmp.eq.s32.totalorder %s18, 0
    %p52 = por %p50, %p51
    %s54 = sadd.s32 %s53, 1
    %p57 = scmp.eq.s32.totalorder %s12, 11
    %p58 = scmp.ne.s32.totalorder %s53, %s55
    %p59 = scmp.eq.s32.totalorder %s12, 0
    %p60 = por %p58, %p59
    %p61 = scmp.ne.s32.totalorder %s53, %s55
    %p62 = scmp.eq.s32.totalorder %s17, 11
    %p63 = por %p61, %p62
    %p64 = scmp.ne.s32.totalorder %s55, %s56
    %p65 = scmp.eq.s32.totalorder %s17, 0
    %p66 = por %p64, %p65
    %p67 = scmp.ne.s32.totalorder %s55, %s56
    %p68 = scmp.eq.s32.totalorder %s18, 11
    %p69 = por %p67, %p68
    %p71 = scmp.ne.s32.totalorder %s56, %s70
    %p72 = scmp.eq.s32.totalorder %s18, 0
    %p73 = por %p71, %p72
    %s74 = ssub.s32 %s20, %s27
    %p75 = scmp.eq.s32.totalorder %s74, 0
    %s77 = sadd.s32 %s76, 1
    %s78 = scalar_select %p75, %s76, %s77
    %p81 = pneg %p75
    %p82 = scmp.eq.s32.totalorder %s12, 11
    %p83 = por %p81, %p82
    %p84 = scmp.ne.s32.totalorder %s76, %s79
    %p85 = scmp.eq.s32.totalorder %s12, 0
    %p86 = por %p84, %p85
    %p87 = scmp.ne.s32.totalorder %s76, %s79
    %p88 = scmp.eq.s32.totalorder %s17, 11
    %p89 = por %p87, %p88
    %p90 = scmp.ne.s32.totalorder %s79, %s80
    %p91 = scmp.eq.s32.totalorder %s17, 0
    %p92 = por %p90, %p91
    %p93 = scmp.ne.s32.totalorder %s79, %s80
    %p94 = scmp.eq.s32.totalorder %s18, 11
    %p95 = por %p93, %p94
    %p97 = scmp.ne.s32.totalorder %s80, %s96
    %p98 = scmp.eq.s32.totalorder %s18, 0
    %p99 = por %p97, %p98
    %s100 = sadd.s32 %s20, 4294967295
    %p101 = scmp.gt.s32.totalorder %s100, 0
    %s102 = scalar_select %p101, %s100, 0
    %p103 = scmp.lt.s32.totalorder %s102, 5
    %s104 = scalar_select %p103, %s102, 5
    %s105 = sadd.s32 %s27, 4294967295
    %p106 = scmp.gt.s32.totalorder %s105, 0
    %s107 = scalar_select %p106, %s105, 0
    %p108 = scmp.lt.s32.totalorder %s107, 5
    %s109 = scalar_select %p108, %s107, 5
    %s110 = ssub.s32 %s19, %s31
    %s111 = ssub.s32 %s104, %s109
    %s112 = sor.u32 %s110, %s111
    %p113 = scmp.eq.s32.totalorder %s112, 0
    %s115 = sadd.s32 %s114, 1
    %s116 = scalar_select %p113, %s114, %s115
    %p119 = pneg %p113
    %p120 = scmp.eq.s32.totalorder %s12, 11
    %p121 = por %p119, %p120
    %p122 = scmp.ne.s32.totalorder %s114, %s117
    %p123 = scmp.eq.s32.totalorder %s12, 0
    %p124 = por %p122, %p123
    %p125 = scmp.ne.s32.totalorder %s114, %s117
    %p126 = scmp.eq.s32.totalorder %s17, 11
    %p127 = por %p125, %p126
    %p128 = scmp.ne.s32.totalorder %s117, %s118
    %p129 = scmp.eq.s32.totalorder %s17, 0
    %p130 = por %p128, %p129
    %p131 = scmp.ne.s32.totalorder %s117, %s118
    %p132 = scmp.eq.s32.totalorder %s18, 11
    %p133 = por %p131, %p132
    %p135 = scmp.ne.s32.totalorder %s118, %s134
    %p136 = scmp.eq.s32.totalorder %s18, 0
    %p137 = por %p135, %p136
    %p138 = scmp.gt.s32.totalorder %s20, 0
    %s139 = scalar_select %p138, %s20, 0
    %p140 = scmp.lt.s32.totalorder %s139, 5
    %s141 = scalar_select %p140, %s139, 5
    %p142 = scmp.gt.s32.totalorder %s27, 0
    %s143 = scalar_select %p142, %s27, 0
    %p144 = scmp.lt.s32.totalorder %s143, 5
    %s145 = scalar_select %p144, %s143, 5
    %s146 = ssub.s32 %s19, %s31
    %s147 = ssub.s32 %s141, %s145
    %s148 = sor.u32 %s146, %s147
    %p149 = scmp.eq.s32.totalorder %s148, 0
    %s151 = sadd.s32 %s150, 1
    %s152 = scalar_select %p149, %s150, %s151
    %p155 = pneg %p149
    %p156 = scmp.eq.s32.totalorder %s12, 11
    %p157 = por %p155, %p156
    %p158 = scmp.ne.s32.totalorder %s150, %s153
    %p159 = scmp.eq.s32.totalorder %s12, 0
    %p160 = por %p158, %p159
    %p161 = scmp.ne.s32.totalorder %s150, %s153
    %p162 = scmp.eq.s32.totalorder %s17, 11
    %p163 = por %p161, %p162
    %p164 = scmp.ne.s32.totalorder %s153, %s154
    %p165 = scmp.eq.s32.totalorder %s17, 0
    %p166 = por %p164, %p165
    %p167 = scmp.ne.s32.totalorder %s153, %s154
    %p168 = scmp.eq.s32.totalorder %s18, 11
    %p169 = por %p167, %p168
    %p171 = scmp.ne.s32.totalorder %s154, %s170
    %p172 = scmp.eq.s32.totalorder %s18, 0
    %p173 = por %p171, %p172
    %s174 = sadd.s32 %s20, 1
    %p175 = scmp.gt.s32.totalorder %s174, 0
    %s176 = scalar_select %p175, %s174, 0
    %p177 = scmp.lt.s32.totalorder %s176, 5
    %s178 = scalar_select %p177, %s176, 5
    %s179 = sadd.s32 %s27, 1
    %p180 = scmp.gt.s32.totalorder %s179, 0
    %s181 = scalar_select %p180, %s179, 0
    %p182 = scmp.lt.s32.totalorder %s181, 5
    %s183 = scalar_select %p182, %s181, 5
    %s184 = ssub.s32 %s19, %s31
    %s185 = ssub.s32 %s178, %s183
    %s186 = sor.u32 %s184, %s185
    %p187 = scmp.eq.s32.totalorder %s186, 0
    %s189 = sadd.s32 %s188, 1
    %s190 = scalar_select %p187, %s188, %s189
    %p193 = pneg %p187
    %p194 = scmp.eq.s32.totalorder %s12, 11
    %p195 = por %p193, %p194
    %p196 = scmp.ne.s32.totalorder %s188, %s191
    %p197 = scmp.eq.s32.totalorder %s12, 0
    %p198 = por %p196, %p197
    %p199 = scmp.ne.s32.totalorder %s188, %s191
    %p200 = scmp.eq.s32.totalorder %s17, 11
    %p201 = por %p199, %p200
    %p202 = scmp.ne.s32.totalorder %s191, %s192
    %p203 = scmp.eq.s32.totalorder %s17, 0
    %p204 = por %p202, %p203
    %p205 = scmp.ne.s32.totalorder %s191, %s192
    %p206 = scmp.eq.s32.totalorder %s18, 11
    %p207 = por %p205, %p206
    %p209 = scmp.ne.s32.totalorder %s192, %s208
    %p210 = scmp.eq.s32.totalorder %s18, 0
    %p211 = por %p209, %p210
    %s212 = ssub.s32 %s19, %s31
    %s213 = ssub.s32 %s20, %s27
    %s214 = sor.u32 %s212, %s213
    %p215 = scmp.eq.s32.totalorder %s214, 0
    %s217 = sadd.s32 %s216, 1
    %s218 = scalar_select %p215, %s216, %s217
    %p221 = pneg %p215
    %p222 = scmp.eq.s32.totalorder %s12, 11
    %p223 = por %p221, %p222
    %p224 = scmp.ne.s32.totalorder %s216, %s219
    %p225 = scmp.eq.s32.totalorder %s12, 0
    %p226 = por %p224, %p225
    %p227 = scmp.ne.s32.totalorder %s216, %s219
    %p228 = scmp.eq.s32.totalorder %s17, 11
    %p229 = por %p227, %p228
    %p230 = scmp.ne.s32.totalorder %s219, %s220
    %p231 = scmp.eq.s32.totalorder %s17, 0
    %p232 = por %p230, %p231
    %p233 = scmp.ne.s32.totalorder %s219, %s220
    %p234 = scmp.eq.s32.totalorder %s18, 11
    %p235 = por %p233, %p234
    %p237 = scmp.ne.s32.totalorder %s220, %s236
    %p238 = scmp.eq.s32.totalorder %s18, 0
    %p239 = por %p237, %p238
    %p240 = scmp.le.s32.totalorder 1, %s12
    %p241 = scmp.lt.s32.totalorder %s12, 13
    %p242 = pnand %p240, %p241
    %p243 = pneg %p242
    // Predicated region
    $region9: #{inception_v4_forward.4} parent=5 // pred_check
      _
    $region10: #{inception_v4_forward.4} parent=5 // pred_check_branch
      %245 = sbr.rel (%p242) target = $region12
    $region11: #{inception_v4_forward.4} parent=5 // pred_region
      %s246 = ssub.s32 %s12, 1
      // Predicated region
      $region13: #{inception_v4_forward.4} parent=11 // pred_check
        %p247 = pneg %p45
      $region14: #{inception_v4_forward.4} parent=11 // pred_check_branch
        %249 = sbr.rel (%p247) target = $region16
      $region15: #{inception_v4_forward.4} parent=11 // pred_region
        _
      $region16: #{inception_v4_forward.4} parent=11 // pred_fallthru
        _
      // Predicated region
      $region17: #{inception_v4_forward.4} parent=11 // pred_check
        %p250 = pneg %p66
      $region18: #{inception_v4_forward.4} parent=11 // pred_check_branch
        %252 = sbr.rel (%p250) target = $region20
      $region19: #{inception_v4_forward.4} parent=11 // pred_region
        _
      $region20: #{inception_v4_forward.4} parent=11 // pred_fallthru
        _
    $region12: #{inception_v4_forward.4} parent=5 // pred_fallthru
      _
    %p253 = scmp.lt.s32.totalorder %s12, 12
    // Predicated region
    $region21: #{inception_v4_forward.4} parent=5 // pred_check
      %p254 = pneg %p253
    $region22: #{inception_v4_forward.4} parent=5 // pred_check_branch
      %256 = sbr.rel (%p254) target = $region24
    $region23: #{inception_v4_forward.4} parent=5 // pred_region
      // Predicated region
      $region25: #{inception_v4_forward.4} parent=23 // pred_check
        %p257 = pneg %p86
      $region26: #{inception_v4_forward.4} parent=23 // pred_check_branch
        %259 = sbr.rel (%p257) target = $region28
      $region27: #{inception_v4_forward.4} parent=23 // pred_region
        %p260 = scmp.lt.s32.totalorder %s20, 5
        %s261 = scalar_select %p260, %s20, 5
        %s262 = scalar_lea.vmem %s2, %s261
      $region28: #{inception_v4_forward.4} parent=23 // pred_fallthru
        _
      // Predicated region
      $region29: #{inception_v4_forward.4} parent=23 // pred_check
        %p263 = pneg %p124
      $region30: #{inception_v4_forward.4} parent=23 // pred_check_branch
        %265 = sbr.rel (%p263) target = $region32
      $region31: #{inception_v4_forward.4} parent=23 // pred_region
        %s266 = sadd.s32 %s20, 4294967295
        %p267 = scmp.gt.s32.totalorder %s266, 0
        %s268 = scalar_select %p267, %s266, 0
        %p269 = scmp.lt.s32.totalorder %s268, 5
        %s270 = scalar_select %p269, %s268, 5
        %p271 = scmp.lt.s32.totalorder %s19, 1
        %s272 = scalar_select %p271, %s19, 1
        %p273 = scmp.lt.s32.totalorder %s270, 5
        %s274 = scalar_select %p273, %s270, 5
        %s275 = smul.addr %s274, 2
        %s276 = smul.addr %s272, 12
        %s277 = sadd.s32 %s275, %s276
        %s278 = smul.addr %s277, 4
        %s279 = scalar_lea.vmem %s3, %s278
        %s280 = sadd.s32 %s20, 4294967295
        %p281 = scmp.gt.s32.totalorder %s280, 0
        %s282 = scalar_select %p281, %s280, 0
        %p283 = scmp.lt.s32.totalorder %s282, 5
        %s284 = scalar_select %p283, %s282, 5
      $region32: #{inception_v4_forward.4} parent=23 // pred_fallthru
        _
      // Predicated region
      $region33: #{inception_v4_forward.4} parent=23 // pred_check
        %p285 = pneg %p160
      $region34: #{inception_v4_forward.4} parent=23 // pred_check_branch
        %287 = sbr.rel (%p285) target = $region36
      $region35: #{inception_v4_forward.4} parent=23 // pred_region
        %p288 = scmp.gt.s32.totalorder %s20, 0
        %s289 = scalar_select %p288, %s20, 0
        %p290 = scmp.lt.s32.totalorder %s289, 5
        %s291 = scalar_select %p290, %s289, 5
        %p292 = scmp.lt.s32.totalorder %s19, 1
        %s293 = scalar_select %p292, %s19, 1
        %p294 = scmp.lt.s32.totalorder %s291, 5
        %s295 = scalar_select %p294, %s291, 5
        %s296 = smul.addr %s295, 2
        %s297 = smul.addr %s293, 12
        %s298 = sadd.s32 %s296, %s297
        %s299 = smul.addr %s298, 4
        %s300 = scalar_lea.vmem %s4, %s299
        %p301 = scmp.gt.s32.totalorder %s20, 0
        %s302 = scalar_select %p301, %s20, 0
        %p303 = scmp.lt.s32.totalorder %s302, 5
        %s304 = scalar_select %p303, %s302, 5
      $region36: #{inception_v4_forward.4} parent=23 // pred_fallthru
        _
      // Predicated region
      $region37: #{inception_v4_forward.4} parent=23 // pred_check
        %p305 = pneg %p198
      $region38: #{inception_v4_forward.4} parent=23 // pred_check_branch
        %307 = sbr.rel (%p305) target = $region40
      $region39: #{inception_v4_forward.4} parent=23 // pred_region
        %s308 = sadd.s32 %s20, 1
        %p309 = scmp.gt.s32.totalorder %s308, 0
        %s310 = scalar_select %p309, %s308, 0
        %p311 = scmp.lt.s32.totalorder %s310, 5
        %s312 = scalar_select %p311, %s310, 5
        %p313 = scmp.lt.s32.totalorder %s19, 1
        %s314 = scalar_select %p313, %s19, 1
        %p315 = scmp.lt.s32.totalorder %s312, 5
        %s316 = scalar_select %p315, %s312, 5
        %s317 = smul.addr %s316, 2
        %s318 = smul.addr %s314, 12
        %s319 = sadd.s32 %s317, %s318
        %s320 = smul.addr %s319, 4
        %s321 = scalar_lea.vmem %s5, %s320
        %s322 = sadd.s32 %s20, 1
        %p323 = scmp.gt.s32.totalorder %s322, 0
        %s324 = scalar_select %p323, %s322, 0
        %p325 = scmp.lt.s32.totalorder %s324, 5
        %s326 = scalar_select %p325, %s324, 5
      $region40: #{inception_v4_forward.4} parent=23 // pred_fallthru
        _
    $region24: #{inception_v4_forward.4} parent=5 // pred_fallthru
      _
    %p327 = scmp.le.s32.totalorder 1, %s12
    %p328 = scmp.lt.s32.totalorder %s12, 13
    %p329 = pnand %p327, %p328
    %p330 = pneg %p329
    // Predicated region
    $region41: #{inception_v4_forward.4} parent=5 // pred_check
      _
    $region42: #{inception_v4_forward.4} parent=5 // pred_check_branch
      %332 = sbr.rel (%p329) target = $region44
    $region43: #{inception_v4_forward.4} parent=5 // pred_region
      %s333 = ssub.s32 %s12, 1
      %p334 = pneg %p45
      %p335 = pneg %p42
      %p336 = pneg %p66
      %p337 = pneg %p63
      %p338 = scmp.lt.s32.totalorder %s22, 5
      %s339 = scalar_select %p338, %s22, 5
      %s340 = scalar_lea.vmem %s2, %s339
      %p341 = pneg %p92
      %p342 = pneg %p89
      %s343 = sadd.s32 %s22, 4294967295
      %p344 = scmp.gt.s32.totalorder %s343, 0
      %s345 = scalar_select %p344, %s343, 0
      %p346 = scmp.lt.s32.totalorder %s345, 5
      %s347 = scalar_select %p346, %s345, 5
      %p348 = scmp.lt.s32.totalorder %s21, 1
      %s349 = scalar_select %p348, %s21, 1
      %p350 = scmp.lt.s32.totalorder %s347, 5
      %s351 = scalar_select %p350, %s347, 5
      %s352 = smul.addr %s351, 2
      %s353 = smul.addr %s349, 12
      %s354 = sadd.s32 %s352, %s353
      %s355 = smul.addr %s354, 4
      %s356 = scalar_lea.vmem %s3, %s355
      %p357 = pneg %p130
      %p358 = pneg %p127
      %p359 = scmp.gt.s32.totalorder %s22, 0
      %s360 = scalar_select %p359, %s22, 0
      %p361 = scmp.lt.s32.totalorder %s360, 5
      %s362 = scalar_select %p361, %s360, 5
      %p363 = scmp.lt.s32.totalorder %s21, 1
      %s364 = scalar_select %p363, %s21, 1
      %p365 = scmp.lt.s32.totalorder %s362, 5
      %s366 = scalar_select %p365, %s362, 5
      %s367 = smul.addr %s366, 2
      %s368 = smul.addr %s364, 12
      %s369 = sadd.s32 %s367, %s368
      %s370 = smul.addr %s369, 4
      %s371 = scalar_lea.vmem %s4, %s370
      %p372 = pneg %p166
      %p373 = pneg %p163
      %s374 = sadd.s32 %s22, 1
      %p375 = scmp.gt.s32.totalorder %s374, 0
      %s376 = scalar_select %p375, %s374, 0
      %p377 = scmp.lt.s32.totalorder %s376, 5
      %s378 = scalar_select %p377, %s376, 5
      %p379 = scmp.lt.s32.totalorder %s21, 1
      %s380 = scalar_select %p379, %s21, 1
      %p381 = scmp.lt.s32.totalorder %s378, 5
      %s382 = scalar_select %p381, %s378, 5
      %s383 = smul.addr %s382, 2
      %s384 = smul.addr %s380, 12
      %s385 = sadd.s32 %s383, %s384
      %s386 = smul.addr %s385, 4
      %s387 = scalar_lea.vmem %s5, %s386
      %p388 = pneg %p204
      %p389 = pneg %p201
      %p390 = pneg %p232
      %p391 = pneg %p229
      %p392 = scmp.lt.s32.totalorder %s21, 1
      %s393 = scalar_select %p392, %s21, 1
      %p394 = scmp.lt.s32.totalorder %s22, 5
      %s395 = scalar_select %p394, %s22, 5
      %s396 = smul.addr %s395, 2
      %s397 = smul.addr %s393, 12
      %s398 = sadd.s32 %s396, %s397
      %s399 = smul.addr %s398, 4
      %s400 = scalar_lea.vmem %s6, %s399
      %p401 = scmp.lt.s32.totalorder %s22, 5
      %s402 = scalar_select %p401, %s22, 5
      %s403 = scalar_lea.vmem %s2, %s402
      %s404 = sadd.s32 %s22, 4294967295
      %p405 = scmp.gt.s32.totalorder %s404, 0
      %s406 = scalar_select %p405, %s404, 0
      %p407 = scmp.lt.s32.totalorder %s406, 5
      %s408 = scalar_select %p407, %s406, 5
      %p409 = scmp.lt.s32.totalorder %s21, 1
      %s410 = scalar_select %p409, %s21, 1
      %p411 = scmp.lt.s32.totalorder %s408, 5
      %s412 = scalar_select %p411, %s408, 5
      %s413 = smul.addr %s412, 2
      %s414 = smul.addr %s410, 12
      %s415 = sadd.s32 %s413, %s414
      %s416 = smul.addr %s415, 4
      %s417 = scalar_lea.vmem %s3, %s416
      %s418 = sadd.s32 %s22, 4294967295
      %p419 = scmp.gt.s32.totalorder %s418, 0
      %s420 = scalar_select %p419, %s418, 0
      %p421 = scmp.lt.s32.totalorder %s420, 5
      %s422 = scalar_select %p421, %s420, 5
      %p423 = scmp.gt.s32.totalorder %s22, 0
      %s424 = scalar_select %p423, %s22, 0
      %p425 = scmp.lt.s32.totalorder %s424, 5
      %s426 = scalar_select %p425, %s424, 5
      %p427 = scmp.lt.s32.totalorder %s21, 1
      %s428 = scalar_select %p427, %s21, 1
      %p429 = scmp.lt.s32.totalorder %s426, 5
      %s430 = scalar_select %p429, %s426, 5
      %s431 = smul.addr %s430, 2
      %s432 = smul.addr %s428, 12
      %s433 = sadd.s32 %s431, %s432
      %s434 = smul.addr %s433, 4
      %s435 = scalar_lea.vmem %s4, %s434
      %p436 = scmp.gt.s32.totalorder %s22, 0
      %s437 = scalar_select %p436, %s22, 0
      %p438 = scmp.lt.s32.totalorder %s437, 5
      %s439 = scalar_select %p438, %s437, 5
      %s440 = sadd.s32 %s22, 1
      %p441 = scmp.gt.s32.totalorder %s440, 0
      %s442 = scalar_select %p441, %s440, 0
      %p443 = scmp.lt.s32.totalorder %s442, 5
      %s444 = scalar_select %p443, %s442, 5
      %p445 = scmp.lt.s32.totalorder %s21, 1
      %s446 = scalar_select %p445, %s21, 1
      %p447 = scmp.lt.s32.totalorder %s444, 5
      %s448 = scalar_select %p447, %s444, 5
      %s449 = smul.addr %s448, 2
      %s450 = smul.addr %s446, 12
      %s451 = sadd.s32 %s449, %s450
      %s452 = smul.addr %s451, 4
      %s453 = scalar_lea.vmem %s5, %s452
      %s454 = sadd.s32 %s22, 1
      %p455 = scmp.gt.s32.totalorder %s454, 0
      %s456 = scalar_select %p455, %s454, 0
      %p457 = scmp.lt.s32.totalorder %s456, 5
      %s458 = scalar_select %p457, %s456, 5
      %p459 = scmp.lt.s32.totalorder %s21, 1
      %s460 = scalar_select %p459, %s21, 1
      %p461 = scmp.lt.s32.totalorder %s22, 5
      %s462 = scalar_select %p461, %s22, 5
      %s463 = smul.addr %s462, 2
      %s464 = smul.addr %s460, 12
      %s465 = sadd.s32 %s463, %s464
      %s466 = smul.addr %s465, 4
      %s467 = scalar_lea.vmem %s6, %s466
      %v469 = vld [vmem:[%s417] sm:$0xf]
      %v470 = vld [vmem:[%s417 + $0x4] sm:$0xf]
      %v471 = vld [vmem:[%s435] sm:$0xf]
      %v472 = vld [vmem:[%s435 + $0x4] sm:$0xf]
      %v473 = vld [vmem:[%s453] sm:$0xf]
      %v474 = vld [vmem:[%s453 + $0x4] sm:$0xf]
      %v477 = vunpack.c.l.b16 %v469
      %v478 = vunpack.c.l.b16 %v470
      %v479 = vpack.c.b16 %v478, %v477
      %481 = vrot.lane.b32.xlu0 %v479, 127
      %v482 = vpop.permute.xlu0 %481
      %484 = vrot.lane.b32.xlu0 %v479, 126
      %v485 = vpop.permute.xlu0 %484
      %487 = vrot.lane.b32.xlu0 %v479, 118
      %v488 = vpop.permute.xlu0 %487
      %490 = vrot.lane.b32.xlu0 %v479, 117
      %v491 = vpop.permute.xlu0 %490
      %493 = vrot.lane.b32.xlu0 %v479, 116
      %v494 = vpop.permute.xlu0 %493
      %496 = vrot.lane.b32.xlu0 %v479, 108
      %v497 = vpop.permute.xlu0 %496
      %499 = vrot.lane.b32.xlu0 %v479, 107
      %v500 = vpop.permute.xlu0 %499
      %502 = vrot.lane.b32.xlu0 %v479, 106
      %v503 = vpop.permute.xlu0 %502
      %v507 = vunpack.c.l.b16 %v471
      %v508 = vunpack.c.l.b16 %v472
      %v509 = vpack.c.b16 %v508, %v507
      %511 = vrot.lane.b32.xlu0 %v509, 127
      %v512 = vpop.permute.xlu0 %511
      %514 = vrot.lane.b32.xlu0 %v509, 126
      %v515 = vpop.permute.xlu0 %514
      %517 = vrot.lane.b32.xlu0 %v509, 118
      %v518 = vpop.permute.xlu0 %517
      %520 = vrot.lane.b32.xlu0 %v509, 117
      %v521 = vpop.permute.xlu0 %520
      %523 = vrot.lane.b32.xlu0 %v509, 116
      %v524 = vpop.permute.xlu0 %523
      %526 = vrot.lane.b32.xlu0 %v509, 108
      %v527 = vpop.permute.xlu0 %526
      %v531 = vunpack.c.l.b16 %v473
      %v532 = vunpack.c.l.b16 %v474
      %v533 = vpack.c.b16 %v532, %v531
      %534 = vrot.lane.b32.xlu0 %v533, 21
      %v535 = vpop.permute.xlu0 %534
      %536 = vrot.lane.b32.xlu0 %v533, 20
      %v537 = vpop.permute.xlu0 %536
      %538 = vrot.lane.b32.xlu0 %v533, 19
      %v539 = vpop.permute.xlu0 %538
      %540 = vrot.lane.b32.xlu0 %v533, 11
      %v541 = vpop.permute.xlu0 %540
      %542 = vrot.lane.b32.xlu0 %v533, 10
      %v543 = vpop.permute.xlu0 %542
      %544 = vrot.lane.b32.xlu0 %v533, 9
      %v545 = vpop.permute.xlu0 %544
      %546 = vrot.lane.b32.xlu0 %v533, 1
      %v547 = vpop.permute.xlu0 %546
      %548 = vrot.lane.b32.xlu0 %v533, 127
      %v549 = vpop.permute.xlu0 %548
      %550 = vrot.lane.b32.xlu0 %v509, 107
      %v551 = vpop.permute.xlu0 %550
      %552 = vrot.lane.b32.xlu0 %v512, 107
      %v553 = vpop.permute.xlu0 %552
      %554 = vrot.lane.b32.xlu0 %v535, 107
      %v555 = vpop.permute.xlu0 %554
      %556 = vrot.lane.b32.xlu0 %v537, 107
      %v557 = vpop.permute.xlu0 %556
      %558 = vrot.lane.b32.xlu0 %v539, 107
      %v559 = vpop.permute.xlu0 %558
      %560 = vrot.lane.b32.xlu0 %v541, 107
      %v561 = vpop.permute.xlu0 %560
      %562 = vrot.lane.b32.xlu0 %v543, 107
      %v563 = vpop.permute.xlu0 %562
      %564 = vrot.lane.b32.xlu0 %v545, 107
      %v565 = vpop.permute.xlu0 %564
      %566 = vrot.lane.b32.xlu0 %v547, 107
      %v567 = vpop.permute.xlu0 %566
      %568 = vrot.lane.b32.xlu0 %v533, 107
      %v569 = vpop.permute.xlu0 %568
      %570 = vrot.lane.b32.xlu0 %v549, 107
      %v571 = vpop.permute.xlu0 %570
      %v583 = vld [vmem:[%s0] sm:$0xff]
      %v584 = vld [vmem:[%s0 + $0x8] sm:$0xff]
      %v585 = vld [vmem:[%s0 + $0x10] sm:$0xff]
      %v586 = vld [vmem:[%s0 + $0x18] sm:$0xff]
      %v587 = vld [vmem:[%s1] sm:$0xff]
      %v588 = vld [vmem:[%s1 + $0x8] sm:$0xff]
      %590 = vset.pattern.permute.xlu0 0
      %591 = vperm.xlu0 %590, %v587
      %v592 = vpop.permute.xlu0 %591
      %595 = vset.pattern.permute.xlu0 0
      %596 = vperm.xlu0 %595, %v588
      %v597 = vpop.permute.xlu0 %596
      %v603 = vunpack.c.l.b16 %v583
      %v604 = vunpack.c.h.b16 %v583
      %v605 = vunpack.c.l.b16 %v584
      %v606 = vunpack.c.h.b16 %v584
      %v607 = vunpack.c.l.b16 %v585
      %v608 = vunpack.c.h.b16 %v585
      %v609 = vunpack.c.l.b16 %v586
      %v610 = vunpack.c.h.b16 %v586
      %v611 = vpack.c.b16 %v607, %v603
      %v612 = vpack.c.b16 %v608, %v604
      %v613 = vpack.c.b16 %v609, %v605
      %v614 = vpack.c.b16 %v610, %v606
      %vm618 = vcmask 392192
      %v620 = vsel %vm618, %v614, 0
      %622 = vmatprep.subr.bf16.mxu0 0
      %623 = vmatpush1.bf16.msra.mxu0 %v479
      %624 = vmatprep.subr.bf16.mxu0 0
      %625 = vmatpush1.bf16.msra.mxu0 %v482
      %626 = vmatprep.subr.bf16.mxu0 0
      %627 = vmatpush1.bf16.msra.mxu0 %v485
      %628 = vmatprep.subr.bf16.mxu0 0
      %629 = vmatpush1.bf16.msra.mxu0 %v488
      %630 = vmatprep.subr.bf16.mxu0 0
      %631 = vmatpush1.bf16.msra.mxu0 %v491
      %632 = vmatprep.subr.bf16.mxu0 0
      %633 = vmatpush1.bf16.msra.mxu0 %v494
      %634 = vmatprep.subr.bf16.mxu0 0
      %635 = vmatpush1.bf16.msra.mxu0 %v497
      %636 = vmatprep.subr.bf16.mxu0 0
      %637 = vmatpush1.bf16.msra.mxu0 %v500
      %638 = vmatprep.subr.bf16.mxu0 0
      %639 = vmatpush1.bf16.msra.mxu0 %v503
      %640 = vmatprep.subr.bf16.mxu0 0
      %641 = vmatpush1.bf16.msra.mxu0 %v509
      %642 = vmatprep.subr.bf16.mxu0 0
      %643 = vmatpush1.bf16.msra.mxu0 %v512
      %644 = vmatprep.subr.bf16.mxu0 0
      %645 = vmatpush1.bf16.msra.mxu0 %v515
      %646 = vmatprep.subr.bf16.mxu0 0
      %647 = vmatpush1.bf16.msra.mxu0 %v518
      %648 = vmatprep.subr.bf16.mxu0 0
      %649 = vmatpush1.bf16.msra.mxu0 %v521
      %650 = vmatprep.subr.bf16.mxu0 0
      %651 = vmatpush1.bf16.msra.mxu0 %v524
      %652 = vmatprep.subr.bf16.mxu0 0
      %653 = vmatpush1.bf16.msra.mxu0 %v527
      %654 = vmatprep.mubr.bf16.mxu0 %v612
      %655 = vmatmul.mubr.bf16.gmra.mrb[0].mxu0 %v611
      %v656 = vpop.f32.mrb[0].mxu0
      %v657 = vadd.f32 %v592, %v656
      %v658 = vpop.f32.mrb[0].mxu0
      %v659 = vpop.f32.mrb[0].mxu0
      %v660 = vadd.f32 %v597, %v659
      %v661 = vpop.f32.mrb[0].mxu0
      %662 = vdwg.mxu0
      %663 = vmatprep.subr.bf16.mxu0 0
      %664 = vmatpush1.bf16.msra.mxu0 %v551
      %665 = vmatprep.subr.bf16.mxu0 0
      %666 = vmatpush1.bf16.msra.mxu0 %v553
      %667 = vmatprep.subr.bf16.mxu0 0
      %668 = vmatpush1.bf16.msra.mxu0 %v555
      %669 = vmatprep.subr.bf16.mxu0 0
      %670 = vmatpush1.bf16.msra.mxu0 %v557
      %671 = vmatprep.subr.bf16.mxu0 0
      %672 = vmatpush1.bf16.msra.mxu0 %v559
      %673 = vmatprep.subr.bf16.mxu0 0
      %674 = vmatpush1.bf16.msra.mxu0 %v561
      %675 = vmatprep.subr.bf16.mxu0 0
      %676 = vmatpush1.bf16.msra.mxu0 %v563
      %677 = vmatprep.subr.bf16.mxu0 0
      %678 = vmatpush1.bf16.msra.mxu0 %v565
      %679 = vmatprep.subr.bf16.mxu0 0
      %680 = vmatpush1.bf16.msra.mxu0 %v567
      %681 = vmatprep.subr.bf16.mxu0 0
      %682 = vmatpush1.bf16.msra.mxu0 %v569
      %683 = vmatprep.subr.bf16.mxu0 0
      %684 = vmatpush1.bf16.msra.mxu0 %v571
      %685 = vmatprep.subr.bf16.mxu0 0
      %686 = vmatpush1.bf16.msra.mxu0 0
      %687 = vmatprep.subr.bf16.mxu0 0
      %688 = vmatpush1.bf16.msra.mxu0 0
      %689 = vmatprep.subr.bf16.mxu0 0
      %690 = vmatpush1.bf16.msra.mxu0 0
      %691 = vmatprep.subr.bf16.mxu0 0
      %692 = vmatpush1.bf16.msra.mxu0 0
      %693 = vmatprep.subr.bf16.mxu0 0
      %694 = vmatpush1.bf16.msra.mxu0 0
      %695 = vmatprep.mubr.bf16.mxu0 %v620
      %696 = vmatmul.mubr.bf16.gmra.mrb[0].mxu0 %v613
      %v697 = vpop.f32.mrb[0].mxu0
      %v698 = vadd.f32 %v657, %v697
      %v699 = vpop.f32.mrb[0].mxu0
      %v700 = vpop.f32.mrb[0].mxu0
      %v701 = vadd.f32 %v660, %v700
      %v702 = vpop.f32.mrb[0].mxu0
      %703 = vdwg.mxu0
      %v704 = vmax.f32 %v698, 0.0
      %v705 = vmax.f32 %v701, 0.0
      %v706 = vld [vmem:[%s403] sm:$0x1]
      %vm707 = vcmp.gt.f32.partialorder %v706, 0.5
      %v708 = vsel %vm707, 1, 0
      %v709 = vlaneseq
      %v710 = vshrl.u32 %v709, 7
      %v711 = vsub.s32 0, %v710
      %v712 = vrot.slane %v708, %v711
      %vm713 = vcmp.eq.s32.totalorder %v712, 1
      %v714 = vsel %vm713, %v704, 0.0
      %v715 = vsel %vm713, %v705, 0.0
      %718 = vrot.lane.b32.xlu0 %v714, 11
      %v719 = vpop.permute.xlu0 %718
      %720 = vrot.lane.b32.xlu0 %v715, 11
      %v721 = vpop.permute.xlu0 %720
      %vm724 = vcmask 89088
      %v725 = vsel %vm724, 0.0, %v719
      %v726 = vsel %vm724, 0.0, %v721
      %vm727 = vcmask 908288
      %v728 = vsel %vm727, %v725, 0.0
      %v729 = vsel %vm727, %v726, 0.0
      %v730 = vpack.c.bf16 %v729, %v728
      %v732 = vunpack.c.l.b16 %v730
      %v733 = vunpack.c.h.b16 %v730
      %v734 = vpack.c.b16 %v732, %v732
      %v735 = vpack.c.b16 %v733, %v733
      %vm738 = vcmask 994304
      %739 = vst.msk [vmem:[%s467] sm:$0xf] %vm738, %v734
      %740 = vst.msk [vmem:[%s467 + $0x4] sm:$0xf] %vm738, %v735
      %p741 = scmp.lt.s32.totalorder %s21, 1
      %s742 = scalar_select %p741, %s21, 1
      %p743 = scmp.lt.s32.totalorder %s22, 5
      %s744 = scalar_select %p743, %s22, 5
      %s745 = smul.addr %s744, 2
      %s746 = smul.addr %s742, 12
      %s747 = sadd.s32 %s745, %s746
      %s748 = smul.addr %s747, 4
      %s749 = scalar_lea.vmem %s6, %s748
      // Predicated region
      $region45: #{inception_v4_forward.4} parent=43 // pred_check
        %p750 = pneg %p229
      $region46: #{inception_v4_forward.4} parent=43 // pred_check_branch
        %752 = sbr.rel (%p750) target = $region48
      $region47: #{inception_v4_forward.4} parent=43 // pred_region
        _
      $region48: #{inception_v4_forward.4} parent=43 // pred_fallthru
        _
    $region44: #{inception_v4_forward.4} parent=5 // pred_fallthru
      _
    %p753 = scmp.le.s32.totalorder 2, %s12
    // Predicated region
    $region49: #{inception_v4_forward.4} parent=5 // pred_check
      %p754 = pneg %p753
    $region50: #{inception_v4_forward.4} parent=5 // pred_check_branch
      %756 = sbr.rel (%p754) target = $region52
    $region51: #{inception_v4_forward.4} parent=5 // pred_region
      %s757 = ssub.s32 %s12, 2
      // Predicated region
      $region53: #{inception_v4_forward.4} parent=51 // pred_check
        %p758 = pneg %p235
      $region54: #{inception_v4_forward.4} parent=51 // pred_check_branch
        %760 = sbr.rel (%p758) target = $region56
      $region55: #{inception_v4_forward.4} parent=51 // pred_region
        %p761 = scmp.lt.s32.totalorder %s23, 1
        %s762 = scalar_select %p761, %s23, 1
        %p763 = scmp.lt.s32.totalorder %s24, 5
        %s764 = scalar_select %p763, %s24, 5
        %s765 = smul.addr %s764, 2
        %s766 = smul.addr %s762, 12
        %s767 = sadd.s32 %s765, %s766
        %s768 = smul.addr %s767, 4
        %s769 = scalar_lea.vmem %s6, %s768
      $region56: #{inception_v4_forward.4} parent=51 // pred_fallthru
        _
    $region52: #{inception_v4_forward.4} parent=5 // pred_fallthru
      _
  $region6: #{inception_v4_forward.4} parent=0 // loop_footer
    %s16 = sadd.s32 1, %s12
  $region7: #{inception_v4_forward.4} parent=0 // loop_footer_branch
    %11 = sbr.rel target = $region3
  $region8: #{inception_v4_forward.4} parent=0 // loop_exit
    _

</llo_original>
